<compile_context>
chip_gen: v5e
topology: v5e:2x2
jax: 0.10.0
libtpu: 0.0.40
codegen_flags: <defaults>
</compile_context>

<pallas_src>
import functools

import jax
import jax.numpy as jnp
from jax import lax
from jax.experimental import pallas as pl
from jax.experimental.pallas import tpu as pltpu

BN_EPS = 1e-5


# --------------------------------------------------------------------------
# Kernel helpers
# --------------------------------------------------------------------------
def _stage_padded(ref, interior):
    """Store `interior` (H, W, C) into the (H+2, W+2, C) zero-padded scratch.

    The left/right zero columns are folded into the single wide interior
    store (one (H, W+2, C) store instead of strided single-column stores);
    only the top/bottom rows need separate stores.  Everything is rewritten
    every grid step, so the kernel stays correct when the batch axis is
    split across TensorCores (megacore).
    """
    Hp, Wp, C = ref.shape
    H, W = Hp - 2, Wp - 2
    interior = interior.astype(ref.dtype)
    zcol = jnp.zeros((H, 1, C), ref.dtype)
    ref[1:H + 1, :, :] = jnp.concatenate([zcol, interior, zcol], axis=1)
    zrow = jnp.zeros((1, Wp, C), ref.dtype)
    ref[0:1, :, :] = zrow
    ref[Hp - 1:Hp, :, :] = zrow


def _conv3x3_fused(src_ref, w_ref, acc_ref, H, W, Cin):
    """acc_ref (H*W, Cout) f32  +=  3x3 conv of the zero-padded src_ref.

    The 3 kw taps of each kh row are fused into one MXU matmul with
    contraction K = 3*Cin (weights pre-reshaped to (3, 3*Cin, Cout)), so a
    conv is 3 matmuls instead of 9.
    """
    for kh in range(3):
        slab = src_ref[kh:kh + H]                                  # (H, W+2, Cin)
        patch = jnp.concatenate(
            [slab[:, 0:W, :], slab[:, 1:W + 1, :], slab[:, 2:W + 2, :]],
            axis=-1).reshape(H * W, 3 * Cin)                       # (H*W, 3*Cin)
        acc_ref[...] += jnp.dot(patch, w_ref[kh],
                                preferred_element_type=jnp.float32)


# --------------------------------------------------------------------------
# Kernel
# --------------------------------------------------------------------------
def _basic_block_kernel(x_ref, w1_ref, b1_ref, w2_ref, b2_ref, *rest,
                        has_projection):
    # x_ref:  (1, H, W, Cin) bf16 NHWC block (one batch element)
    # w1_ref: (3, 3*Cin, C) bf16 (BN1 scale folded);  b1_ref: (1, C) f32
    # w2_ref: (3, 3*C,  C) bf16 (BN2 scale folded);  b2_ref: (1, C) f32
    # [wsc_ref: (Cin, C) bf16 (BN folded); bsc_ref: (1, C) f32]  (projection only)
    # o_ref:  (1, H*W, C) bf16
    # scratch: xpad (H+2,W+2,Cin) bf16, h1pad (H+2,W+2,C) bf16, acc (H*W,C) f32
    if has_projection:
        wsc_ref, bsc_ref, o_ref, xpad_ref, h1pad_ref, acc_ref = rest
    else:
        o_ref, xpad_ref, h1pad_ref, acc_ref = rest

    H, W, Cin = x_ref.shape[1], x_ref.shape[2], x_ref.shape[3]
    C = acc_ref.shape[1]

    # ---- stage input into the zero-padded scratch (loaded once, reused) ----
    x_val = x_ref[0]
    _stage_padded(xpad_ref, x_val)

    # ---- conv1 (3x3) + folded-BN bias + ReLU ----
    acc_ref[...] = jnp.broadcast_to(b1_ref[...], (H * W, C))
    _conv3x3_fused(xpad_ref, w1_ref, acc_ref, H, W, Cin)
    h1 = jnp.maximum(acc_ref[...], 0.0)                    # f32
    _stage_padded(h1pad_ref, h1.reshape(H, W, C))          # bf16 for conv2

    # ---- shortcut seeds the conv2 accumulator (reuses staged x_val) ----
    x_flat = x_val.reshape(H * W, Cin)
    if has_projection:
        sc = jnp.dot(x_flat, wsc_ref[...], preferred_element_type=jnp.float32)
        acc_ref[...] = sc + (b2_ref[...] + bsc_ref[...])
    else:
        acc_ref[...] = x_flat.astype(jnp.float32) + b2_ref[...]

    # ---- conv2 (3x3) + residual + ReLU, bf16 store ----
    _conv3x3_fused(h1pad_ref, w2_ref, acc_ref, H, W, C)
    # TODO(synk): present the output as (H, W*C) for a fully lane-dense store
    # when C < 128 (needs a lane-dim reshape / relayout in-kernel).
    o_ref[0] = jnp.maximum(acc_ref[...], 0.0).astype(o_ref.dtype)


# --------------------------------------------------------------------------
# Wrapper
# --------------------------------------------------------------------------
def _fold_bn(gamma, beta, mean, var):
    scale = gamma / jnp.sqrt(var + BN_EPS)
    bias = beta - mean * scale
    return scale.astype(jnp.float32), bias.astype(jnp.float32)


def _fold3x3(w_oihw, scale):
    # OIHW -> HWIO, fold per-out-channel BN scale, fuse the 3 kw taps into a
    # single contraction (K = 3*Cin) per kh row, cast to bf16.
    w = jnp.transpose(w_oihw, (2, 3, 1, 0)).astype(jnp.float32) * scale   # (3,3,Cin,C)
    kh, kw, cin, cout = w.shape
    return w.reshape(kh, kw * cin, cout).astype(jnp.bfloat16)             # (3,3*Cin,C)


def basic_block_pallas(x_nchw, params, stride=1):
    """params: dict with PyTorch-shaped weights (conv: OIHW) + BN running stats."""
    # TODO(synk): stride > 1 (strided conv1 / strided 1x1 shortcut) not implemented.
    assert stride == 1, "only stride=1 supported by this kernel"

    N, Cin, H, W = x_nchw.shape
    C = params["w1"].shape[0]
    has_projection = "wsc" in params
    if not has_projection:
        assert Cin == C, "identity shortcut requires Cin == C"

    # NCHW -> NHWC, bf16 activations.
    # TODO(synk): keep the surrounding model NHWC/bf16 end-to-end to drop
    # these HBM-round-trip transposes.
    x = jnp.transpose(x_nchw, (0, 2, 3, 1)).astype(jnp.bfloat16)

    s1, b1 = _fold_bn(params["bn1_g"], params["bn1_b"], params["bn1_m"], params["bn1_v"])
    s2, b2 = _fold_bn(params["bn2_g"], params["bn2_b"], params["bn2_m"], params["bn2_v"])
    w1 = _fold3x3(params["w1"], s1)          # (3, 3*Cin, C)
    w2 = _fold3x3(params["w2"], s2)          # (3, 3*C,  C)
    b1 = b1.reshape(1, C)
    b2 = b2.reshape(1, C)

    full = lambda *shape: pl.BlockSpec(shape, lambda n: (0,) * len(shape))

    inputs = [x, w1, b1, w2, b2]
    in_specs = [
        # TODO(synk): DMA x straight into the padded-scratch interior
        # (memory_space=pl.ANY + make_async_copy double buffer) to remove the
        # VMEM->VMEM staging copy; consider pipeline_mode=pl.Buffered(3).
        pl.BlockSpec((1, H, W, Cin), lambda n: (n, 0, 0, 0)),
        full(3, 3 * Cin, C), full(1, C),
        full(3, 3 * C, C), full(1, C),
    ]
    if has_projection:
        ssc, bsc = _fold_bn(params["bnsc_g"], params["bnsc_b"],
                            params["bnsc_m"], params["bnsc_v"])
        wsc = (jnp.transpose(params["wsc"][:, :, 0, 0], (1, 0)).astype(jnp.float32)
               * ssc).astype(jnp.bfloat16)            # (Cin, C), BN scale folded
        inputs += [wsc, bsc.reshape(1, C)]
        in_specs += [full(Cin, C), full(1, C)]

    scratch_shapes = [
        pltpu.VMEM((H + 2, W + 2, Cin), jnp.bfloat16),   # zero-padded input
        pltpu.VMEM((H + 2, W + 2, C), jnp.bfloat16),     # zero-padded conv1 out
        pltpu.VMEM((H * W, C), jnp.float32),             # f32 conv accumulator
    ]

    # Scoped-VMEM budget derived from the block sizes, capped below the
    # physical per-core VMEM (v7x has only 64 MiB / TensorCore).
    # TODO(synk): channel-pad Cin/C to >=64/128 for v6e MXU fill at tiny C.
    needed = (
        2 * H * W * Cin * 2                                   # input block x2 buffers
        + 2 * H * W * C * 2                                   # output block x2 buffers (bf16)
        + 2 * ((9 * Cin * C + 9 * C * C + Cin * C) * 2 + 3 * C * 4)  # weights / biases
        + (H + 2) * (W + 2) * (Cin + C) * 2                   # padded scratches
        + H * W * C * 4                                       # f32 accumulator scratch
        + 3 * H * W * 3 * max(Cin, C) * 2                     # live im2col patches headroom
    )
    try:
        physical = getattr(pltpu.get_tpu_info(), "vmem_capacity_bytes",
                           64 * 1024 * 1024)
    except Exception:
        physical = 64 * 1024 * 1024
    cap = physical - 8 * 1024 * 1024                          # leave headroom
    vmem_limit = int(max(min(2 * needed, cap), min(32 * 1024 * 1024, cap)))

    kernel = functools.partial(_basic_block_kernel, has_projection=has_projection)

    # TODO(synk): add a second "parallel" grid axis (row bands with 1-row halo)
    # so both v7x TensorCores stay busy when N is small.
    out_flat = pl.pallas_call(
        kernel,
        out_shape=jax.ShapeDtypeStruct((N, H * W, C), jnp.bfloat16),
        grid_spec=pltpu.PrefetchScalarGridSpec(
            num_scalar_prefetch=0,
            grid=(N,),
            in_specs=in_specs,
            out_specs=pl.BlockSpec((1, H * W, C), lambda n: (n, 0, 0)),
            scratch_shapes=scratch_shapes,
        ),
        compiler_params=pltpu.CompilerParams(
            dimension_semantics=("parallel",),
            vmem_limit_bytes=vmem_limit,
        ),
    )(*inputs)

    out_nhwc = out_flat.reshape(N, H, W, C)
    return jnp.transpose(out_nhwc, (0, 3, 1, 2))  # back to NCHW (bf16)


# --------------------------------------------------------------------------
# Pure-JAX reference (same precision policy: bf16 matmul inputs, f32 accum)
# --------------------------------------------------------------------------
def basic_block_reference(x_nchw, params):
    N, Cin, H, W = x_nchw.shape
    C = params["w1"].shape[0]
    dn = ("NHWC", "HWIO", "NHWC")
    x = jnp.transpose(x_nchw, (0, 2, 3, 1)).astype(jnp.bfloat16)

    s1, b1 = _fold_bn(params["bn1_g"], params["bn1_b"], params["bn1_m"], params["bn1_v"])
    s2, b2 = _fold_bn(params["bn2_g"], params["bn2_b"], params["bn2_m"], params["bn2_v"])

    def conv3x3(h, w_oihw, scale):
        w = (jnp.transpose(w_oihw, (2, 3, 1, 0)).astype(jnp.float32) * scale
             ).astype(jnp.bfloat16)
        return lax.conv_general_dilated(h, w, (1, 1), "SAME",
                                        dimension_numbers=dn,
                                        preferred_element_type=jnp.float32)

    h = conv3x3(x, params["w1"], s1) + b1
    h = jnp.maximum(h, 0.0).astype(jnp.bfloat16)
    h = conv3x3(h, params["w2"], s2) + b2

    if "wsc" in params:
        ssc, bsc = _fold_bn(params["bnsc_g"], params["bnsc_b"],
                            params["bnsc_m"], params["bnsc_v"])
        wsc = (jnp.transpose(params["wsc"][:, :, 0, 0], (1, 0)).astype(jnp.float32)
               * ssc).astype(jnp.bfloat16)
        sc = jnp.dot(x.reshape(N * H * W, Cin), wsc,
                     preferred_element_type=jnp.float32).reshape(N, H, W, C) + bsc
    else:
        sc = x.astype(jnp.float32)

    out = jnp.maximum(h + sc, 0.0)
    return jnp.transpose(out, (0, 3, 1, 2))


def make_params(key, in_channels, channels, stride=1):
    ks = jax.random.split(key, 16)
    p = {
        "w1": 0.1 * jax.random.normal(ks[0], (channels, in_channels, 3, 3), jnp.float32),
        "bn1_g": jax.random.uniform(ks[1], (channels,), jnp.float32, 0.5, 1.5),
        "bn1_b": 0.1 * jax.random.normal(ks[2], (channels,), jnp.float32),
        "bn1_m": 0.1 * jax.random.normal(ks[3], (channels,), jnp.float32),
        "bn1_v": jax.random.uniform(ks[4], (channels,), jnp.float32, 0.5, 1.5),
        "w2": 0.1 * jax.random.normal(ks[5], (channels, channels, 3, 3), jnp.float32),
        "bn2_g": jax.random.uniform(ks[6], (channels,), jnp.float32, 0.5, 1.5),
        "bn2_b": 0.1 * jax.random.normal(ks[7], (channels,), jnp.float32),
        "bn2_m": 0.1 * jax.random.normal(ks[8], (channels,), jnp.float32),
        "bn2_v": jax.random.uniform(ks[9], (channels,), jnp.float32, 0.5, 1.5),
    }
    if stride != 1 or in_channels != channels:
        p.update({
            "wsc": 0.1 * jax.random.normal(ks[10], (channels, in_channels, 1, 1), jnp.float32),
            "bnsc_g": jax.random.uniform(ks[11], (channels,), jnp.float32, 0.5, 1.5),
            "bnsc_b": 0.1 * jax.random.normal(ks[12], (channels,), jnp.float32),
            "bnsc_m": 0.1 * jax.random.normal(ks[13], (channels,), jnp.float32),
            "bnsc_v": jax.random.uniform(ks[14], (channels,), jnp.float32, 0.5, 1.5),
        })
    return p


if __name__ == "__main__":
    key = jax.random.PRNGKey(0)
    k_x, k_p = jax.random.split(key)

    # Projection-shortcut block (Cin != C), stride=1.
    N, Cin, C, H, W = 2, 4, 8, 16, 16
    x = jax.random.normal(k_x, (N, Cin, H, W), jnp.float32)
    params = make_params(k_p, Cin, C, stride=1)

    out = jax.block_until_ready(basic_block_pallas(x, params, stride=1))
    ref = basic_block_reference(x, params)
    assert out.shape == (N, C, H, W)
    err = float(jnp.max(jnp.abs(out.astype(jnp.float32) - ref) / (1.0 + jnp.abs(ref))))
    assert err < 2e-2, f"projection-block mismatch vs reference: {err}"

    # Identity-shortcut block (Cin == C) — exercises the no-matmul shortcut path.
    params_id = make_params(jax.random.PRNGKey(1), C, C, stride=1)
    x2 = jax.random.normal(jax.random.PRNGKey(2), (N, C, H, W), jnp.float32)
    out2 = jax.block_until_ready(basic_block_pallas(x2, params_id, stride=1))
    ref2 = basic_block_reference(x2, params_id)
    err2 = float(jnp.max(jnp.abs(out2.astype(jnp.float32) - ref2) / (1.0 + jnp.abs(ref2))))
    assert err2 < 2e-2, f"identity-block mismatch vs reference: {err2}"

    print("KERNEL_OK")
</pallas_src>

<mosaic_0001>
module attributes {stable_mosaic.version = 11 : i64} {
  func.func @_basic_block_kernel(%arg0: i32, %arg1: memref<1x16x16x4xbf16, #tpu.memory_space<vmem>>, %arg2: memref<3x12x8xbf16, #tpu.memory_space<vmem>>, %arg3: memref<1x8xf32, #tpu.memory_space<vmem>>, %arg4: memref<3x24x8xbf16, #tpu.memory_space<vmem>>, %arg5: memref<1x8xf32, #tpu.memory_space<vmem>>, %arg6: memref<4x8xbf16, #tpu.memory_space<vmem>>, %arg7: memref<1x8xf32, #tpu.memory_space<vmem>>, %arg8: memref<1x256x8xbf16, #tpu.memory_space<vmem>>, %arg9: memref<18x18x4xbf16, #tpu.memory_space<vmem>>, %arg10: memref<18x18x8xbf16, #tpu.memory_space<vmem>>, %arg11: memref<256x8xf32, #tpu.memory_space<vmem>>) attributes {dimension_semantics = [#tpu.dimension_semantics<parallel>], iteration_bounds = array<i64: 2>, scalar_prefetch = 0 : i64, scratch_operands = 3 : i64, tpu.core_type = #tpu.core_type<tc>, window_params = [{transform_indices = @transform_0, window_bounds = array<i64: 1, 16, 16, 4>}, {pipeline_mode = #tpu.pipeline_mode<synchronous>, transform_indices = @transform_1, window_bounds = array<i64: 3, 12, 8>}, {pipeline_mode = #tpu.pipeline_mode<synchronous>, transform_indices = @transform_2, window_bounds = array<i64: 1, 8>}, {pipeline_mode = #tpu.pipeline_mode<synchronous>, transform_indices = @transform_3, window_bounds = array<i64: 3, 24, 8>}, {pipeline_mode = #tpu.pipeline_mode<synchronous>, transform_indices = @transform_4, window_bounds = array<i64: 1, 8>}, {pipeline_mode = #tpu.pipeline_mode<synchronous>, transform_indices = @transform_5, window_bounds = array<i64: 4, 8>}, {pipeline_mode = #tpu.pipeline_mode<synchronous>, transform_indices = @transform_6, window_bounds = array<i64: 1, 8>}, {transform_indices = @transform_7, window_bounds = array<i64: 1, 256, 8>}]} {
    %c0 = arith.constant 0 : index
    %c0_0 = arith.constant 0 : index
    %c0_1 = arith.constant 0 : index
    %c0_2 = arith.constant 0 : index
    %0 = vector.load %arg1[%c0, %c0_0, %c0_1, %c0_2] : memref<1x16x16x4xbf16, #tpu.memory_space<vmem>>, vector<1x16x16x4xbf16>
    %1 = vector.shape_cast %0 : vector<1x16x16x4xbf16> to vector<16x16x4xbf16>
    %cst = arith.constant 0.000000e+00 : bf16
    %2 = vector.broadcast %cst : bf16 to vector<16x1x4xbf16>
    %3 = tpu.concatenate %2, %1, %2 in 1 : vector<16x1x4xbf16>, vector<16x16x4xbf16>, vector<16x1x4xbf16> -> vector<16x18x4xbf16>
    %c1 = arith.constant 1 : index
    %c0_3 = arith.constant 0 : index
    %c0_4 = arith.constant 0 : index
    %4 = vector.load %arg9[%c1, %c0_3, %c0_4] : memref<18x18x4xbf16, #tpu.memory_space<vmem>>, vector<16x18x4xbf16>
    tpu.vector_store %arg9[%c1, %c0_3, %c0_4], %3 {strides = array<i32>} : memref<18x18x4xbf16, #tpu.memory_space<vmem>>, vector<16x18x4xbf16>,
    %cst_5 = arith.constant 0.000000e+00 : bf16
    %5 = vector.broadcast %cst_5 : bf16 to vector<1x18x4xbf16>
    %c0_6 = arith.constant 0 : index
    %c0_7 = arith.constant 0 : index
    %c0_8 = arith.constant 0 : index
    %6 = vector.load %arg9[%c0_6, %c0_7, %c0_8] : memref<18x18x4xbf16, #tpu.memory_space<vmem>>, vector<1x18x4xbf16>
    tpu.vector_store %arg9[%c0_6, %c0_7, %c0_8], %5 {strides = array<i32>} : memref<18x18x4xbf16, #tpu.memory_space<vmem>>, vector<1x18x4xbf16>,
    %c17 = arith.constant 17 : index
    %c0_9 = arith.constant 0 : index
    %c0_10 = arith.constant 0 : index
    %7 = vector.load %arg9[%c17, %c0_9, %c0_10] : memref<18x18x4xbf16, #tpu.memory_space<vmem>>, vector<1x18x4xbf16>
    tpu.vector_store %arg9[%c17, %c0_9, %c0_10], %5 {strides = array<i32>} : memref<18x18x4xbf16, #tpu.memory_space<vmem>>, vector<1x18x4xbf16>,
    %c0_11 = arith.constant 0 : index
    %c0_12 = arith.constant 0 : index
    %8 = vector.load %arg3[%c0_11, %c0_12] : memref<1x8xf32, #tpu.memory_space<vmem>>, vector<1x8xf32>
    %9 = vector.shape_cast %8 : vector<1x8xf32> to vector<1x8xf32>
    %10 = vector.broadcast %9 : vector<1x8xf32> to vector<256x8xf32>
    %c0_13 = arith.constant 0 : index
    %c0_14 = arith.constant 0 : index
    %11 = vector.load %arg11[%c0_13, %c0_14] : memref<256x8xf32, #tpu.memory_space<vmem>>, vector<256x8xf32>
    tpu.vector_store %arg11[%c0_13, %c0_14], %10 {strides = array<i32>} : memref<256x8xf32, #tpu.memory_space<vmem>>, vector<256x8xf32>,
    %c0_15 = arith.constant 0 : index
    %c0_16 = arith.constant 0 : index
    %c0_17 = arith.constant 0 : index
    %12 = vector.load %arg9[%c0_15, %c0_16, %c0_17] : memref<18x18x4xbf16, #tpu.memory_space<vmem>>, vector<16x18x4xbf16>
    %13 = vector.extract_strided_slice %12 {offsets = [0, 0, 0], sizes = [16, 16, 4], strides = [1, 1, 1]} : vector<16x18x4xbf16> to vector<16x16x4xbf16>
    %14 = vector.extract_strided_slice %12 {offsets = [0, 1, 0], sizes = [16, 16, 4], strides = [1, 1, 1]} : vector<16x18x4xbf16> to vector<16x16x4xbf16>
    %15 = vector.extract_strided_slice %12 {offsets = [0, 2, 0], sizes = [16, 16, 4], strides = [1, 1, 1]} : vector<16x18x4xbf16> to vector<16x16x4xbf16>
    %16 = tpu.concatenate %13, %14, %15 in 2 : vector<16x16x4xbf16>, vector<16x16x4xbf16>, vector<16x16x4xbf16> -> vector<16x16x12xbf16>
    %17 = vector.shape_cast %16 : vector<16x16x12xbf16> to vector<256x12xbf16>
    %c0_18 = arith.constant 0 : index
    %c0_19 = arith.constant 0 : index
    %18 = vector.load %arg11[%c0_18, %c0_19] : memref<256x8xf32, #tpu.memory_space<vmem>>, vector<256x8xf32>
    %c0_20 = arith.constant 0 : index
    %c0_21 = arith.constant 0 : index
    %c0_22 = arith.constant 0 : index
    %19 = vector.load %arg2[%c0_20, %c0_21, %c0_22] : memref<3x12x8xbf16, #tpu.memory_space<vmem>>, vector<1x12x8xbf16>
    %20 = vector.shape_cast %19 : vector<1x12x8xbf16> to vector<12x8xbf16>
    %cst_23 = arith.constant dense<0.000000e+00> : vector<256x8xf32>
    %21 = tpu.matmul %17, %20, %cst_23 {dimension_numbers = #tpu.dot_dimension_numbers<[1], [0], [0], [1], [0, 0, 1, 1], [], []>} : vector<256x12xbf16>, vector<12x8xbf16>, vector<256x8xf32> -> vector<256x8xf32>
    %22 = arith.addf %18, %21 : vector<256x8xf32>
    %c0_24 = arith.constant 0 : index
    %c0_25 = arith.constant 0 : index
    %23 = vector.load %arg11[%c0_24, %c0_25] : memref<256x8xf32, #tpu.memory_space<vmem>>, vector<256x8xf32>
    tpu.vector_store %arg11[%c0_24, %c0_25], %22 {strides = array<i32>} : memref<256x8xf32, #tpu.memory_space<vmem>>, vector<256x8xf32>,
    %c1_26 = arith.constant 1 : index
    %c0_27 = arith.constant 0 : index
    %c0_28 = arith.constant 0 : index
    %24 = vector.load %arg9[%c1_26, %c0_27, %c0_28] : memref<18x18x4xbf16, #tpu.memory_space<vmem>>, vector<16x18x4xbf16>
    %25 = vector.extract_strided_slice %24 {offsets = [0, 0, 0], sizes = [16, 16, 4], strides = [1, 1, 1]} : vector<16x18x4xbf16> to vector<16x16x4xbf16>
    %26 = vector.extract_strided_slice %24 {offsets = [0, 1, 0], sizes = [16, 16, 4], strides = [1, 1, 1]} : vector<16x18x4xbf16> to vector<16x16x4xbf16>
    %27 = vector.extract_strided_slice %24 {offsets = [0, 2, 0], sizes = [16, 16, 4], strides = [1, 1, 1]} : vector<16x18x4xbf16> to vector<16x16x4xbf16>
    %28 = tpu.concatenate %25, %26, %27 in 2 : vector<16x16x4xbf16>, vector<16x16x4xbf16>, vector<16x16x4xbf16> -> vector<16x16x12xbf16>
    %29 = vector.shape_cast %28 : vector<16x16x12xbf16> to vector<256x12xbf16>
    %c0_29 = arith.constant 0 : index
    %c0_30 = arith.constant 0 : index
    %30 = vector.load %arg11[%c0_29, %c0_30] : memref<256x8xf32, #tpu.memory_space<vmem>>, vector<256x8xf32>
    %c1_31 = arith.constant 1 : index
    %c0_32 = arith.constant 0 : index
    %c0_33 = arith.constant 0 : index
    %31 = vector.load %arg2[%c1_31, %c0_32, %c0_33] : memref<3x12x8xbf16, #tpu.memory_space<vmem>>, vector<1x12x8xbf16>
    %32 = vector.shape_cast %31 : vector<1x12x8xbf16> to vector<12x8xbf16>
    %cst_34 = arith.constant dense<0.000000e+00> : vector<256x8xf32>
    %33 = tpu.matmul %29, %32, %cst_34 {dimension_numbers = #tpu.dot_dimension_numbers<[1], [0], [0], [1], [0, 0, 1, 1], [], []>} : vector<256x12xbf16>, vector<12x8xbf16>, vector<256x8xf32> -> vector<256x8xf32>
    %34 = arith.addf %30, %33 : vector<256x8xf32>
    %c0_35 = arith.constant 0 : index
    %c0_36 = arith.constant 0 : index
    %35 = vector.load %arg11[%c0_35, %c0_36] : memref<256x8xf32, #tpu.memory_space<vmem>>, vector<256x8xf32>
    tpu.vector_store %arg11[%c0_35, %c0_36], %34 {strides = array<i32>} : memref<256x8xf32, #tpu.memory_space<vmem>>, vector<256x8xf32>,
    %c2 = arith.constant 2 : index
    %c0_37 = arith.constant 0 : index
    %c0_38 = arith.constant 0 : index
    %36 = vector.load %arg9[%c2, %c0_37, %c0_38] : memref<18x18x4xbf16, #tpu.memory_space<vmem>>, vector<16x18x4xbf16>
    %37 = vector.extract_strided_slice %36 {offsets = [0, 0, 0], sizes = [16, 16, 4], strides = [1, 1, 1]} : vector<16x18x4xbf16> to vector<16x16x4xbf16>
    %38 = vector.extract_strided_slice %36 {offsets = [0, 1, 0], sizes = [16, 16, 4], strides = [1, 1, 1]} : vector<16x18x4xbf16> to vector<16x16x4xbf16>
    %39 = vector.extract_strided_slice %36 {offsets = [0, 2, 0], sizes = [16, 16, 4], strides = [1, 1, 1]} : vector<16x18x4xbf16> to vector<16x16x4xbf16>
    %40 = tpu.concatenate %37, %38, %39 in 2 : vector<16x16x4xbf16>, vector<16x16x4xbf16>, vector<16x16x4xbf16> -> vector<16x16x12xbf16>
    %41 = vector.shape_cast %40 : vector<16x16x12xbf16> to vector<256x12xbf16>
    %c0_39 = arith.constant 0 : index
    %c0_40 = arith.constant 0 : index
    %42 = vector.load %arg11[%c0_39, %c0_40] : memref<256x8xf32, #tpu.memory_space<vmem>>, vector<256x8xf32>
    %c2_41 = arith.constant 2 : index
    %c0_42 = arith.constant 0 : index
    %c0_43 = arith.constant 0 : index
    %43 = vector.load %arg2[%c2_41, %c0_42, %c0_43] : memref<3x12x8xbf16, #tpu.memory_space<vmem>>, vector<1x12x8xbf16>
    %44 = vector.shape_cast %43 : vector<1x12x8xbf16> to vector<12x8xbf16>
    %cst_44 = arith.constant dense<0.000000e+00> : vector<256x8xf32>
    %45 = tpu.matmul %41, %44, %cst_44 {dimension_numbers = #tpu.dot_dimension_numbers<[1], [0], [0], [1], [0, 0, 1, 1], [], []>} : vector<256x12xbf16>, vector<12x8xbf16>, vector<256x8xf32> -> vector<256x8xf32>
    %46 = arith.addf %42, %45 : vector<256x8xf32>
    %c0_45 = arith.constant 0 : index
    %c0_46 = arith.constant 0 : index
    %47 = vector.load %arg11[%c0_45, %c0_46] : memref<256x8xf32, #tpu.memory_space<vmem>>, vector<256x8xf32>
    tpu.vector_store %arg11[%c0_45, %c0_46], %46 {strides = array<i32>} : memref<256x8xf32, #tpu.memory_space<vmem>>, vector<256x8xf32>,
    %c0_47 = arith.constant 0 : index
    %c0_48 = arith.constant 0 : index
    %48 = vector.load %arg11[%c0_47, %c0_48] : memref<256x8xf32, #tpu.memory_space<vmem>>, vector<256x8xf32>
    %cst_49 = arith.constant 0.000000e+00 : f32
    %49 = vector.broadcast %cst_49 : f32 to vector<256x8xf32>
    %50 = arith.maximumf %48, %49 : vector<256x8xf32>
    %51 = vector.shape_cast %50 : vector<256x8xf32> to vector<16x16x8xf32>
    %52 = arith.truncf %51 : vector<16x16x8xf32> to vector<16x16x8xbf16>
    %cst_50 = arith.constant 0.000000e+00 : bf16
    %53 = vector.broadcast %cst_50 : bf16 to vector<16x1x8xbf16>
    %54 = tpu.concatenate %53, %52, %53 in 1 : vector<16x1x8xbf16>, vector<16x16x8xbf16>, vector<16x1x8xbf16> -> vector<16x18x8xbf16>
    %c1_51 = arith.constant 1 : index
    %c0_52 = arith.constant 0 : index
    %c0_53 = arith.constant 0 : index
    %55 = vector.load %arg10[%c1_51, %c0_52, %c0_53] : memref<18x18x8xbf16, #tpu.memory_space<vmem>>, vector<16x18x8xbf16>
    tpu.vector_store %arg10[%c1_51, %c0_52, %c0_53], %54 {strides = array<i32>} : memref<18x18x8xbf16, #tpu.memory_space<vmem>>, vector<16x18x8xbf16>,
    %cst_54 = arith.constant 0.000000e+00 : bf16
    %56 = vector.broadcast %cst_54 : bf16 to vector<1x18x8xbf16>
    %c0_55 = arith.constant 0 : index
    %c0_56 = arith.constant 0 : index
    %c0_57 = arith.constant 0 : index
    %57 = vector.load %arg10[%c0_55, %c0_56, %c0_57] : memref<18x18x8xbf16, #tpu.memory_space<vmem>>, vector<1x18x8xbf16>
    tpu.vector_store %arg10[%c0_55, %c0_56, %c0_57], %56 {strides = array<i32>} : memref<18x18x8xbf16, #tpu.memory_space<vmem>>, vector<1x18x8xbf16>,
    %c17_58 = arith.constant 17 : index
    %c0_59 = arith.constant 0 : index
    %c0_60 = arith.constant 0 : index
    %58 = vector.load %arg10[%c17_58, %c0_59, %c0_60] : memref<18x18x8xbf16, #tpu.memory_space<vmem>>, vector<1x18x8xbf16>
    tpu.vector_store %arg10[%c17_58, %c0_59, %c0_60], %56 {strides = array<i32>} : memref<18x18x8xbf16, #tpu.memory_space<vmem>>, vector<1x18x8xbf16>,
    %59 = vector.shape_cast %1 : vector<16x16x4xbf16> to vector<256x4xbf16>
    %c0_61 = arith.constant 0 : index
    %c0_62 = arith.constant 0 : index
    %60 = vector.load %arg6[%c0_61, %c0_62] : memref<4x8xbf16, #tpu.memory_space<vmem>>, vector<4x8xbf16>
    %cst_63 = arith.constant dense<0.000000e+00> : vector<256x8xf32>
    %61 = tpu.matmul %59, %60, %cst_63 {dimension_numbers = #tpu.dot_dimension_numbers<[1], [0], [0], [1], [0, 0, 1, 1], [], []>} : vector<256x4xbf16>, vector<4x8xbf16>, vector<256x8xf32> -> vector<256x8xf32>
    %c0_64 = arith.constant 0 : index
    %c0_65 = arith.constant 0 : index
    %62 = vector.load %arg5[%c0_64, %c0_65] : memref<1x8xf32, #tpu.memory_space<vmem>>, vector<1x8xf32>
    %c0_66 = arith.constant 0 : index
    %c0_67 = arith.constant 0 : index
    %63 = vector.load %arg7[%c0_66, %c0_67] : memref<1x8xf32, #tpu.memory_space<vmem>>, vector<1x8xf32>
    %64 = arith.addf %62, %63 : vector<1x8xf32>
    %65 = vector.broadcast %64 : vector<1x8xf32> to vector<256x8xf32>
    %66 = arith.addf %61, %65 : vector<256x8xf32>
    %c0_68 = arith.constant 0 : index
    %c0_69 = arith.constant 0 : index
    %67 = vector.load %arg11[%c0_68, %c0_69] : memref<256x8xf32, #tpu.memory_space<vmem>>, vector<256x8xf32>
    tpu.vector_store %arg11[%c0_68, %c0_69], %66 {strides = array<i32>} : memref<256x8xf32, #tpu.memory_space<vmem>>, vector<256x8xf32>,
    %c0_70 = arith.constant 0 : index
    %c0_71 = arith.constant 0 : index
    %c0_72 = arith.constant 0 : index
    %68 = vector.load %arg10[%c0_70, %c0_71, %c0_72] : memref<18x18x8xbf16, #tpu.memory_space<vmem>>, vector<16x18x8xbf16>
    %69 = vector.extract_strided_slice %68 {offsets = [0, 0, 0], sizes = [16, 16, 8], strides = [1, 1, 1]} : vector<16x18x8xbf16> to vector<16x16x8xbf16>
    %70 = vector.extract_strided_slice %68 {offsets = [0, 1, 0], sizes = [16, 16, 8], strides = [1, 1, 1]} : vector<16x18x8xbf16> to vector<16x16x8xbf16>
    %71 = vector.extract_strided_slice %68 {offsets = [0, 2, 0], sizes = [16, 16, 8], strides = [1, 1, 1]} : vector<16x18x8xbf16> to vector<16x16x8xbf16>
    %72 = tpu.concatenate %69, %70, %71 in 2 : vector<16x16x8xbf16>, vector<16x16x8xbf16>, vector<16x16x8xbf16> -> vector<16x16x24xbf16>
    %73 = vector.shape_cast %72 : vector<16x16x24xbf16> to vector<256x24xbf16>
    %c0_73 = arith.constant 0 : index
    %c0_74 = arith.constant 0 : index
    %74 = vector.load %arg11[%c0_73, %c0_74] : memref<256x8xf32, #tpu.memory_space<vmem>>, vector<256x8xf32>
    %c0_75 = arith.constant 0 : index
    %c0_76 = arith.constant 0 : index
    %c0_77 = arith.constant 0 : index
    %75 = vector.load %arg4[%c0_75, %c0_76, %c0_77] : memref<3x24x8xbf16, #tpu.memory_space<vmem>>, vector<1x24x8xbf16>
    %76 = vector.shape_cast %75 : vector<1x24x8xbf16> to vector<24x8xbf16>
    %cst_78 = arith.constant dense<0.000000e+00> : vector<256x8xf32>
    %77 = tpu.matmul %73, %76, %cst_78 {dimension_numbers = #tpu.dot_dimension_numbers<[1], [0], [0], [1], [0, 0, 1, 1], [], []>} : vector<256x24xbf16>, vector<24x8xbf16>, vector<256x8xf32> -> vector<256x8xf32>
    %78 = arith.addf %74, %77 : vector<256x8xf32>
    %c0_79 = arith.constant 0 : index
    %c0_80 = arith.constant 0 : index
    %79 = vector.load %arg11[%c0_79, %c0_80] : memref<256x8xf32, #tpu.memory_space<vmem>>, vector<256x8xf32>
    tpu.vector_store %arg11[%c0_79, %c0_80], %78 {strides = array<i32>} : memref<256x8xf32, #tpu.memory_space<vmem>>, vector<256x8xf32>,
    %c1_81 = arith.constant 1 : index
    %c0_82 = arith.constant 0 : index
    %c0_83 = arith.constant 0 : index
    %80 = vector.load %arg10[%c1_81, %c0_82, %c0_83] : memref<18x18x8xbf16, #tpu.memory_space<vmem>>, vector<16x18x8xbf16>
    %81 = vector.extract_strided_slice %80 {offsets = [0, 0, 0], sizes = [16, 16, 8], strides = [1, 1, 1]} : vector<16x18x8xbf16> to vector<16x16x8xbf16>
    %82 = vector.extract_strided_slice %80 {offsets = [0, 1, 0], sizes = [16, 16, 8], strides = [1, 1, 1]} : vector<16x18x8xbf16> to vector<16x16x8xbf16>
    %83 = vector.extract_strided_slice %80 {offsets = [0, 2, 0], sizes = [16, 16, 8], strides = [1, 1, 1]} : vector<16x18x8xbf16> to vector<16x16x8xbf16>
    %84 = tpu.concatenate %81, %82, %83 in 2 : vector<16x16x8xbf16>, vector<16x16x8xbf16>, vector<16x16x8xbf16> -> vector<16x16x24xbf16>
    %85 = vector.shape_cast %84 : vector<16x16x24xbf16> to vector<256x24xbf16>
    %c0_84 = arith.constant 0 : index
    %c0_85 = arith.constant 0 : index
    %86 = vector.load %arg11[%c0_84, %c0_85] : memref<256x8xf32, #tpu.memory_space<vmem>>, vector<256x8xf32>
    %c1_86 = arith.constant 1 : index
    %c0_87 = arith.constant 0 : index
    %c0_88 = arith.constant 0 : index
    %87 = vector.load %arg4[%c1_86, %c0_87, %c0_88] : memref<3x24x8xbf16, #tpu.memory_space<vmem>>, vector<1x24x8xbf16>
    %88 = vector.shape_cast %87 : vector<1x24x8xbf16> to vector<24x8xbf16>
    %cst_89 = arith.constant dense<0.000000e+00> : vector<256x8xf32>
    %89 = tpu.matmul %85, %88, %cst_89 {dimension_numbers = #tpu.dot_dimension_numbers<[1], [0], [0], [1], [0, 0, 1, 1], [], []>} : vector<256x24xbf16>, vector<24x8xbf16>, vector<256x8xf32> -> vector<256x8xf32>
    %90 = arith.addf %86, %89 : vector<256x8xf32>
    %c0_90 = arith.constant 0 : index
    %c0_91 = arith.constant 0 : index
    %91 = vector.load %arg11[%c0_90, %c0_91] : memref<256x8xf32, #tpu.memory_space<vmem>>, vector<256x8xf32>
    tpu.vector_store %arg11[%c0_90, %c0_91], %90 {strides = array<i32>} : memref<256x8xf32, #tpu.memory_space<vmem>>, vector<256x8xf32>,
    %c2_92 = arith.constant 2 : index
    %c0_93 = arith.constant 0 : index
    %c0_94 = arith.constant 0 : index
    %92 = vector.load %arg10[%c2_92, %c0_93, %c0_94] : memref<18x18x8xbf16, #tpu.memory_space<vmem>>, vector<16x18x8xbf16>
    %93 = vector.extract_strided_slice %92 {offsets = [0, 0, 0], sizes = [16, 16, 8], strides = [1, 1, 1]} : vector<16x18x8xbf16> to vector<16x16x8xbf16>
    %94 = vector.extract_strided_slice %92 {offsets = [0, 1, 0], sizes = [16, 16, 8], strides = [1, 1, 1]} : vector<16x18x8xbf16> to vector<16x16x8xbf16>
    %95 = vector.extract_strided_slice %92 {offsets = [0, 2, 0], sizes = [16, 16, 8], strides = [1, 1, 1]} : vector<16x18x8xbf16> to vector<16x16x8xbf16>
    %96 = tpu.concatenate %93, %94, %95 in 2 : vector<16x16x8xbf16>, vector<16x16x8xbf16>, vector<16x16x8xbf16> -> vector<16x16x24xbf16>
    %97 = vector.shape_cast %96 : vector<16x16x24xbf16> to vector<256x24xbf16>
    %c0_95 = arith.constant 0 : index
    %c0_96 = arith.constant 0 : index
    %98 = vector.load %arg11[%c0_95, %c0_96] : memref<256x8xf32, #tpu.memory_space<vmem>>, vector<256x8xf32>
    %c2_97 = arith.constant 2 : index
    %c0_98 = arith.constant 0 : index
    %c0_99 = arith.constant 0 : index
    %99 = vector.load %arg4[%c2_97, %c0_98, %c0_99] : memref<3x24x8xbf16, #tpu.memory_space<vmem>>, vector<1x24x8xbf16>
    %100 = vector.shape_cast %99 : vector<1x24x8xbf16> to vector<24x8xbf16>
    %cst_100 = arith.constant dense<0.000000e+00> : vector<256x8xf32>
    %101 = tpu.matmul %97, %100, %cst_100 {dimension_numbers = #tpu.dot_dimension_numbers<[1], [0], [0], [1], [0, 0, 1, 1], [], []>} : vector<256x24xbf16>, vector<24x8xbf16>, vector<256x8xf32> -> vector<256x8xf32>
    %102 = arith.addf %98, %101 : vector<256x8xf32>
    %c0_101 = arith.constant 0 : index
    %c0_102 = arith.constant 0 : index
    %103 = vector.load %arg11[%c0_101, %c0_102] : memref<256x8xf32, #tpu.memory_space<vmem>>, vector<256x8xf32>
    tpu.vector_store %arg11[%c0_101, %c0_102], %102 {strides = array<i32>} : memref<256x8xf32, #tpu.memory_space<vmem>>, vector<256x8xf32>,
    %c0_103 = arith.constant 0 : index
    %c0_104 = arith.constant 0 : index
    %104 = vector.load %arg11[%c0_103, %c0_104] : memref<256x8xf32, #tpu.memory_space<vmem>>, vector<256x8xf32>
    %cst_105 = arith.constant 0.000000e+00 : f32
    %105 = vector.broadcast %cst_105 : f32 to vector<256x8xf32>
    %106 = arith.maximumf %104, %105 : vector<256x8xf32>
    %107 = arith.truncf %106 : vector<256x8xf32> to vector<256x8xbf16>
    %c0_106 = arith.constant 0 : index
    %c0_107 = arith.constant 0 : index
    %c0_108 = arith.constant 0 : index
    %108 = vector.load %arg8[%c0_106, %c0_107, %c0_108] : memref<1x256x8xbf16, #tpu.memory_space<vmem>>, vector<1x256x8xbf16>
    %109 = vector.shape_cast %108 : vector<1x256x8xbf16> to vector<256x8xbf16>
    %110 = vector.shape_cast %107 : vector<256x8xbf16> to vector<1x256x8xbf16>
    tpu.vector_store %arg8[%c0_106, %c0_107, %c0_108], %110 {strides = array<i32>} : memref<1x256x8xbf16, #tpu.memory_space<vmem>>, vector<1x256x8xbf16>,
    return
  }
  func.func @transform_0(%arg0: i32) -> (i32, i32, i32, i32) {
    %c0_i32 = arith.constant 0 : i32
    %c0_i32_0 = arith.constant 0 : i32
    %c0_i32_1 = arith.constant 0 : i32
    %c0_i32_2 = arith.constant 0 : i32
    return %arg0, %c0_i32, %c0_i32_0, %c0_i32_1 : i32, i32, i32, i32
  }
  func.func @transform_1(%arg0: i32) -> (i32, i32, i32) {
    %c0_i32 = arith.constant 0 : i32
    %c0_i32_0 = arith.constant 0 : i32
    %c0_i32_1 = arith.constant 0 : i32
    %c0_i32_2 = arith.constant 0 : i32
    return %c0_i32, %c0_i32_0, %c0_i32_1 : i32, i32, i32
  }
  func.func @transform_2(%arg0: i32) -> (i32, i32) {
    %c0_i32 = arith.constant 0 : i32
    %c0_i32_0 = arith.constant 0 : i32
    %c0_i32_1 = arith.constant 0 : i32
    return %c0_i32, %c0_i32_0 : i32, i32
  }
  func.func @transform_3(%arg0: i32) -> (i32, i32, i32) {
    %c0_i32 = arith.constant 0 : i32
    %c0_i32_0 = arith.constant 0 : i32
    %c0_i32_1 = arith.constant 0 : i32
    %c0_i32_2 = arith.constant 0 : i32
    return %c0_i32, %c0_i32_0, %c0_i32_1 : i32, i32, i32
  }
  func.func @transform_4(%arg0: i32) -> (i32, i32) {
    %c0_i32 = arith.constant 0 : i32
    %c0_i32_0 = arith.constant 0 : i32
    %c0_i32_1 = arith.constant 0 : i32
    return %c0_i32, %c0_i32_0 : i32, i32
  }
  func.func @transform_5(%arg0: i32) -> (i32, i32) {
    %c0_i32 = arith.constant 0 : i32
    %c0_i32_0 = arith.constant 0 : i32
    %c0_i32_1 = arith.constant 0 : i32
    return %c0_i32, %c0_i32_0 : i32, i32
  }
  func.func @transform_6(%arg0: i32) -> (i32, i32) {
    %c0_i32 = arith.constant 0 : i32
    %c0_i32_0 = arith.constant 0 : i32
    %c0_i32_1 = arith.constant 0 : i32
    return %c0_i32, %c0_i32_0 : i32, i32
  }
  func.func @transform_7(%arg0: i32) -> (i32, i32, i32) {
    %c0_i32 = arith.constant 0 : i32
    %c0_i32_0 = arith.constant 0 : i32
    %c0_i32_1 = arith.constant 0 : i32
    return %arg0, %c0_i32, %c0_i32_0 : i32, i32, i32
  }
}

</mosaic_0001>

<llo_original>
// kernel: tpu_custom_call.1
$region0: #{tpu_custom_call.1}
  #allocation0 [shape = 'u32[]', space=smem, size = 0x4, offset = 0x4, fixed_abs, tag = 'smem constant byte address 0x4 - core index']
  #allocation1 [shape = 'u32[72,128]{1,0:T(1,128)}', space=vmem, size = 0x9000, scoped, tag = 'internal scratch']
  #allocation2 [shape = 'bf16[18,18,4]{2,1,0:T(8,128)(2,1)}', space=vmem, size = 0x1b000, scoped, tag = 'scratch operand']
  #allocation3 [shape = 'bf16[18,18,8]{2,1,0:T(8,128)(2,1)}', space=vmem, size = 0x1b000, scoped, tag = 'scratch operand']
  #allocation4 [shape = 'f32[256,8]{1,0:T(8,128)}', space=vmem, size = 0x20000, scoped, tag = 'scratch operand']
  %s0 = inlined_call_operand.vmem [shape: bf16[2,16,16,4], index: 0, kind: input, shape index: {}]
  %s1 = inlined_call_operand.vmem [shape: bf16[3,12,8], index: 1, kind: input, shape index: {}]
  %s2 = inlined_call_operand.vmem [shape: f32[1,8], index: 2, kind: input, shape index: {}]
  %s3 = inlined_call_operand.vmem [shape: bf16[3,24,8], index: 3, kind: input, shape index: {}]
  %s4 = inlined_call_operand.vmem [shape: f32[1,8], index: 4, kind: input, shape index: {}]
  %s5 = inlined_call_operand.vmem [shape: bf16[4,8], index: 5, kind: input, shape index: {}]
  %s6 = inlined_call_operand.vmem [shape: f32[1,8], index: 6, kind: input, shape index: {}]
  %s7 = inlined_call_operand.vmem [shape: bf16[2,256,8], index: 7, kind: output, shape index: {}]
  %s8 = sld [smem:[#allocation0]]
  $region61: #{tpu_custom_call.1} parent=0
    _
  %s10 = ssub.s32 1, %s8
  %s11 = scalar_select 0, %s10, %s8
  loop: start=0, step=1, limit=4
  $region2: #{tpu_custom_call.1} parent=0 // loop_pre_header
    _
  $region3: #{tpu_custom_call.1} parent=0 // loop_header
    %s13 = sphi 0, %s17
    %p14 = scmp.ge.s32.totalorder %s13, 4
    %s23 = sphi 0, %s25
    %s26 = sphi 0, %s23
    %s27 = sphi 0, %s26
    %s43 = sphi 0, %s27
    %s47 = sphi 0, %s47
    %s49 = sphi 0, %s47
    %s50 = sphi 0, %s49
    %s64 = sphi 0, %s50
    %s68 = sphi 0, %s68
    %s70 = sphi 0, %s68
    %s71 = sphi 0, %s70
    %s85 = sphi 0, %s71
    %s89 = sphi 0, %s89
    %s91 = sphi 0, %s89
    %s92 = sphi 0, %s91
    %s106 = sphi 0, %s92
    %s110 = sphi 0, %s110
    %s112 = sphi 0, %s110
    %s113 = sphi 0, %s112
    %s127 = sphi 0, %s113
    %s131 = sphi 0, %s131
    %s133 = sphi 0, %s131
    %s134 = sphi 0, %s133
    %s148 = sphi 0, %s134
    %s152 = sphi 0, %s152
    %s154 = sphi 0, %s152
    %s155 = sphi 0, %s154
    %s169 = sphi 0, %s155
    %s175 = sphi 0, %s177
    %s178 = sphi 0, %s175
    %s179 = sphi 0, %s178
    %s195 = sphi 0, %s179
  $region4: #{tpu_custom_call.1} parent=0 // loop_header_branch
    %16 = sbr.rel (%p14) target = $region8
  $region5: #{tpu_custom_call.1} parent=0 // loop_body
    %s18 = ssub.s32 %s13, 1
    %s19 = ssub.s32 %s13, 2
    %s20 = sadd.s32 %s13, 1
    %s21 = ssub.s32 %s13, %s20
    %p22 = scmp.eq.s32.totalorder %s21, 0
    %s24 = sadd.s32 %s23, 1
    %s25 = scalar_select %p22, %s23, %s24
    %p28 = pneg %p22
    %p29 = scmp.eq.s32.totalorder %s13, 1
    %p30 = por %p28, %p29
    %p31 = scmp.ne.s32.totalorder %s23, %s26
    %p32 = scmp.eq.s32.totalorder %s13, 0
    %p33 = por %p31, %p32
    %p34 = scmp.ne.s32.totalorder %s23, %s26
    %p35 = scmp.eq.s32.totalorder %s18, 1
    %p36 = por %p34, %p35
    %p37 = scmp.ne.s32.totalorder %s26, %s27
    %p38 = scmp.eq.s32.totalorder %s18, 0
    %p39 = por %p37, %p38
    %p40 = scmp.ne.s32.totalorder %s26, %s27
    %p41 = scmp.eq.s32.totalorder %s19, 1
    %p42 = por %p40, %p41
    %p44 = scmp.ne.s32.totalorder %s27, %s43
    %p45 = scmp.eq.s32.totalorder %s19, 0
    %p46 = por %p44, %p45
    %s48 = sadd.s32 %s47, 1
    %p51 = scmp.eq.s32.totalorder %s13, 1
    %p52 = scmp.ne.s32.totalorder %s47, %s49
    %p53 = scmp.eq.s32.totalorder %s13, 0
    %p54 = por %p52, %p53
    %p55 = scmp.ne.s32.totalorder %s47, %s49
    %p56 = scmp.eq.s32.totalorder %s18, 1
    %p57 = por %p55, %p56
    %p58 = scmp.ne.s32.totalorder %s49, %s50
    %p59 = scmp.eq.s32.totalorder %s18, 0
    %p60 = por %p58, %p59
    %p61 = scmp.ne.s32.totalorder %s49, %s50
    %p62 = scmp.eq.s32.totalorder %s19, 1
    %p63 = por %p61, %p62
    %p65 = scmp.ne.s32.totalorder %s50, %s64
    %p66 = scmp.eq.s32.totalorder %s19, 0
    %p67 = por %p65, %p66
    %s69 = sadd.s32 %s68, 1
    %p72 = scmp.eq.s32.totalorder %s13, 1
    %p73 = scmp.ne.s32.totalorder %s68, %s70
    %p74 = scmp.eq.s32.totalorder %s13, 0
    %p75 = por %p73, %p74
    %p76 = scmp.ne.s32.totalorder %s68, %s70
    %p77 = scmp.eq.s32.totalorder %s18, 1
    %p78 = por %p76, %p77
    %p79 = scmp.ne.s32.totalorder %s70, %s71
    %p80 = scmp.eq.s32.totalorder %s18, 0
    %p81 = por %p79, %p80
    %p82 = scmp.ne.s32.totalorder %s70, %s71
    %p83 = scmp.eq.s32.totalorder %s19, 1
    %p84 = por %p82, %p83
    %p86 = scmp.ne.s32.totalorder %s71, %s85
    %p87 = scmp.eq.s32.totalorder %s19, 0
    %p88 = por %p86, %p87
    %s90 = sadd.s32 %s89, 1
    %p93 = scmp.eq.s32.totalorder %s13, 1
    %p94 = scmp.ne.s32.totalorder %s89, %s91
    %p95 = scmp.eq.s32.totalorder %s13, 0
    %p96 = por %p94, %p95
    %p97 = scmp.ne.s32.totalorder %s89, %s91
    %p98 = scmp.eq.s32.totalorder %s18, 1
    %p99 = por %p97, %p98
    %p100 = scmp.ne.s32.totalorder %s91, %s92
    %p101 = scmp.eq.s32.totalorder %s18, 0
    %p102 = por %p100, %p101
    %p103 = scmp.ne.s32.totalorder %s91, %s92
    %p104 = scmp.eq.s32.totalorder %s19, 1
    %p105 = por %p103, %p104
    %p107 = scmp.ne.s32.totalorder %s92, %s106
    %p108 = scmp.eq.s32.totalorder %s19, 0
    %p109 = por %p107, %p108
    %s111 = sadd.s32 %s110, 1
    %p114 = scmp.eq.s32.totalorder %s13, 1
    %p115 = scmp.ne.s32.totalorder %s110, %s112
    %p116 = scmp.eq.s32.totalorder %s13, 0
    %p117 = por %p115, %p116
    %p118 = scmp.ne.s32.totalorder %s110, %s112
    %p119 = scmp.eq.s32.totalorder %s18, 1
    %p120 = por %p118, %p119
    %p121 = scmp.ne.s32.totalorder %s112, %s113
    %p122 = scmp.eq.s32.totalorder %s18, 0
    %p123 = por %p121, %p122
    %p124 = scmp.ne.s32.totalorder %s112, %s113
    %p125 = scmp.eq.s32.totalorder %s19, 1
    %p126 = por %p124, %p125
    %p128 = scmp.ne.s32.totalorder %s113, %s127
    %p129 = scmp.eq.s32.totalorder %s19, 0
    %p130 = por %p128, %p129
    %s132 = sadd.s32 %s131, 1
    %p135 = scmp.eq.s32.totalorder %s13, 1
    %p136 = scmp.ne.s32.totalorder %s131, %s133
    %p137 = scmp.eq.s32.totalorder %s13, 0
    %p138 = por %p136, %p137
    %p139 = scmp.ne.s32.totalorder %s131, %s133
    %p140 = scmp.eq.s32.totalorder %s18, 1
    %p141 = por %p139, %p140
    %p142 = scmp.ne.s32.totalorder %s133, %s134
    %p143 = scmp.eq.s32.totalorder %s18, 0
    %p144 = por %p142, %p143
    %p145 = scmp.ne.s32.totalorder %s133, %s134
    %p146 = scmp.eq.s32.totalorder %s19, 1
    %p147 = por %p145, %p146
    %p149 = scmp.ne.s32.totalorder %s134, %s148
    %p150 = scmp.eq.s32.totalorder %s19, 0
    %p151 = por %p149, %p150
    %s153 = sadd.s32 %s152, 1
    %p156 = scmp.eq.s32.totalorder %s13, 1
    %p157 = scmp.ne.s32.totalorder %s152, %s154
    %p158 = scmp.eq.s32.totalorder %s13, 0
    %p159 = por %p157, %p158
    %p160 = scmp.ne.s32.totalorder %s152, %s154
    %p161 = scmp.eq.s32.totalorder %s18, 1
    %p162 = por %p160, %p161
    %p163 = scmp.ne.s32.totalorder %s154, %s155
    %p164 = scmp.eq.s32.totalorder %s18, 0
    %p165 = por %p163, %p164
    %p166 = scmp.ne.s32.totalorder %s154, %s155
    %p167 = scmp.eq.s32.totalorder %s19, 1
    %p168 = por %p166, %p167
    %p170 = scmp.ne.s32.totalorder %s155, %s169
    %p171 = scmp.eq.s32.totalorder %s19, 0
    %p172 = por %p170, %p171
    %s173 = ssub.s32 %s13, %s20
    %p174 = scmp.eq.s32.totalorder %s173, 0
    %s176 = sadd.s32 %s175, 1
    %s177 = scalar_select %p174, %s175, %s176
    %p180 = pneg %p174
    %p181 = scmp.eq.s32.totalorder %s13, 1
    %p182 = por %p180, %p181
    %p183 = scmp.ne.s32.totalorder %s175, %s178
    %p184 = scmp.eq.s32.totalorder %s13, 0
    %p185 = por %p183, %p184
    %p186 = scmp.ne.s32.totalorder %s175, %s178
    %p187 = scmp.eq.s32.totalorder %s18, 1
    %p188 = por %p186, %p187
    %p189 = scmp.ne.s32.totalorder %s178, %s179
    %p190 = scmp.eq.s32.totalorder %s18, 0
    %p191 = por %p189, %p190
    %p192 = scmp.ne.s32.totalorder %s178, %s179
    %p193 = scmp.eq.s32.totalorder %s19, 1
    %p194 = por %p192, %p193
    %p196 = scmp.ne.s32.totalorder %s179, %s195
    %p197 = scmp.eq.s32.totalorder %s19, 0
    %p198 = por %p196, %p197
    %p199 = scmp.le.s32.totalorder 1, %s13
    %p200 = scmp.lt.s32.totalorder %s13, 3
    %p201 = pnand %p199, %p200
    %p202 = pneg %p201
    // Predicated region
    $region9: #{tpu_custom_call.1} parent=5 // pred_check
      _
    $region10: #{tpu_custom_call.1} parent=5 // pred_check_branch
      %204 = sbr.rel (%p201) target = $region12
    $region11: #{tpu_custom_call.1} parent=5 // pred_region
      %s205 = ssub.s32 %s13, 1
      // Predicated region
      $region13: #{tpu_custom_call.1} parent=11 // pred_check
        %p206 = pneg %p60
      $region14: #{tpu_custom_call.1} parent=11 // pred_check_branch
        %208 = sbr.rel (%p206) target = $region16
      $region15: #{tpu_custom_call.1} parent=11 // pred_region
        _
      $region16: #{tpu_custom_call.1} parent=11 // pred_fallthru
        _
      // Predicated region
      $region17: #{tpu_custom_call.1} parent=11 // pred_check
        %p209 = pneg %p81
      $region18: #{tpu_custom_call.1} parent=11 // pred_check_branch
        %211 = sbr.rel (%p209) target = $region20
      $region19: #{tpu_custom_call.1} parent=11 // pred_region
        _
      $region20: #{tpu_custom_call.1} parent=11 // pred_fallthru
        _
      // Predicated region
      $region21: #{tpu_custom_call.1} parent=11 // pred_check
        %p212 = pneg %p102
      $region22: #{tpu_custom_call.1} parent=11 // pred_check_branch
        %214 = sbr.rel (%p212) target = $region24
      $region23: #{tpu_custom_call.1} parent=11 // pred_region
        _
      $region24: #{tpu_custom_call.1} parent=11 // pred_fallthru
        _
      // Predicated region
      $region25: #{tpu_custom_call.1} parent=11 // pred_check
        %p215 = pneg %p123
      $region26: #{tpu_custom_call.1} parent=11 // pred_check_branch
        %217 = sbr.rel (%p215) target = $region28
      $region27: #{tpu_custom_call.1} parent=11 // pred_region
        _
      $region28: #{tpu_custom_call.1} parent=11 // pred_fallthru
        _
      // Predicated region
      $region29: #{tpu_custom_call.1} parent=11 // pred_check
        %p218 = pneg %p144
      $region30: #{tpu_custom_call.1} parent=11 // pred_check_branch
        %220 = sbr.rel (%p218) target = $region32
      $region31: #{tpu_custom_call.1} parent=11 // pred_region
        _
      $region32: #{tpu_custom_call.1} parent=11 // pred_fallthru
        _
      // Predicated region
      $region33: #{tpu_custom_call.1} parent=11 // pred_check
        %p221 = pneg %p165
      $region34: #{tpu_custom_call.1} parent=11 // pred_check_branch
        %223 = sbr.rel (%p221) target = $region36
      $region35: #{tpu_custom_call.1} parent=11 // pred_region
        _
      $region36: #{tpu_custom_call.1} parent=11 // pred_fallthru
        _
    $region12: #{tpu_custom_call.1} parent=5 // pred_fallthru
      _
    %p224 = scmp.lt.s32.totalorder %s13, 2
    // Predicated region
    $region37: #{tpu_custom_call.1} parent=5 // pred_check
      %p225 = pneg %p224
    $region38: #{tpu_custom_call.1} parent=5 // pred_check_branch
      %227 = sbr.rel (%p225) target = $region40
    $region39: #{tpu_custom_call.1} parent=5 // pred_region
      // Predicated region
      $region41: #{tpu_custom_call.1} parent=39 // pred_check
        %p228 = pneg %p33
      $region42: #{tpu_custom_call.1} parent=39 // pred_check_branch
        %230 = sbr.rel (%p228) target = $region44
      $region43: #{tpu_custom_call.1} parent=39 // pred_region
        %p231 = scmp.lt.s32.totalorder %s13, 1
        %s232 = scalar_select %p231, %s13, 1
        %s233 = smul.addr %s232, 32
        %s234 = smul.addr %s233, 4
        %s235 = scalar_lea.vmem %s0, %s234
      $region44: #{tpu_custom_call.1} parent=39 // pred_fallthru
        _
    $region40: #{tpu_custom_call.1} parent=5 // pred_fallthru
      _
    %p236 = scmp.le.s32.totalorder 1, %s13
    %p237 = scmp.lt.s32.totalorder %s13, 3
    %p238 = pnand %p236, %p237
    %p239 = pneg %p238
    // Predicated region
    $region45: #{tpu_custom_call.1} parent=5 // pred_check
      _
    $region46: #{tpu_custom_call.1} parent=5 // pred_check_branch
      %241 = sbr.rel (%p238) target = $region48
    $region47: #{tpu_custom_call.1} parent=5 // pred_region
      %s242 = ssub.s32 %s13, 1
      %p243 = scmp.lt.s32.totalorder %s18, 1
      %s244 = scalar_select %p243, %s18, 1
      %s245 = smul.addr %s244, 32
      %s246 = smul.addr %s245, 4
      %s247 = scalar_lea.vmem %s0, %s246
      %p248 = pneg %p39
      %p249 = pneg %p36
      %p250 = pneg %p60
      %p251 = pneg %p57
      %p252 = pneg %p81
      %p253 = pneg %p78
      %p254 = pneg %p102
      %p255 = pneg %p99
      %p256 = pneg %p123
      %p257 = pneg %p120
      %p258 = pneg %p144
      %p259 = pneg %p141
      %p260 = pneg %p165
      %p261 = pneg %p162
      %p262 = pneg %p191
      %p263 = pneg %p188
      %p264 = scmp.lt.s32.totalorder %s18, 1
      %s265 = scalar_select %p264, %s18, 1
      %s266 = smul.addr %s265, 32
      %s267 = smul.addr %s266, 4
      %s268 = scalar_lea.vmem %s7, %s267
      %p269 = scmp.lt.s32.totalorder %s18, 1
      %s270 = scalar_select %p269, %s18, 1
      %s271 = smul.addr %s270, 32
      %s272 = smul.addr %s271, 4
      %s273 = scalar_lea.vmem %s0, %s272
      %p274 = scmp.lt.s32.totalorder %s18, 1
      %s275 = scalar_select %p274, %s18, 1
      %s276 = smul.addr %s275, 32
      %s277 = smul.addr %s276, 4
      %s278 = scalar_lea.vmem %s7, %s277
      %v280 = vld [vmem:[%s273] sm:$0xf]
      %v281 = vld [vmem:[%s273 + $0x4] sm:$0xf]
      %v282 = vld [vmem:[%s273 + $0x8] sm:$0xf]
      %v283 = vld [vmem:[%s273 + $0xc] sm:$0xf]
      %v284 = vld [vmem:[%s273 + $0x10] sm:$0xf]
      %v285 = vld [vmem:[%s273 + $0x14] sm:$0xf]
      %v286 = vld [vmem:[%s273 + $0x18] sm:$0xf]
      %v287 = vld [vmem:[%s273 + $0x1c] sm:$0xf]
      %v288 = vld [vmem:[%s273 + $0x20] sm:$0xf]
      %v289 = vld [vmem:[%s273 + $0x24] sm:$0xf]
      %v290 = vld [vmem:[%s273 + $0x28] sm:$0xf]
      %v291 = vld [vmem:[%s273 + $0x2c] sm:$0xf]
      %v292 = vld [vmem:[%s273 + $0x30] sm:$0xf]
      %v293 = vld [vmem:[%s273 + $0x34] sm:$0xf]
      %v294 = vld [vmem:[%s273 + $0x38] sm:$0xf]
      %v295 = vld [vmem:[%s273 + $0x3c] sm:$0xf]
      %v296 = vld [vmem:[%s273 + $0x40] sm:$0xf]
      %v297 = vld [vmem:[%s273 + $0x44] sm:$0xf]
      %v298 = vld [vmem:[%s273 + $0x48] sm:$0xf]
      %v299 = vld [vmem:[%s273 + $0x4c] sm:$0xf]
      %v300 = vld [vmem:[%s273 + $0x50] sm:$0xf]
      %v301 = vld [vmem:[%s273 + $0x54] sm:$0xf]
      %v302 = vld [vmem:[%s273 + $0x58] sm:$0xf]
      %v303 = vld [vmem:[%s273 + $0x5c] sm:$0xf]
      %v304 = vld [vmem:[%s273 + $0x60] sm:$0xf]
      %v305 = vld [vmem:[%s273 + $0x64] sm:$0xf]
      %v306 = vld [vmem:[%s273 + $0x68] sm:$0xf]
      %v307 = vld [vmem:[%s273 + $0x6c] sm:$0xf]
      %v308 = vld [vmem:[%s273 + $0x70] sm:$0xf]
      %v309 = vld [vmem:[%s273 + $0x74] sm:$0xf]
      %v310 = vld [vmem:[%s273 + $0x78] sm:$0xf]
      %v311 = vld [vmem:[%s273 + $0x7c] sm:$0xf]
      %v344 = vunpack.c.l.b16 %v280
      %v345 = vunpack.c.l.b16 %v281
      %v346 = vunpack.c.l.b16 %v282
      %v347 = vunpack.c.l.b16 %v283
      %v348 = vunpack.c.l.b16 %v284
      %v349 = vunpack.c.l.b16 %v285
      %v350 = vunpack.c.l.b16 %v286
      %v351 = vunpack.c.l.b16 %v287
      %v352 = vunpack.c.l.b16 %v288
      %v353 = vunpack.c.l.b16 %v289
      %v354 = vunpack.c.l.b16 %v290
      %v355 = vunpack.c.l.b16 %v291
      %v356 = vunpack.c.l.b16 %v292
      %v357 = vunpack.c.l.b16 %v293
      %v358 = vunpack.c.l.b16 %v294
      %v359 = vunpack.c.l.b16 %v295
      %v360 = vunpack.c.l.b16 %v296
      %v361 = vunpack.c.l.b16 %v297
      %v362 = vunpack.c.l.b16 %v298
      %v363 = vunpack.c.l.b16 %v299
      %v364 = vunpack.c.l.b16 %v300
      %v365 = vunpack.c.l.b16 %v301
      %v366 = vunpack.c.l.b16 %v302
      %v367 = vunpack.c.l.b16 %v303
      %v368 = vunpack.c.l.b16 %v304
      %v369 = vunpack.c.l.b16 %v305
      %v370 = vunpack.c.l.b16 %v306
      %v371 = vunpack.c.l.b16 %v307
      %v372 = vunpack.c.l.b16 %v308
      %v373 = vunpack.c.l.b16 %v309
      %v374 = vunpack.c.l.b16 %v310
      %v375 = vunpack.c.l.b16 %v311
      %v376 = vpack.c.b16 %v345, %v344
      %v377 = vpack.c.b16 %v347, %v346
      %v378 = vpack.c.b16 %v349, %v348
      %v379 = vpack.c.b16 %v351, %v350
      %v380 = vpack.c.b16 %v353, %v352
      %v381 = vpack.c.b16 %v355, %v354
      %v382 = vpack.c.b16 %v357, %v356
      %v383 = vpack.c.b16 %v359, %v358
      %v384 = vpack.c.b16 %v361, %v360
      %v385 = vpack.c.b16 %v363, %v362
      %v386 = vpack.c.b16 %v365, %v364
      %v387 = vpack.c.b16 %v367, %v366
      %v388 = vpack.c.b16 %v369, %v368
      %v389 = vpack.c.b16 %v371, %v370
      %v390 = vpack.c.b16 %v373, %v372
      %v391 = vpack.c.b16 %v375, %v374
      %v393 = vshrl.u32 %v376, 16
      %v395 = vrot.slane %v393, 7
      %v396 = vshll.u32 %v376, 16
      %v398 = vor.u32 %v395, %v396
      %v400 = vshrl.u32 %v377, 16
      %v402 = vrot.slane %v400, 7
      %v403 = vshll.u32 %v377, 16
      %v405 = vor.u32 %v402, %v403
      %v407 = vshrl.u32 %v378, 16
      %v409 = vrot.slane %v407, 7
      %v410 = vshll.u32 %v378, 16
      %v412 = vor.u32 %v409, %v410
      %v414 = vshrl.u32 %v379, 16
      %v416 = vrot.slane %v414, 7
      %v417 = vshll.u32 %v379, 16
      %v419 = vor.u32 %v416, %v417
      %v421 = vshrl.u32 %v380, 16
      %v423 = vrot.slane %v421, 7
      %v424 = vshll.u32 %v380, 16
      %v426 = vor.u32 %v423, %v424
      %v428 = vshrl.u32 %v381, 16
      %v430 = vrot.slane %v428, 7
      %v431 = vshll.u32 %v381, 16
      %v433 = vor.u32 %v430, %v431
      %v435 = vshrl.u32 %v382, 16
      %v437 = vrot.slane %v435, 7
      %v438 = vshll.u32 %v382, 16
      %v440 = vor.u32 %v437, %v438
      %v442 = vshrl.u32 %v383, 16
      %v444 = vrot.slane %v442, 7
      %v445 = vshll.u32 %v383, 16
      %v447 = vor.u32 %v444, %v445
      %v449 = vshrl.u32 %v384, 16
      %v451 = vrot.slane %v449, 7
      %v452 = vshll.u32 %v384, 16
      %v454 = vor.u32 %v451, %v452
      %v456 = vshrl.u32 %v385, 16
      %v458 = vrot.slane %v456, 7
      %v459 = vshll.u32 %v385, 16
      %v461 = vor.u32 %v458, %v459
      %v463 = vshrl.u32 %v386, 16
      %v465 = vrot.slane %v463, 7
      %v466 = vshll.u32 %v386, 16
      %v468 = vor.u32 %v465, %v466
      %v470 = vshrl.u32 %v387, 16
      %v472 = vrot.slane %v470, 7
      %v473 = vshll.u32 %v387, 16
      %v475 = vor.u32 %v472, %v473
      %v477 = vshrl.u32 %v388, 16
      %v479 = vrot.slane %v477, 7
      %v480 = vshll.u32 %v388, 16
      %v482 = vor.u32 %v479, %v480
      %v484 = vshrl.u32 %v389, 16
      %v486 = vrot.slane %v484, 7
      %v487 = vshll.u32 %v389, 16
      %v489 = vor.u32 %v486, %v487
      %v491 = vshrl.u32 %v390, 16
      %v493 = vrot.slane %v491, 7
      %v494 = vshll.u32 %v390, 16
      %v496 = vor.u32 %v493, %v494
      %v498 = vshrl.u32 %v391, 16
      %v500 = vrot.slane %v498, 7
      %v501 = vshll.u32 %v391, 16
      %v503 = vor.u32 %v500, %v501
      %vm536 = vcmask 1040384
      %vm537 = vsmask.f32 256
      %vm538 = vmand %vm536, %vm537
      %v539 = vsel %vm538, 0, %v398
      %v540 = vsel %vm538, 0, %v405
      %v541 = vsel %vm538, 0, %v412
      %v542 = vsel %vm538, 0, %v419
      %v543 = vsel %vm538, 0, %v426
      %v544 = vsel %vm538, 0, %v433
      %v545 = vsel %vm538, 0, %v440
      %v546 = vsel %vm538, 0, %v447
      %v547 = vsel %vm538, 0, %v454
      %v548 = vsel %vm538, 0, %v461
      %v549 = vsel %vm538, 0, %v468
      %v550 = vsel %vm538, 0, %v475
      %v551 = vsel %vm538, 0, %v482
      %v552 = vsel %vm538, 0, %v489
      %v553 = vsel %vm538, 0, %v496
      %v554 = vsel %vm538, 0, %v503
      %v555 = vsel %vm538, %v395, 0
      %v556 = vsel %vm538, %v402, 0
      %v557 = vsel %vm538, %v409, 0
      %v558 = vsel %vm538, %v416, 0
      %v559 = vsel %vm538, %v423, 0
      %v560 = vsel %vm538, %v430, 0
      %v561 = vsel %vm538, %v437, 0
      %v562 = vsel %vm538, %v444, 0
      %v563 = vsel %vm538, %v451, 0
      %v564 = vsel %vm538, %v458, 0
      %v565 = vsel %vm538, %v465, 0
      %v566 = vsel %vm538, %v472, 0
      %v567 = vsel %vm538, %v479, 0
      %v568 = vsel %vm538, %v486, 0
      %v569 = vsel %vm538, %v493, 0
      %v570 = vsel %vm538, %v500, 0
      %v603 = vunpack.c.l.b16 %v539
      %v604 = vunpack.c.h.b16 %v539
      %v605 = vunpack.c.l.b16 %v555
      %v606 = vunpack.c.l.b16 %v540
      %v607 = vunpack.c.h.b16 %v540
      %v608 = vunpack.c.l.b16 %v556
      %v609 = vunpack.c.l.b16 %v541
      %v610 = vunpack.c.h.b16 %v541
      %v611 = vunpack.c.l.b16 %v557
      %v612 = vunpack.c.l.b16 %v542
      %v613 = vunpack.c.h.b16 %v542
      %v614 = vunpack.c.l.b16 %v558
      %v615 = vunpack.c.l.b16 %v543
      %v616 = vunpack.c.h.b16 %v543
      %v617 = vunpack.c.l.b16 %v559
      %v618 = vunpack.c.l.b16 %v544
      %v619 = vunpack.c.h.b16 %v544
      %v620 = vunpack.c.l.b16 %v560
      %v621 = vunpack.c.l.b16 %v545
      %v622 = vunpack.c.h.b16 %v545
      %v623 = vunpack.c.l.b16 %v561
      %v624 = vunpack.c.l.b16 %v546
      %v625 = vunpack.c.h.b16 %v546
      %v626 = vunpack.c.l.b16 %v562
      %v627 = vunpack.c.l.b16 %v547
      %v628 = vunpack.c.h.b16 %v547
      %v629 = vunpack.c.l.b16 %v563
      %v630 = vunpack.c.l.b16 %v548
      %v631 = vunpack.c.h.b16 %v548
      %v632 = vunpack.c.l.b16 %v564
      %v633 = vunpack.c.l.b16 %v549
      %v634 = vunpack.c.h.b16 %v549
      %v635 = vunpack.c.l.b16 %v565
      %v636 = vunpack.c.l.b16 %v550
      %v637 = vunpack.c.h.b16 %v550
      %v638 = vunpack.c.l.b16 %v566
      %v639 = vunpack.c.l.b16 %v551
      %v640 = vunpack.c.h.b16 %v551
      %v641 = vunpack.c.l.b16 %v567
      %v642 = vunpack.c.l.b16 %v552
      %v643 = vunpack.c.h.b16 %v552
      %v644 = vunpack.c.l.b16 %v568
      %v645 = vunpack.c.l.b16 %v553
      %v646 = vunpack.c.h.b16 %v553
      %v647 = vunpack.c.l.b16 %v569
      %v648 = vunpack.c.l.b16 %v554
      %v649 = vunpack.c.h.b16 %v554
      %v650 = vunpack.c.l.b16 %v570
      %v651 = vpack.c.b16 %v603, %v603
      %v652 = vpack.c.b16 %v604, %v604
      %v653 = vpack.c.b16 %v605, %v605
      %v654 = vpack.c.b16 %v606, %v606
      %v655 = vpack.c.b16 %v607, %v607
      %v656 = vpack.c.b16 %v608, %v608
      %v657 = vpack.c.b16 %v609, %v609
      %v658 = vpack.c.b16 %v610, %v610
      %v659 = vpack.c.b16 %v611, %v611
      %v660 = vpack.c.b16 %v612, %v612
      %v661 = vpack.c.b16 %v613, %v613
      %v662 = vpack.c.b16 %v614, %v614
      %v663 = vpack.c.b16 %v615, %v615
      %v664 = vpack.c.b16 %v616, %v616
      %v665 = vpack.c.b16 %v617, %v617
      %v666 = vpack.c.b16 %v618, %v618
      %v667 = vpack.c.b16 %v619, %v619
      %v668 = vpack.c.b16 %v620, %v620
      %v669 = vpack.c.b16 %v621, %v621
      %v670 = vpack.c.b16 %v622, %v622
      %v671 = vpack.c.b16 %v623, %v623
      %v672 = vpack.c.b16 %v624, %v624
      %v673 = vpack.c.b16 %v625, %v625
      %v674 = vpack.c.b16 %v626, %v626
      %v675 = vpack.c.b16 %v627, %v627
      %v676 = vpack.c.b16 %v628, %v628
      %v677 = vpack.c.b16 %v629, %v629
      %v678 = vpack.c.b16 %v630, %v630
      %v679 = vpack.c.b16 %v631, %v631
      %v680 = vpack.c.b16 %v632, %v632
      %v681 = vpack.c.b16 %v633, %v633
      %v682 = vpack.c.b16 %v634, %v634
      %v683 = vpack.c.b16 %v635, %v635
      %v684 = vpack.c.b16 %v636, %v636
      %v685 = vpack.c.b16 %v637, %v637
      %v686 = vpack.c.b16 %v638, %v638
      %v687 = vpack.c.b16 %v639, %v639
      %v688 = vpack.c.b16 %v640, %v640
      %v689 = vpack.c.b16 %v641, %v641
      %v690 = vpack.c.b16 %v642, %v642
      %v691 = vpack.c.b16 %v643, %v643
      %v692 = vpack.c.b16 %v644, %v644
      %v693 = vpack.c.b16 %v645, %v645
      %v694 = vpack.c.b16 %v646, %v646
      %v695 = vpack.c.b16 %v647, %v647
      %v696 = vpack.c.b16 %v648, %v648
      %v697 = vpack.c.b16 %v649, %v649
      %v698 = vpack.c.b16 %v650, %v650
      %s747 = scalar_lea.vmem [#allocation2], 12
      %vm748 = vcmask 27648
      %749 = vst.msk [vmem:[%s747] sm:$0xf] %vm748, %v651
      %750 = vst.msk [vmem:[%s747 + $0x4] sm:$0xf] %vm748, %v652
      %vm751 = vcmask 24576
      %752 = vst.msk [vmem:[%s747 + $0x8] sm:$0x1] %vm751, %v653
      %753 = vst.msk [vmem:[%s747 + $0xc] sm:$0xf] %vm748, %v654
      %754 = vst.msk [vmem:[%s747 + $0x10] sm:$0xf] %vm748, %v655
      %755 = vst.msk [vmem:[%s747 + $0x14] sm:$0x1] %vm751, %v656
      %756 = vst.msk [vmem:[%s747 + $0x18] sm:$0xf] %vm748, %v657
      %757 = vst.msk [vmem:[%s747 + $0x1c] sm:$0xf] %vm748, %v658
      %758 = vst.msk [vmem:[%s747 + $0x20] sm:$0x1] %vm751, %v659
      %759 = vst.msk [vmem:[%s747 + $0x24] sm:$0xf] %vm748, %v660
      %760 = vst.msk [vmem:[%s747 + $0x28] sm:$0xf] %vm748, %v661
      %761 = vst.msk [vmem:[%s747 + $0x2c] sm:$0x1] %vm751, %v662
      %762 = vst.msk [vmem:[%s747 + $0x30] sm:$0xf] %vm748, %v663
      %763 = vst.msk [vmem:[%s747 + $0x34] sm:$0xf] %vm748, %v664
      %764 = vst.msk [vmem:[%s747 + $0x38] sm:$0x1] %vm751, %v665
      %765 = vst.msk [vmem:[%s747 + $0x3c] sm:$0xf] %vm748, %v666
      %766 = vst.msk [vmem:[%s747 + $0x40] sm:$0xf] %vm748, %v667
      %767 = vst.msk [vmem:[%s747 + $0x44] sm:$0x1] %vm751, %v668
      %768 = vst.msk [vmem:[%s747 + $0x48] sm:$0xf] %vm748, %v669
      %769 = vst.msk [vmem:[%s747 + $0x4c] sm:$0xf] %vm748, %v670
      %770 = vst.msk [vmem:[%s747 + $0x50] sm:$0x1] %vm751, %v671
      %771 = vst.msk [vmem:[%s747 + $0x54] sm:$0xf] %vm748, %v672
      %772 = vst.msk [vmem:[%s747 + $0x58] sm:$0xf] %vm748, %v673
      %773 = vst.msk [vmem:[%s747 + $0x5c] sm:$0x1] %vm751, %v674
      %774 = vst.msk [vmem:[%s747 + $0x60] sm:$0xf] %vm748, %v675
      %775 = vst.msk [vmem:[%s747 + $0x64] sm:$0xf] %vm748, %v676
      %776 = vst.msk [vmem:[%s747 + $0x68] sm:$0x1] %vm751, %v677
      %777 = vst.msk [vmem:[%s747 + $0x6c] sm:$0xf] %vm748, %v678
      %778 = vst.msk [vmem:[%s747 + $0x70] sm:$0xf] %vm748, %v679
      %779 = vst.msk [vmem:[%s747 + $0x74] sm:$0x1] %vm751, %v680
      %780 = vst.msk [vmem:[%s747 + $0x78] sm:$0xf] %vm748, %v681
      %781 = vst.msk [vmem:[%s747 + $0x7c] sm:$0xf] %vm748, %v682
      %782 = vst.msk [vmem:[%s747 + $0x80] sm:$0x1] %vm751, %v683
      %783 = vst.msk [vmem:[%s747 + $0x84] sm:$0xf] %vm748, %v684
      %784 = vst.msk [vmem:[%s747 + $0x88] sm:$0xf] %vm748, %v685
      %785 = vst.msk [vmem:[%s747 + $0x8c] sm:$0x1] %vm751, %v686
      %786 = vst.msk [vmem:[%s747 + $0x90] sm:$0xf] %vm748, %v687
      %787 = vst.msk [vmem:[%s747 + $0x94] sm:$0xf] %vm748, %v688
      %788 = vst.msk [vmem:[%s747 + $0x98] sm:$0x1] %vm751, %v689
      %789 = vst.msk [vmem:[%s747 + $0x9c] sm:$0xf] %vm748, %v690
      %790 = vst.msk [vmem:[%s747 + $0xa0] sm:$0xf] %vm748, %v691
      %791 = vst.msk [vmem:[%s747 + $0xa4] sm:$0x1] %vm751, %v692
      %792 = vst.msk [vmem:[%s747 + $0xa8] sm:$0xf] %vm748, %v693
      %793 = vst.msk [vmem:[%s747 + $0xac] sm:$0xf] %vm748, %v694
      %794 = vst.msk [vmem:[%s747 + $0xb0] sm:$0x1] %vm751, %v695
      %795 = vst.msk [vmem:[%s747 + $0xb4] sm:$0xf] %vm748, %v696
      %796 = vst.msk [vmem:[%s747 + $0xb8] sm:$0xf] %vm748, %v697
      %797 = vst.msk [vmem:[%s747 + $0xbc] sm:$0x1] %vm751, %v698
      %798 = vst.msk [vmem:[#allocation2] sm:$0xf] %vm748, 0
      %799 = vst.msk [vmem:[#allocation2 + $0x4] sm:$0xf] %vm748, 0
      %800 = vst.msk [vmem:[#allocation2 + $0x8] sm:$0x1] %vm751, 0
      %s801 = scalar_lea.vmem [#allocation2], 204
      %802 = vst.msk [vmem:[%s801] sm:$0xf] %vm748, 0
      %803 = vst.msk [vmem:[%s801 + $0x4] sm:$0xf] %vm748, 0
      %804 = vst.msk [vmem:[%s801 + $0x8] sm:$0x1] %vm751, 0
      %v805 = vld [vmem:[%s2] sm:$0x1]
      %v807 = vperm.slane %v805, 0
      %vm809 = vcmask 64512
      %810 = vst.msk [vmem:[#allocation4] sm:$0xff] %vm809, %v807
      %811 = vst.msk [vmem:[#allocation4 + $0x8] sm:$0xff] %vm809, %v807
      %812 = vst.msk [vmem:[#allocation4 + $0x10] sm:$0xff] %vm809, %v807
      %813 = vst.msk [vmem:[#allocation4 + $0x18] sm:$0xff] %vm809, %v807
      %814 = vst.msk [vmem:[#allocation4 + $0x20] sm:$0xff] %vm809, %v807
      %815 = vst.msk [vmem:[#allocation4 + $0x28] sm:$0xff] %vm809, %v807
      %816 = vst.msk [vmem:[#allocation4 + $0x30] sm:$0xff] %vm809, %v807
      %817 = vst.msk [vmem:[#allocation4 + $0x38] sm:$0xff] %vm809, %v807
      %818 = vst.msk [vmem:[#allocation4 + $0x40] sm:$0xff] %vm809, %v807
      %819 = vst.msk [vmem:[#allocation4 + $0x48] sm:$0xff] %vm809, %v807
      %820 = vst.msk [vmem:[#allocation4 + $0x50] sm:$0xff] %vm809, %v807
      %821 = vst.msk [vmem:[#allocation4 + $0x58] sm:$0xff] %vm809, %v807
      %822 = vst.msk [vmem:[#allocation4 + $0x60] sm:$0xff] %vm809, %v807
      %823 = vst.msk [vmem:[#allocation4 + $0x68] sm:$0xff] %vm809, %v807
      %824 = vst.msk [vmem:[#allocation4 + $0x70] sm:$0xff] %vm809, %v807
      %825 = vst.msk [vmem:[#allocation4 + $0x78] sm:$0xff] %vm809, %v807
      %826 = vst.msk [vmem:[#allocation4 + $0x80] sm:$0xff] %vm809, %v807
      %827 = vst.msk [vmem:[#allocation4 + $0x88] sm:$0xff] %vm809, %v807
      %828 = vst.msk [vmem:[#allocation4 + $0x90] sm:$0xff] %vm809, %v807
      %829 = vst.msk [vmem:[#allocation4 + $0x98] sm:$0xff] %vm809, %v807
      %830 = vst.msk [vmem:[#allocation4 + $0xa0] sm:$0xff] %vm809, %v807
      %831 = vst.msk [vmem:[#allocation4 + $0xa8] sm:$0xff] %vm809, %v807
      %832 = vst.msk [vmem:[#allocation4 + $0xb0] sm:$0xff] %vm809, %v807
      %833 = vst.msk [vmem:[#allocation4 + $0xb8] sm:$0xff] %vm809, %v807
      %834 = vst.msk [vmem:[#allocation4 + $0xc0] sm:$0xff] %vm809, %v807
      %835 = vst.msk [vmem:[#allocation4 + $0xc8] sm:$0xff] %vm809, %v807
      %836 = vst.msk [vmem:[#allocation4 + $0xd0] sm:$0xff] %vm809, %v807
      %837 = vst.msk [vmem:[#allocation4 + $0xd8] sm:$0xff] %vm809, %v807
      %838 = vst.msk [vmem:[#allocation4 + $0xe0] sm:$0xff] %vm809, %v807
      %839 = vst.msk [vmem:[#allocation4 + $0xe8] sm:$0xff] %vm809, %v807
      %840 = vst.msk [vmem:[#allocation4 + $0xf0] sm:$0xff] %vm809, %v807
      %841 = vst.msk [vmem:[#allocation4 + $0xf8] sm:$0xff] %vm809, %v807
      %v842 = vld [vmem:[#allocation2] sm:$0xf]
      %v843 = vld [vmem:[#allocation2 + $0x4] sm:$0xf]
      %v844 = vld [vmem:[#allocation2 + $0x8] sm:$0x1]
      %v845 = vld [vmem:[#allocation2 + $0xc] sm:$0xf]
      %v846 = vld [vmem:[#allocation2 + $0x10] sm:$0xf]
      %v847 = vld [vmem:[#allocation2 + $0x14] sm:$0x1]
      %v848 = vld [vmem:[#allocation2 + $0x18] sm:$0xf]
      %v849 = vld [vmem:[#allocation2 + $0x1c] sm:$0xf]
      %v850 = vld [vmem:[#allocation2 + $0x20] sm:$0x1]
      %v851 = vld [vmem:[#allocation2 + $0x24] sm:$0xf]
      %v852 = vld [vmem:[#allocation2 + $0x28] sm:$0xf]
      %v853 = vld [vmem:[#allocation2 + $0x2c] sm:$0x1]
      %v854 = vld [vmem:[#allocation2 + $0x30] sm:$0xf]
      %v855 = vld [vmem:[#allocation2 + $0x34] sm:$0xf]
      %v856 = vld [vmem:[#allocation2 + $0x38] sm:$0x1]
      %v857 = vld [vmem:[#allocation2 + $0x3c] sm:$0xf]
      %v858 = vld [vmem:[#allocation2 + $0x40] sm:$0xf]
      %v859 = vld [vmem:[#allocation2 + $0x44] sm:$0x1]
      %v860 = vld [vmem:[#allocation2 + $0x48] sm:$0xf]
      %v861 = vld [vmem:[#allocation2 + $0x4c] sm:$0xf]
      %v862 = vld [vmem:[#allocation2 + $0x50] sm:$0x1]
      %v863 = vld [vmem:[#allocation2 + $0x54] sm:$0xf]
      %v864 = vld [vmem:[#allocation2 + $0x58] sm:$0xf]
      %v865 = vld [vmem:[#allocation2 + $0x5c] sm:$0x1]
      %v866 = vld [vmem:[#allocation2 + $0x60] sm:$0xf]
      %v867 = vld [vmem:[#allocation2 + $0x64] sm:$0xf]
      %v868 = vld [vmem:[#allocation2 + $0x68] sm:$0x1]
      %v869 = vld [vmem:[#allocation2 + $0x6c] sm:$0xf]
      %v870 = vld [vmem:[#allocation2 + $0x70] sm:$0xf]
      %v871 = vld [vmem:[#allocation2 + $0x74] sm:$0x1]
      %v872 = vld [vmem:[#allocation2 + $0x78] sm:$0xf]
      %v873 = vld [vmem:[#allocation2 + $0x7c] sm:$0xf]
      %v874 = vld [vmem:[#allocation2 + $0x80] sm:$0x1]
      %v875 = vld [vmem:[#allocation2 + $0x84] sm:$0xf]
      %v876 = vld [vmem:[#allocation2 + $0x88] sm:$0xf]
      %v877 = vld [vmem:[#allocation2 + $0x8c] sm:$0x1]
      %v878 = vld [vmem:[#allocation2 + $0x90] sm:$0xf]
      %v879 = vld [vmem:[#allocation2 + $0x94] sm:$0xf]
      %v880 = vld [vmem:[#allocation2 + $0x98] sm:$0x1]
      %v881 = vld [vmem:[#allocation2 + $0x9c] sm:$0xf]
      %v882 = vld [vmem:[#allocation2 + $0xa0] sm:$0xf]
      %v883 = vld [vmem:[#allocation2 + $0xa4] sm:$0x1]
      %v884 = vld [vmem:[#allocation2 + $0xa8] sm:$0xf]
      %v885 = vld [vmem:[#allocation2 + $0xac] sm:$0xf]
      %v886 = vld [vmem:[#allocation2 + $0xb0] sm:$0x1]
      %v887 = vld [vmem:[#allocation2 + $0xb4] sm:$0xf]
      %v888 = vld [vmem:[#allocation2 + $0xb8] sm:$0xf]
      %v889 = vld [vmem:[#allocation2 + $0xbc] sm:$0x1]
      %v922 = vunpack.c.l.b16 %v842
      %v923 = vunpack.c.l.b16 %v843
      %v924 = vunpack.c.l.b16 %v845
      %v925 = vunpack.c.l.b16 %v846
      %v926 = vunpack.c.l.b16 %v848
      %v927 = vunpack.c.l.b16 %v849
      %v928 = vunpack.c.l.b16 %v851
      %v929 = vunpack.c.l.b16 %v852
      %v930 = vunpack.c.l.b16 %v854
      %v931 = vunpack.c.l.b16 %v855
      %v932 = vunpack.c.l.b16 %v857
      %v933 = vunpack.c.l.b16 %v858
      %v934 = vunpack.c.l.b16 %v860
      %v935 = vunpack.c.l.b16 %v861
      %v936 = vunpack.c.l.b16 %v863
      %v937 = vunpack.c.l.b16 %v864
      %v938 = vunpack.c.l.b16 %v866
      %v939 = vunpack.c.l.b16 %v867
      %v940 = vunpack.c.l.b16 %v869
      %v941 = vunpack.c.l.b16 %v870
      %v942 = vunpack.c.l.b16 %v872
      %v943 = vunpack.c.l.b16 %v873
      %v944 = vunpack.c.l.b16 %v875
      %v945 = vunpack.c.l.b16 %v876
      %v946 = vunpack.c.l.b16 %v878
      %v947 = vunpack.c.l.b16 %v879
      %v948 = vunpack.c.l.b16 %v881
      %v949 = vunpack.c.l.b16 %v882
      %v950 = vunpack.c.l.b16 %v884
      %v951 = vunpack.c.l.b16 %v885
      %v952 = vunpack.c.l.b16 %v887
      %v953 = vunpack.c.l.b16 %v888
      %v954 = vpack.c.b16 %v923, %v922
      %v955 = vpack.c.b16 %v925, %v924
      %v956 = vpack.c.b16 %v927, %v926
      %v957 = vpack.c.b16 %v929, %v928
      %v958 = vpack.c.b16 %v931, %v930
      %v959 = vpack.c.b16 %v933, %v932
      %v960 = vpack.c.b16 %v935, %v934
      %v961 = vpack.c.b16 %v937, %v936
      %v962 = vpack.c.b16 %v939, %v938
      %v963 = vpack.c.b16 %v941, %v940
      %v964 = vpack.c.b16 %v943, %v942
      %v965 = vpack.c.b16 %v945, %v944
      %v966 = vpack.c.b16 %v947, %v946
      %v967 = vpack.c.b16 %v949, %v948
      %v968 = vpack.c.b16 %v951, %v950
      %v969 = vpack.c.b16 %v953, %v952
      %v986 = vunpack.c.l.b16 %v844
      %v987 = vunpack.c.l.b16 %v847
      %v988 = vunpack.c.l.b16 %v850
      %v989 = vunpack.c.l.b16 %v853
      %v990 = vunpack.c.l.b16 %v856
      %v991 = vunpack.c.l.b16 %v859
      %v992 = vunpack.c.l.b16 %v862
      %v993 = vunpack.c.l.b16 %v865
      %v994 = vunpack.c.l.b16 %v868
      %v995 = vunpack.c.l.b16 %v871
      %v996 = vunpack.c.l.b16 %v874
      %v997 = vunpack.c.l.b16 %v877
      %v998 = vunpack.c.l.b16 %v880
      %v999 = vunpack.c.l.b16 %v883
      %v1000 = vunpack.c.l.b16 %v886
      %v1001 = vunpack.c.l.b16 %v889
      %v1002 = vpack.c.b16 %v986, %v986
      %v1003 = vpack.c.b16 %v987, %v987
      %v1004 = vpack.c.b16 %v988, %v988
      %v1005 = vpack.c.b16 %v989, %v989
      %v1006 = vpack.c.b16 %v990, %v990
      %v1007 = vpack.c.b16 %v991, %v991
      %v1008 = vpack.c.b16 %v992, %v992
      %v1009 = vpack.c.b16 %v993, %v993
      %v1010 = vpack.c.b16 %v994, %v994
      %v1011 = vpack.c.b16 %v995, %v995
      %v1012 = vpack.c.b16 %v996, %v996
      %v1013 = vpack.c.b16 %v997, %v997
      %v1014 = vpack.c.b16 %v998, %v998
      %v1015 = vpack.c.b16 %v999, %v999
      %v1016 = vpack.c.b16 %v1000, %v1000
      %v1017 = vpack.c.b16 %v1001, %v1001
      %vm1018 = vsmask.f32 7424
      %v1020 = vshrl.u32 %v954, 16
      %v1022 = vshll.u32 %v954, 16
      %v1024 = vrot.slane %v1022, 1
      %v1025 = vor.u32 %v1020, %v1024
      %v1027 = vshll.u32 %v1002, 16
      %v1029 = vrot.slane %v1027, 1
      %v1030 = vsel %vm1018, %v1025, %v1029
      %v1032 = vshrl.u32 %v955, 16
      %v1034 = vshll.u32 %v955, 16
      %v1036 = vrot.slane %v1034, 1
      %v1037 = vor.u32 %v1032, %v1036
      %v1039 = vshll.u32 %v1003, 16
      %v1041 = vrot.slane %v1039, 1
      %v1042 = vsel %vm1018, %v1037, %v1041
      %v1044 = vshrl.u32 %v956, 16
      %v1046 = vshll.u32 %v956, 16
      %v1048 = vrot.slane %v1046, 1
      %v1049 = vor.u32 %v1044, %v1048
      %v1051 = vshll.u32 %v1004, 16
      %v1053 = vrot.slane %v1051, 1
      %v1054 = vsel %vm1018, %v1049, %v1053
      %v1056 = vshrl.u32 %v957, 16
      %v1058 = vshll.u32 %v957, 16
      %v1060 = vrot.slane %v1058, 1
      %v1061 = vor.u32 %v1056, %v1060
      %v1063 = vshll.u32 %v1005, 16
      %v1065 = vrot.slane %v1063, 1
      %v1066 = vsel %vm1018, %v1061, %v1065
      %v1068 = vshrl.u32 %v958, 16
      %v1070 = vshll.u32 %v958, 16
      %v1072 = vrot.slane %v1070, 1
      %v1073 = vor.u32 %v1068, %v1072
      %v1075 = vshll.u32 %v1006, 16
      %v1077 = vrot.slane %v1075, 1
      %v1078 = vsel %vm1018, %v1073, %v1077
      %v1080 = vshrl.u32 %v959, 16
      %v1082 = vshll.u32 %v959, 16
      %v1084 = vrot.slane %v1082, 1
      %v1085 = vor.u32 %v1080, %v1084
      %v1087 = vshll.u32 %v1007, 16
      %v1089 = vrot.slane %v1087, 1
      %v1090 = vsel %vm1018, %v1085, %v1089
      %v1092 = vshrl.u32 %v960, 16
      %v1094 = vshll.u32 %v960, 16
      %v1096 = vrot.slane %v1094, 1
      %v1097 = vor.u32 %v1092, %v1096
      %v1099 = vshll.u32 %v1008, 16
      %v1101 = vrot.slane %v1099, 1
      %v1102 = vsel %vm1018, %v1097, %v1101
      %v1104 = vshrl.u32 %v961, 16
      %v1106 = vshll.u32 %v961, 16
      %v1108 = vrot.slane %v1106, 1
      %v1109 = vor.u32 %v1104, %v1108
      %v1111 = vshll.u32 %v1009, 16
      %v1113 = vrot.slane %v1111, 1
      %v1114 = vsel %vm1018, %v1109, %v1113
      %v1116 = vshrl.u32 %v962, 16
      %v1118 = vshll.u32 %v962, 16
      %v1120 = vrot.slane %v1118, 1
      %v1121 = vor.u32 %v1116, %v1120
      %v1123 = vshll.u32 %v1010, 16
      %v1125 = vrot.slane %v1123, 1
      %v1126 = vsel %vm1018, %v1121, %v1125
      %v1128 = vshrl.u32 %v963, 16
      %v1130 = vshll.u32 %v963, 16
      %v1132 = vrot.slane %v1130, 1
      %v1133 = vor.u32 %v1128, %v1132
      %v1135 = vshll.u32 %v1011, 16
      %v1137 = vrot.slane %v1135, 1
      %v1138 = vsel %vm1018, %v1133, %v1137
      %v1140 = vshrl.u32 %v964, 16
      %v1142 = vshll.u32 %v964, 16
      %v1144 = vrot.slane %v1142, 1
      %v1145 = vor.u32 %v1140, %v1144
      %v1147 = vshll.u32 %v1012, 16
      %v1149 = vrot.slane %v1147, 1
      %v1150 = vsel %vm1018, %v1145, %v1149
      %v1152 = vshrl.u32 %v965, 16
      %v1154 = vshll.u32 %v965, 16
      %v1156 = vrot.slane %v1154, 1
      %v1157 = vor.u32 %v1152, %v1156
      %v1159 = vshll.u32 %v1013, 16
      %v1161 = vrot.slane %v1159, 1
      %v1162 = vsel %vm1018, %v1157, %v1161
      %v1164 = vshrl.u32 %v966, 16
      %v1166 = vshll.u32 %v966, 16
      %v1168 = vrot.slane %v1166, 1
      %v1169 = vor.u32 %v1164, %v1168
      %v1171 = vshll.u32 %v1014, 16
      %v1173 = vrot.slane %v1171, 1
      %v1174 = vsel %vm1018, %v1169, %v1173
      %v1176 = vshrl.u32 %v967, 16
      %v1178 = vshll.u32 %v967, 16
      %v1180 = vrot.slane %v1178, 1
      %v1181 = vor.u32 %v1176, %v1180
      %v1183 = vshll.u32 %v1015, 16
      %v1185 = vrot.slane %v1183, 1
      %v1186 = vsel %vm1018, %v1181, %v1185
      %v1188 = vshrl.u32 %v968, 16
      %v1190 = vshll.u32 %v968, 16
      %v1192 = vrot.slane %v1190, 1
      %v1193 = vor.u32 %v1188, %v1192
      %v1195 = vshll.u32 %v1016, 16
      %v1197 = vrot.slane %v1195, 1
      %v1198 = vsel %vm1018, %v1193, %v1197
      %v1200 = vshrl.u32 %v969, 16
      %v1202 = vshll.u32 %v969, 16
      %v1204 = vrot.slane %v1202, 1
      %v1205 = vor.u32 %v1200, %v1204
      %v1207 = vshll.u32 %v1017, 16
      %v1209 = vrot.slane %v1207, 1
      %v1210 = vsel %vm1018, %v1205, %v1209
      %1211 = vrot.lane.b32.xlu0 %v1030, 4
      %v1212 = vpop.permute.xlu0 %1211
      %1213 = vrot.lane.b32.xlu0 %v1042, 4
      %v1214 = vpop.permute.xlu0 %1213
      %1215 = vrot.lane.b32.xlu0 %v1054, 4
      %v1216 = vpop.permute.xlu0 %1215
      %1217 = vrot.lane.b32.xlu0 %v1066, 4
      %v1218 = vpop.permute.xlu0 %1217
      %1219 = vrot.lane.b32.xlu0 %v1078, 4
      %v1220 = vpop.permute.xlu0 %1219
      %1221 = vrot.lane.b32.xlu0 %v1090, 4
      %v1222 = vpop.permute.xlu0 %1221
      %1223 = vrot.lane.b32.xlu0 %v1102, 4
      %v1224 = vpop.permute.xlu0 %1223
      %1225 = vrot.lane.b32.xlu0 %v1114, 4
      %v1226 = vpop.permute.xlu0 %1225
      %1227 = vrot.lane.b32.xlu0 %v1126, 4
      %v1228 = vpop.permute.xlu0 %1227
      %1229 = vrot.lane.b32.xlu0 %v1138, 4
      %v1230 = vpop.permute.xlu0 %1229
      %1231 = vrot.lane.b32.xlu0 %v1150, 4
      %v1232 = vpop.permute.xlu0 %1231
      %1233 = vrot.lane.b32.xlu0 %v1162, 4
      %v1234 = vpop.permute.xlu0 %1233
      %1235 = vrot.lane.b32.xlu0 %v1174, 4
      %v1236 = vpop.permute.xlu0 %1235
      %1237 = vrot.lane.b32.xlu0 %v1186, 4
      %v1238 = vpop.permute.xlu0 %1237
      %1239 = vrot.lane.b32.xlu0 %v1198, 4
      %v1240 = vpop.permute.xlu0 %1239
      %1241 = vrot.lane.b32.xlu0 %v1210, 4
      %v1242 = vpop.permute.xlu0 %1241
      %vm1243 = vcmask 1046528
      %v1244 = vrot.slane %v954, 1
      %v1245 = vrot.slane %v1002, 1
      %v1246 = vsel %vm1243, %v1244, %v1245
      %v1247 = vrot.slane %v955, 1
      %v1248 = vrot.slane %v1003, 1
      %v1249 = vsel %vm1243, %v1247, %v1248
      %v1250 = vrot.slane %v956, 1
      %v1251 = vrot.slane %v1004, 1
      %v1252 = vsel %vm1243, %v1250, %v1251
      %v1253 = vrot.slane %v957, 1
      %v1254 = vrot.slane %v1005, 1
      %v1255 = vsel %vm1243, %v1253, %v1254
      %v1256 = vrot.slane %v958, 1
      %v1257 = vrot.slane %v1006, 1
      %v1258 = vsel %vm1243, %v1256, %v1257
      %v1259 = vrot.slane %v959, 1
      %v1260 = vrot.slane %v1007, 1
      %v1261 = vsel %vm1243, %v1259, %v1260
      %v1262 = vrot.slane %v960, 1
      %v1263 = vrot.slane %v1008, 1
      %v1264 = vsel %vm1243, %v1262, %v1263
      %v1265 = vrot.slane %v961, 1
      %v1266 = vrot.slane %v1009, 1
      %v1267 = vsel %vm1243, %v1265, %v1266
      %v1268 = vrot.slane %v962, 1
      %v1269 = vrot.slane %v1010, 1
      %v1270 = vsel %vm1243, %v1268, %v1269
      %v1271 = vrot.slane %v963, 1
      %v1272 = vrot.slane %v1011, 1
      %v1273 = vsel %vm1243, %v1271, %v1272
      %v1274 = vrot.slane %v964, 1
      %v1275 = vrot.slane %v1012, 1
      %v1276 = vsel %vm1243, %v1274, %v1275
      %v1277 = vrot.slane %v965, 1
      %v1278 = vrot.slane %v1013, 1
      %v1279 = vsel %vm1243, %v1277, %v1278
      %v1280 = vrot.slane %v966, 1
      %v1281 = vrot.slane %v1014, 1
      %v1282 = vsel %vm1243, %v1280, %v1281
      %v1283 = vrot.slane %v967, 1
      %v1284 = vrot.slane %v1015, 1
      %v1285 = vsel %vm1243, %v1283, %v1284
      %v1286 = vrot.slane %v968, 1
      %v1287 = vrot.slane %v1016, 1
      %v1288 = vsel %vm1243, %v1286, %v1287
      %v1289 = vrot.slane %v969, 1
      %v1290 = vrot.slane %v1017, 1
      %v1291 = vsel %vm1243, %v1289, %v1290
      %1292 = vrot.lane.b32.xlu0 %v1246, 8
      %v1293 = vpop.permute.xlu0 %1292
      %1294 = vrot.lane.b32.xlu0 %v1249, 8
      %v1295 = vpop.permute.xlu0 %1294
      %1296 = vrot.lane.b32.xlu0 %v1252, 8
      %v1297 = vpop.permute.xlu0 %1296
      %1298 = vrot.lane.b32.xlu0 %v1255, 8
      %v1299 = vpop.permute.xlu0 %1298
      %1300 = vrot.lane.b32.xlu0 %v1258, 8
      %v1301 = vpop.permute.xlu0 %1300
      %1302 = vrot.lane.b32.xlu0 %v1261, 8
      %v1303 = vpop.permute.xlu0 %1302
      %1304 = vrot.lane.b32.xlu0 %v1264, 8
      %v1305 = vpop.permute.xlu0 %1304
      %1306 = vrot.lane.b32.xlu0 %v1267, 8
      %v1307 = vpop.permute.xlu0 %1306
      %1308 = vrot.lane.b32.xlu0 %v1270, 8
      %v1309 = vpop.permute.xlu0 %1308
      %1310 = vrot.lane.b32.xlu0 %v1273, 8
      %v1311 = vpop.permute.xlu0 %1310
      %1312 = vrot.lane.b32.xlu0 %v1276, 8
      %v1313 = vpop.permute.xlu0 %1312
      %1314 = vrot.lane.b32.xlu0 %v1279, 8
      %v1315 = vpop.permute.xlu0 %1314
      %1316 = vrot.lane.b32.xlu0 %v1282, 8
      %v1317 = vpop.permute.xlu0 %1316
      %1318 = vrot.lane.b32.xlu0 %v1285, 8
      %v1319 = vpop.permute.xlu0 %1318
      %1320 = vrot.lane.b32.xlu0 %v1288, 8
      %v1321 = vpop.permute.xlu0 %1320
      %1322 = vrot.lane.b32.xlu0 %v1291, 8
      %v1323 = vpop.permute.xlu0 %1322
      %vm1324 = vcmask 31744
      %v1326 = vsel %vm1324, %v954, %v1212
      %v1328 = vsel %vm1324, %v955, %v1214
      %v1330 = vsel %vm1324, %v956, %v1216
      %v1332 = vsel %vm1324, %v957, %v1218
      %v1334 = vsel %vm1324, %v958, %v1220
      %v1336 = vsel %vm1324, %v959, %v1222
      %v1338 = vsel %vm1324, %v960, %v1224
      %v1340 = vsel %vm1324, %v961, %v1226
      %v1342 = vsel %vm1324, %v962, %v1228
      %v1344 = vsel %vm1324, %v963, %v1230
      %v1346 = vsel %vm1324, %v964, %v1232
      %v1348 = vsel %vm1324, %v965, %v1234
      %v1350 = vsel %vm1324, %v966, %v1236
      %v1352 = vsel %vm1324, %v967, %v1238
      %v1354 = vsel %vm1324, %v968, %v1240
      %v1356 = vsel %vm1324, %v969, %v1242
      %v1358 = vsel %vm809, %v1326, %v1293
      %v1360 = vsel %vm809, %v1328, %v1295
      %v1362 = vsel %vm809, %v1330, %v1297
      %v1364 = vsel %vm809, %v1332, %v1299
      %v1366 = vsel %vm809, %v1334, %v1301
      %v1368 = vsel %vm809, %v1336, %v1303
      %v1370 = vsel %vm809, %v1338, %v1305
      %v1372 = vsel %vm809, %v1340, %v1307
      %v1374 = vsel %vm809, %v1342, %v1309
      %v1376 = vsel %vm809, %v1344, %v1311
      %v1378 = vsel %vm809, %v1346, %v1313
      %v1380 = vsel %vm809, %v1348, %v1315
      %v1382 = vsel %vm809, %v1350, %v1317
      %v1384 = vsel %vm809, %v1352, %v1319
      %v1386 = vsel %vm809, %v1354, %v1321
      %v1388 = vsel %vm809, %v1356, %v1323
      %v1389 = vld [vmem:[#allocation4] sm:$0xff]
      %v1390 = vld [vmem:[#allocation4 + $0x8] sm:$0xff]
      %v1391 = vld [vmem:[#allocation4 + $0x10] sm:$0xff]
      %v1392 = vld [vmem:[#allocation4 + $0x18] sm:$0xff]
      %v1393 = vld [vmem:[#allocation4 + $0x20] sm:$0xff]
      %v1394 = vld [vmem:[#allocation4 + $0x28] sm:$0xff]
      %v1395 = vld [vmem:[#allocation4 + $0x30] sm:$0xff]
      %v1396 = vld [vmem:[#allocation4 + $0x38] sm:$0xff]
      %v1397 = vld [vmem:[#allocation4 + $0x40] sm:$0xff]
      %v1398 = vld [vmem:[#allocation4 + $0x48] sm:$0xff]
      %v1399 = vld [vmem:[#allocation4 + $0x50] sm:$0xff]
      %v1400 = vld [vmem:[#allocation4 + $0x58] sm:$0xff]
      %v1401 = vld [vmem:[#allocation4 + $0x60] sm:$0xff]
      %v1402 = vld [vmem:[#allocation4 + $0x68] sm:$0xff]
      %v1403 = vld [vmem:[#allocation4 + $0x70] sm:$0xff]
      %v1404 = vld [vmem:[#allocation4 + $0x78] sm:$0xff]
      %v1405 = vld [vmem:[#allocation4 + $0x80] sm:$0xff]
      %v1406 = vld [vmem:[#allocation4 + $0x88] sm:$0xff]
      %v1407 = vld [vmem:[#allocation4 + $0x90] sm:$0xff]
      %v1408 = vld [vmem:[#allocation4 + $0x98] sm:$0xff]
      %v1409 = vld [vmem:[#allocation4 + $0xa0] sm:$0xff]
      %v1410 = vld [vmem:[#allocation4 + $0xa8] sm:$0xff]
      %v1411 = vld [vmem:[#allocation4 + $0xb0] sm:$0xff]
      %v1412 = vld [vmem:[#allocation4 + $0xb8] sm:$0xff]
      %v1413 = vld [vmem:[#allocation4 + $0xc0] sm:$0xff]
      %v1414 = vld [vmem:[#allocation4 + $0xc8] sm:$0xff]
      %v1415 = vld [vmem:[#allocation4 + $0xd0] sm:$0xff]
      %v1416 = vld [vmem:[#allocation4 + $0xd8] sm:$0xff]
      %v1417 = vld [vmem:[#allocation4 + $0xe0] sm:$0xff]
      %v1418 = vld [vmem:[#allocation4 + $0xe8] sm:$0xff]
      %v1419 = vld [vmem:[#allocation4 + $0xf0] sm:$0xff]
      %v1420 = vld [vmem:[#allocation4 + $0xf8] sm:$0xff]
      %v1421 = vld [vmem:[%s1] sm:$0xf]
      %v1422 = vld [vmem:[%s1 + $0x4] sm:$0x3]
      %v1425 = vunpack.c.l.b16 %v1421
      %v1426 = vunpack.c.l.b16 %v1422
      %v1427 = vpack.c.b16 %v1426, %v1425
      %vm1428 = vcmask 97280
      %v1429 = vsel %vm1428, %v1358, 0
      %v1431 = vsel %vm1428, %v1360, 0
      %v1433 = vsel %vm1428, %v1362, 0
      %v1435 = vsel %vm1428, %v1364, 0
      %v1437 = vsel %vm1428, %v1366, 0
      %v1439 = vsel %vm1428, %v1368, 0
      %v1441 = vsel %vm1428, %v1370, 0
      %v1443 = vsel %vm1428, %v1372, 0
      %v1445 = vsel %vm1428, %v1374, 0
      %v1447 = vsel %vm1428, %v1376, 0
      %v1449 = vsel %vm1428, %v1378, 0
      %v1451 = vsel %vm1428, %v1380, 0
      %v1453 = vsel %vm1428, %v1382, 0
      %v1455 = vsel %vm1428, %v1384, 0
      %v1457 = vsel %vm1428, %v1386, 0
      %v1459 = vsel %vm1428, %v1388, 0
      %vm1461 = vcmask 1045504
      %v1463 = vsel %vm1461, %v1427, 0
      %1465 = vmatpush.bf16.msra.mxu0 0
      %1466 = vmatpush.bf16.msra.mxu0 0
      %1467 = vmatpush.bf16.msra.mxu0 0
      %1468 = vmatpush.bf16.msra.mxu0 0
      %1469 = vmatpush.bf16.msra.mxu0 0
      %1470 = vmatpush.bf16.msra.mxu0 0
      %1471 = vmatpush.bf16.msra.mxu0 0
      %1472 = vmatpush.bf16.msra.mxu0 %v1463
      %1473 = vmatmul.bf16.gmra.mxu0 %v1429
      %v1474 = vpop.f32.mrf.mxu0
      %v1475 = vadd.f32 0.0, %v1474
      %v1476 = vpop.f32.mrf.mxu0
      %v1477 = vadd.f32 0.0, %v1476
      %1478 = vmatmul.bf16.gmra.mxu0 %v1431
      %v1479 = vpop.f32.mrf.mxu0
      %v1480 = vadd.f32 0.0, %v1479
      %v1481 = vpop.f32.mrf.mxu0
      %v1482 = vadd.f32 0.0, %v1481
      %1483 = vmatmul.bf16.gmra.mxu0 %v1433
      %v1484 = vpop.f32.mrf.mxu0
      %v1485 = vadd.f32 0.0, %v1484
      %v1486 = vpop.f32.mrf.mxu0
      %v1487 = vadd.f32 0.0, %v1486
      %1488 = vmatmul.bf16.gmra.mxu0 %v1435
      %v1489 = vpop.f32.mrf.mxu0
      %v1490 = vadd.f32 0.0, %v1489
      %v1491 = vpop.f32.mrf.mxu0
      %v1492 = vadd.f32 0.0, %v1491
      %1493 = vmatmul.bf16.gmra.mxu0 %v1437
      %v1494 = vpop.f32.mrf.mxu0
      %v1495 = vadd.f32 0.0, %v1494
      %v1496 = vpop.f32.mrf.mxu0
      %v1497 = vadd.f32 0.0, %v1496
      %1498 = vmatmul.bf16.gmra.mxu0 %v1439
      %v1499 = vpop.f32.mrf.mxu0
      %v1500 = vadd.f32 0.0, %v1499
      %v1501 = vpop.f32.mrf.mxu0
      %v1502 = vadd.f32 0.0, %v1501
      %1503 = vmatmul.bf16.gmra.mxu0 %v1441
      %v1504 = vpop.f32.mrf.mxu0
      %v1505 = vadd.f32 0.0, %v1504
      %v1506 = vpop.f32.mrf.mxu0
      %v1507 = vadd.f32 0.0, %v1506
      %1508 = vmatmul.bf16.gmra.mxu0 %v1443
      %v1509 = vpop.f32.mrf.mxu0
      %v1510 = vadd.f32 0.0, %v1509
      %v1511 = vpop.f32.mrf.mxu0
      %v1512 = vadd.f32 0.0, %v1511
      %1513 = vmatmul.bf16.gmra.mxu0 %v1445
      %v1514 = vpop.f32.mrf.mxu0
      %v1515 = vadd.f32 0.0, %v1514
      %v1516 = vpop.f32.mrf.mxu0
      %v1517 = vadd.f32 0.0, %v1516
      %1518 = vmatmul.bf16.gmra.mxu0 %v1447
      %v1519 = vpop.f32.mrf.mxu0
      %v1520 = vadd.f32 0.0, %v1519
      %v1521 = vpop.f32.mrf.mxu0
      %v1522 = vadd.f32 0.0, %v1521
      %1523 = vmatmul.bf16.gmra.mxu0 %v1449
      %v1524 = vpop.f32.mrf.mxu0
      %v1525 = vadd.f32 0.0, %v1524
      %v1526 = vpop.f32.mrf.mxu0
      %v1527 = vadd.f32 0.0, %v1526
      %1528 = vmatmul.bf16.gmra.mxu0 %v1451
      %v1529 = vpop.f32.mrf.mxu0
      %v1530 = vadd.f32 0.0, %v1529
      %v1531 = vpop.f32.mrf.mxu0
      %v1532 = vadd.f32 0.0, %v1531
      %1533 = vmatmul.bf16.gmra.mxu0 %v1453
      %v1534 = vpop.f32.mrf.mxu0
      %v1535 = vadd.f32 0.0, %v1534
      %v1536 = vpop.f32.mrf.mxu0
      %v1537 = vadd.f32 0.0, %v1536
      %1538 = vmatmul.bf16.gmra.mxu0 %v1455
      %v1539 = vpop.f32.mrf.mxu0
      %v1540 = vadd.f32 0.0, %v1539
      %v1541 = vpop.f32.mrf.mxu0
      %v1542 = vadd.f32 0.0, %v1541
      %1543 = vmatmul.bf16.gmra.mxu0 %v1457
      %v1544 = vpop.f32.mrf.mxu0
      %v1545 = vadd.f32 0.0, %v1544
      %v1546 = vpop.f32.mrf.mxu0
      %v1547 = vadd.f32 0.0, %v1546
      %1548 = vmatmul.bf16.gmra.mxu0 %v1459
      %v1549 = vpop.f32.mrf.mxu0
      %v1550 = vadd.f32 0.0, %v1549
      %v1551 = vpop.f32.mrf.mxu0
      %v1552 = vadd.f32 0.0, %v1551
      %1553 = vdwg.mxu0
      %v1554 = vadd.f32 %v1389, %v1475
      %v1555 = vadd.f32 %v1390, %v1477
      %v1556 = vadd.f32 %v1391, %v1480
      %v1557 = vadd.f32 %v1392, %v1482
      %v1558 = vadd.f32 %v1393, %v1485
      %v1559 = vadd.f32 %v1394, %v1487
      %v1560 = vadd.f32 %v1395, %v1490
      %v1561 = vadd.f32 %v1396, %v1492
      %v1562 = vadd.f32 %v1397, %v1495
      %v1563 = vadd.f32 %v1398, %v1497
      %v1564 = vadd.f32 %v1399, %v1500
      %v1565 = vadd.f32 %v1400, %v1502
      %v1566 = vadd.f32 %v1401, %v1505
      %v1567 = vadd.f32 %v1402, %v1507
      %v1568 = vadd.f32 %v1403, %v1510
      %v1569 = vadd.f32 %v1404, %v1512
      %v1570 = vadd.f32 %v1405, %v1515
      %v1571 = vadd.f32 %v1406, %v1517
      %v1572 = vadd.f32 %v1407, %v1520
      %v1573 = vadd.f32 %v1408, %v1522
      %v1574 = vadd.f32 %v1409, %v1525
      %v1575 = vadd.f32 %v1410, %v1527
      %v1576 = vadd.f32 %v1411, %v1530
      %v1577 = vadd.f32 %v1412, %v1532
      %v1578 = vadd.f32 %v1413, %v1535
      %v1579 = vadd.f32 %v1414, %v1537
      %v1580 = vadd.f32 %v1415, %v1540
      %v1581 = vadd.f32 %v1416, %v1542
      %v1582 = vadd.f32 %v1417, %v1545
      %v1583 = vadd.f32 %v1418, %v1547
      %v1584 = vadd.f32 %v1419, %v1550
      %v1585 = vadd.f32 %v1420, %v1552
      %1586 = vst.msk [vmem:[#allocation4] sm:$0xff] %vm809, %v1554
      %1587 = vst.msk [vmem:[#allocation4 + $0x8] sm:$0xff] %vm809, %v1555
      %1588 = vst.msk [vmem:[#allocation4 + $0x10] sm:$0xff] %vm809, %v1556
      %1589 = vst.msk [vmem:[#allocation4 + $0x18] sm:$0xff] %vm809, %v1557
      %1590 = vst.msk [vmem:[#allocation4 + $0x20] sm:$0xff] %vm809, %v1558
      %1591 = vst.msk [vmem:[#allocation4 + $0x28] sm:$0xff] %vm809, %v1559
      %1592 = vst.msk [vmem:[#allocation4 + $0x30] sm:$0xff] %vm809, %v1560
      %1593 = vst.msk [vmem:[#allocation4 + $0x38] sm:$0xff] %vm809, %v1561
      %1594 = vst.msk [vmem:[#allocation4 + $0x40] sm:$0xff] %vm809, %v1562
      %1595 = vst.msk [vmem:[#allocation4 + $0x48] sm:$0xff] %vm809, %v1563
      %1596 = vst.msk [vmem:[#allocation4 + $0x50] sm:$0xff] %vm809, %v1564
      %1597 = vst.msk [vmem:[#allocation4 + $0x58] sm:$0xff] %vm809, %v1565
      %1598 = vst.msk [vmem:[#allocation4 + $0x60] sm:$0xff] %vm809, %v1566
      %1599 = vst.msk [vmem:[#allocation4 + $0x68] sm:$0xff] %vm809, %v1567
      %1600 = vst.msk [vmem:[#allocation4 + $0x70] sm:$0xff] %vm809, %v1568
      %1601 = vst.msk [vmem:[#allocation4 + $0x78] sm:$0xff] %vm809, %v1569
      %1602 = vst.msk [vmem:[#allocation4 + $0x80] sm:$0xff] %vm809, %v1570
      %1603 = vst.msk [vmem:[#allocation4 + $0x88] sm:$0xff] %vm809, %v1571
      %1604 = vst.msk [vmem:[#allocation4 + $0x90] sm:$0xff] %vm809, %v1572
      %1605 = vst.msk [vmem:[#allocation4 + $0x98] sm:$0xff] %vm809, %v1573
      %1606 = vst.msk [vmem:[#allocation4 + $0xa0] sm:$0xff] %vm809, %v1574
      %1607 = vst.msk [vmem:[#allocation4 + $0xa8] sm:$0xff] %vm809, %v1575
      %1608 = vst.msk [vmem:[#allocation4 + $0xb0] sm:$0xff] %vm809, %v1576
      %1609 = vst.msk [vmem:[#allocation4 + $0xb8] sm:$0xff] %vm809, %v1577
      %1610 = vst.msk [vmem:[#allocation4 + $0xc0] sm:$0xff] %vm809, %v1578
      %1611 = vst.msk [vmem:[#allocation4 + $0xc8] sm:$0xff] %vm809, %v1579
      %1612 = vst.msk [vmem:[#allocation4 + $0xd0] sm:$0xff] %vm809, %v1580
      %1613 = vst.msk [vmem:[#allocation4 + $0xd8] sm:$0xff] %vm809, %v1581
      %1614 = vst.msk [vmem:[#allocation4 + $0xe0] sm:$0xff] %vm809, %v1582
      %1615 = vst.msk [vmem:[#allocation4 + $0xe8] sm:$0xff] %vm809, %v1583
      %1616 = vst.msk [vmem:[#allocation4 + $0xf0] sm:$0xff] %vm809, %v1584
      %1617 = vst.msk [vmem:[#allocation4 + $0xf8] sm:$0xff] %vm809, %v1585
      %v1618 = vld [vmem:[%s747] sm:$0xf]
      %v1619 = vld [vmem:[%s747 + $0x4] sm:$0xf]
      %v1620 = vld [vmem:[%s747 + $0x8] sm:$0x1]
      %v1621 = vld [vmem:[%s747 + $0xc] sm:$0xf]
      %v1622 = vld [vmem:[%s747 + $0x10] sm:$0xf]
      %v1623 = vld [vmem:[%s747 + $0x14] sm:$0x1]
      %v1624 = vld [vmem:[%s747 + $0x18] sm:$0xf]
      %v1625 = vld [vmem:[%s747 + $0x1c] sm:$0xf]
      %v1626 = vld [vmem:[%s747 + $0x20] sm:$0x1]
      %v1627 = vld [vmem:[%s747 + $0x24] sm:$0xf]
      %v1628 = vld [vmem:[%s747 + $0x28] sm:$0xf]
      %v1629 = vld [vmem:[%s747 + $0x2c] sm:$0x1]
      %v1630 = vld [vmem:[%s747 + $0x30] sm:$0xf]
      %v1631 = vld [vmem:[%s747 + $0x34] sm:$0xf]
      %v1632 = vld [vmem:[%s747 + $0x38] sm:$0x1]
      %v1633 = vld [vmem:[%s747 + $0x3c] sm:$0xf]
      %v1634 = vld [vmem:[%s747 + $0x40] sm:$0xf]
      %v1635 = vld [vmem:[%s747 + $0x44] sm:$0x1]
      %v1636 = vld [vmem:[%s747 + $0x48] sm:$0xf]
      %v1637 = vld [vmem:[%s747 + $0x4c] sm:$0xf]
      %v1638 = vld [vmem:[%s747 + $0x50] sm:$0x1]
      %v1639 = vld [vmem:[%s747 + $0x54] sm:$0xf]
      %v1640 = vld [vmem:[%s747 + $0x58] sm:$0xf]
      %v1641 = vld [vmem:[%s747 + $0x5c] sm:$0x1]
      %v1642 = vld [vmem:[%s747 + $0x60] sm:$0xf]
      %v1643 = vld [vmem:[%s747 + $0x64] sm:$0xf]
      %v1644 = vld [vmem:[%s747 + $0x68] sm:$0x1]
      %v1645 = vld [vmem:[%s747 + $0x6c] sm:$0xf]
      %v1646 = vld [vmem:[%s747 + $0x70] sm:$0xf]
      %v1647 = vld [vmem:[%s747 + $0x74] sm:$0x1]
      %v1648 = vld [vmem:[%s747 + $0x78] sm:$0xf]
      %v1649 = vld [vmem:[%s747 + $0x7c] sm:$0xf]
      %v1650 = vld [vmem:[%s747 + $0x80] sm:$0x1]
      %v1651 = vld [vmem:[%s747 + $0x84] sm:$0xf]
      %v1652 = vld [vmem:[%s747 + $0x88] sm:$0xf]
      %v1653 = vld [vmem:[%s747 + $0x8c] sm:$0x1]
      %v1654 = vld [vmem:[%s747 + $0x90] sm:$0xf]
      %v1655 = vld [vmem:[%s747 + $0x94] sm:$0xf]
      %v1656 = vld [vmem:[%s747 + $0x98] sm:$0x1]
      %v1657 = vld [vmem:[%s747 + $0x9c] sm:$0xf]
      %v1658 = vld [vmem:[%s747 + $0xa0] sm:$0xf]
      %v1659 = vld [vmem:[%s747 + $0xa4] sm:$0x1]
      %v1660 = vld [vmem:[%s747 + $0xa8] sm:$0xf]
      %v1661 = vld [vmem:[%s747 + $0xac] sm:$0xf]
      %v1662 = vld [vmem:[%s747 + $0xb0] sm:$0x1]
      %v1663 = vld [vmem:[%s747 + $0xb4] sm:$0xf]
      %v1664 = vld [vmem:[%s747 + $0xb8] sm:$0xf]
      %v1665 = vld [vmem:[%s747 + $0xbc] sm:$0x1]
      %v1698 = vunpack.c.l.b16 %v1618
      %v1699 = vunpack.c.l.b16 %v1619
      %v1700 = vunpack.c.l.b16 %v1621
      %v1701 = vunpack.c.l.b16 %v1622
      %v1702 = vunpack.c.l.b16 %v1624
      %v1703 = vunpack.c.l.b16 %v1625
      %v1704 = vunpack.c.l.b16 %v1627
      %v1705 = vunpack.c.l.b16 %v1628
      %v1706 = vunpack.c.l.b16 %v1630
      %v1707 = vunpack.c.l.b16 %v1631
      %v1708 = vunpack.c.l.b16 %v1633
      %v1709 = vunpack.c.l.b16 %v1634
      %v1710 = vunpack.c.l.b16 %v1636
      %v1711 = vunpack.c.l.b16 %v1637
      %v1712 = vunpack.c.l.b16 %v1639
      %v1713 = vunpack.c.l.b16 %v1640
      %v1714 = vunpack.c.l.b16 %v1642
      %v1715 = vunpack.c.l.b16 %v1643
      %v1716 = vunpack.c.l.b16 %v1645
      %v1717 = vunpack.c.l.b16 %v1646
      %v1718 = vunpack.c.l.b16 %v1648
      %v1719 = vunpack.c.l.b16 %v1649
      %v1720 = vunpack.c.l.b16 %v1651
      %v1721 = vunpack.c.l.b16 %v1652
      %v1722 = vunpack.c.l.b16 %v1654
      %v1723 = vunpack.c.l.b16 %v1655
      %v1724 = vunpack.c.l.b16 %v1657
      %v1725 = vunpack.c.l.b16 %v1658
      %v1726 = vunpack.c.l.b16 %v1660
      %v1727 = vunpack.c.l.b16 %v1661
      %v1728 = vunpack.c.l.b16 %v1663
      %v1729 = vunpack.c.l.b16 %v1664
      %v1730 = vpack.c.b16 %v1699, %v1698
      %v1731 = vpack.c.b16 %v1701, %v1700
      %v1732 = vpack.c.b16 %v1703, %v1702
      %v1733 = vpack.c.b16 %v1705, %v1704
      %v1734 = vpack.c.b16 %v1707, %v1706
      %v1735 = vpack.c.b16 %v1709, %v1708
      %v1736 = vpack.c.b16 %v1711, %v1710
      %v1737 = vpack.c.b16 %v1713, %v1712
      %v1738 = vpack.c.b16 %v1715, %v1714
      %v1739 = vpack.c.b16 %v1717, %v1716
      %v1740 = vpack.c.b16 %v1719, %v1718
      %v1741 = vpack.c.b16 %v1721, %v1720
      %v1742 = vpack.c.b16 %v1723, %v1722
      %v1743 = vpack.c.b16 %v1725, %v1724
      %v1744 = vpack.c.b16 %v1727, %v1726
      %v1745 = vpack.c.b16 %v1729, %v1728
      %v1762 = vunpack.c.l.b16 %v1620
      %v1763 = vunpack.c.l.b16 %v1623
      %v1764 = vunpack.c.l.b16 %v1626
      %v1765 = vunpack.c.l.b16 %v1629
      %v1766 = vunpack.c.l.b16 %v1632
      %v1767 = vunpack.c.l.b16 %v1635
      %v1768 = vunpack.c.l.b16 %v1638
      %v1769 = vunpack.c.l.b16 %v1641
      %v1770 = vunpack.c.l.b16 %v1644
      %v1771 = vunpack.c.l.b16 %v1647
      %v1772 = vunpack.c.l.b16 %v1650
      %v1773 = vunpack.c.l.b16 %v1653
      %v1774 = vunpack.c.l.b16 %v1656
      %v1775 = vunpack.c.l.b16 %v1659
      %v1776 = vunpack.c.l.b16 %v1662
      %v1777 = vunpack.c.l.b16 %v1665
      %v1778 = vpack.c.b16 %v1762, %v1762
      %v1779 = vpack.c.b16 %v1763, %v1763
      %v1780 = vpack.c.b16 %v1764, %v1764
      %v1781 = vpack.c.b16 %v1765, %v1765
      %v1782 = vpack.c.b16 %v1766, %v1766
      %v1783 = vpack.c.b16 %v1767, %v1767
      %v1784 = vpack.c.b16 %v1768, %v1768
      %v1785 = vpack.c.b16 %v1769, %v1769
      %v1786 = vpack.c.b16 %v1770, %v1770
      %v1787 = vpack.c.b16 %v1771, %v1771
      %v1788 = vpack.c.b16 %v1772, %v1772
      %v1789 = vpack.c.b16 %v1773, %v1773
      %v1790 = vpack.c.b16 %v1774, %v1774
      %v1791 = vpack.c.b16 %v1775, %v1775
      %v1792 = vpack.c.b16 %v1776, %v1776
      %v1793 = vpack.c.b16 %v1777, %v1777
      %v1795 = vshrl.u32 %v1730, 16
      %v1797 = vshll.u32 %v1730, 16
      %v1799 = vrot.slane %v1797, 1
      %v1800 = vor.u32 %v1795, %v1799
      %v1802 = vshll.u32 %v1778, 16
      %v1804 = vrot.slane %v1802, 1
      %v1805 = vsel %vm1018, %v1800, %v1804
      %v1807 = vshrl.u32 %v1731, 16
      %v1809 = vshll.u32 %v1731, 16
      %v1811 = vrot.slane %v1809, 1
      %v1812 = vor.u32 %v1807, %v1811
      %v1814 = vshll.u32 %v1779, 16
      %v1816 = vrot.slane %v1814, 1
      %v1817 = vsel %vm1018, %v1812, %v1816
      %v1819 = vshrl.u32 %v1732, 16
      %v1821 = vshll.u32 %v1732, 16
      %v1823 = vrot.slane %v1821, 1
      %v1824 = vor.u32 %v1819, %v1823
      %v1826 = vshll.u32 %v1780, 16
      %v1828 = vrot.slane %v1826, 1
      %v1829 = vsel %vm1018, %v1824, %v1828
      %v1831 = vshrl.u32 %v1733, 16
      %v1833 = vshll.u32 %v1733, 16
      %v1835 = vrot.slane %v1833, 1
      %v1836 = vor.u32 %v1831, %v1835
      %v1838 = vshll.u32 %v1781, 16
      %v1840 = vrot.slane %v1838, 1
      %v1841 = vsel %vm1018, %v1836, %v1840
      %v1843 = vshrl.u32 %v1734, 16
      %v1845 = vshll.u32 %v1734, 16
      %v1847 = vrot.slane %v1845, 1
      %v1848 = vor.u32 %v1843, %v1847
      %v1850 = vshll.u32 %v1782, 16
      %v1852 = vrot.slane %v1850, 1
      %v1853 = vsel %vm1018, %v1848, %v1852
      %v1855 = vshrl.u32 %v1735, 16
      %v1857 = vshll.u32 %v1735, 16
      %v1859 = vrot.slane %v1857, 1
      %v1860 = vor.u32 %v1855, %v1859
      %v1862 = vshll.u32 %v1783, 16
      %v1864 = vrot.slane %v1862, 1
      %v1865 = vsel %vm1018, %v1860, %v1864
      %v1867 = vshrl.u32 %v1736, 16
      %v1869 = vshll.u32 %v1736, 16
      %v1871 = vrot.slane %v1869, 1
      %v1872 = vor.u32 %v1867, %v1871
      %v1874 = vshll.u32 %v1784, 16
      %v1876 = vrot.slane %v1874, 1
      %v1877 = vsel %vm1018, %v1872, %v1876
      %v1879 = vshrl.u32 %v1737, 16
      %v1881 = vshll.u32 %v1737, 16
      %v1883 = vrot.slane %v1881, 1
      %v1884 = vor.u32 %v1879, %v1883
      %v1886 = vshll.u32 %v1785, 16
      %v1888 = vrot.slane %v1886, 1
      %v1889 = vsel %vm1018, %v1884, %v1888
      %v1891 = vshrl.u32 %v1738, 16
      %v1893 = vshll.u32 %v1738, 16
      %v1895 = vrot.slane %v1893, 1
      %v1896 = vor.u32 %v1891, %v1895
      %v1898 = vshll.u32 %v1786, 16
      %v1900 = vrot.slane %v1898, 1
      %v1901 = vsel %vm1018, %v1896, %v1900
      %v1903 = vshrl.u32 %v1739, 16
      %v1905 = vshll.u32 %v1739, 16
      %v1907 = vrot.slane %v1905, 1
      %v1908 = vor.u32 %v1903, %v1907
      %v1910 = vshll.u32 %v1787, 16
      %v1912 = vrot.slane %v1910, 1
      %v1913 = vsel %vm1018, %v1908, %v1912
      %v1915 = vshrl.u32 %v1740, 16
      %v1917 = vshll.u32 %v1740, 16
      %v1919 = vrot.slane %v1917, 1
      %v1920 = vor.u32 %v1915, %v1919
      %v1922 = vshll.u32 %v1788, 16
      %v1924 = vrot.slane %v1922, 1
      %v1925 = vsel %vm1018, %v1920, %v1924
      %v1927 = vshrl.u32 %v1741, 16
      %v1929 = vshll.u32 %v1741, 16
      %v1931 = vrot.slane %v1929, 1
      %v1932 = vor.u32 %v1927, %v1931
      %v1934 = vshll.u32 %v1789, 16
      %v1936 = vrot.slane %v1934, 1
      %v1937 = vsel %vm1018, %v1932, %v1936
      %v1939 = vshrl.u32 %v1742, 16
      %v1941 = vshll.u32 %v1742, 16
      %v1943 = vrot.slane %v1941, 1
      %v1944 = vor.u32 %v1939, %v1943
      %v1946 = vshll.u32 %v1790, 16
      %v1948 = vrot.slane %v1946, 1
      %v1949 = vsel %vm1018, %v1944, %v1948
      %v1951 = vshrl.u32 %v1743, 16
      %v1953 = vshll.u32 %v1743, 16
      %v1955 = vrot.slane %v1953, 1
      %v1956 = vor.u32 %v1951, %v1955
      %v1958 = vshll.u32 %v1791, 16
      %v1960 = vrot.slane %v1958, 1
      %v1961 = vsel %vm1018, %v1956, %v1960
      %v1963 = vshrl.u32 %v1744, 16
      %v1965 = vshll.u32 %v1744, 16
      %v1967 = vrot.slane %v1965, 1
      %v1968 = vor.u32 %v1963, %v1967
      %v1970 = vshll.u32 %v1792, 16
      %v1972 = vrot.slane %v1970, 1
      %v1973 = vsel %vm1018, %v1968, %v1972
      %v1975 = vshrl.u32 %v1745, 16
      %v1977 = vshll.u32 %v1745, 16
      %v1979 = vrot.slane %v1977, 1
      %v1980 = vor.u32 %v1975, %v1979
      %v1982 = vshll.u32 %v1793, 16
      %v1984 = vrot.slane %v1982, 1
      %v1985 = vsel %vm1018, %v1980, %v1984
      %1986 = vrot.lane.b32.xlu0 %v1805, 4
      %v1987 = vpop.permute.xlu0 %1986
      %1988 = vrot.lane.b32.xlu0 %v1817, 4
      %v1989 = vpop.permute.xlu0 %1988
      %1990 = vrot.lane.b32.xlu0 %v1829, 4
      %v1991 = vpop.permute.xlu0 %1990
      %1992 = vrot.lane.b32.xlu0 %v1841, 4
      %v1993 = vpop.permute.xlu0 %1992
      %1994 = vrot.lane.b32.xlu0 %v1853, 4
      %v1995 = vpop.permute.xlu0 %1994
      %1996 = vrot.lane.b32.xlu0 %v1865, 4
      %v1997 = vpop.permute.xlu0 %1996
      %1998 = vrot.lane.b32.xlu0 %v1877, 4
      %v1999 = vpop.permute.xlu0 %1998
      %2000 = vrot.lane.b32.xlu0 %v1889, 4
      %v2001 = vpop.permute.xlu0 %2000
      %2002 = vrot.lane.b32.xlu0 %v1901, 4
      %v2003 = vpop.permute.xlu0 %2002
      %2004 = vrot.lane.b32.xlu0 %v1913, 4
      %v2005 = vpop.permute.xlu0 %2004
      %2006 = vrot.lane.b32.xlu0 %v1925, 4
      %v2007 = vpop.permute.xlu0 %2006
      %2008 = vrot.lane.b32.xlu0 %v1937, 4
      %v2009 = vpop.permute.xlu0 %2008
      %2010 = vrot.lane.b32.xlu0 %v1949, 4
      %v2011 = vpop.permute.xlu0 %2010
      %2012 = vrot.lane.b32.xlu0 %v1961, 4
      %v2013 = vpop.permute.xlu0 %2012
      %2014 = vrot.lane.b32.xlu0 %v1973, 4
      %v2015 = vpop.permute.xlu0 %2014
      %2016 = vrot.lane.b32.xlu0 %v1985, 4
      %v2017 = vpop.permute.xlu0 %2016
      %v2018 = vrot.slane %v1730, 1
      %v2019 = vrot.slane %v1778, 1
      %v2020 = vsel %vm1243, %v2018, %v2019
      %v2021 = vrot.slane %v1731, 1
      %v2022 = vrot.slane %v1779, 1
      %v2023 = vsel %vm1243, %v2021, %v2022
      %v2024 = vrot.slane %v1732, 1
      %v2025 = vrot.slane %v1780, 1
      %v2026 = vsel %vm1243, %v2024, %v2025
      %v2027 = vrot.slane %v1733, 1
      %v2028 = vrot.slane %v1781, 1
      %v2029 = vsel %vm1243, %v2027, %v2028
      %v2030 = vrot.slane %v1734, 1
      %v2031 = vrot.slane %v1782, 1
      %v2032 = vsel %vm1243, %v2030, %v2031
      %v2033 = vrot.slane %v1735, 1
      %v2034 = vrot.slane %v1783, 1
      %v2035 = vsel %vm1243, %v2033, %v2034
      %v2036 = vrot.slane %v1736, 1
      %v2037 = vrot.slane %v1784, 1
      %v2038 = vsel %vm1243, %v2036, %v2037
      %v2039 = vrot.slane %v1737, 1
      %v2040 = vrot.slane %v1785, 1
      %v2041 = vsel %vm1243, %v2039, %v2040
      %v2042 = vrot.slane %v1738, 1
      %v2043 = vrot.slane %v1786, 1
      %v2044 = vsel %vm1243, %v2042, %v2043
      %v2045 = vrot.slane %v1739, 1
      %v2046 = vrot.slane %v1787, 1
      %v2047 = vsel %vm1243, %v2045, %v2046
      %v2048 = vrot.slane %v1740, 1
      %v2049 = vrot.slane %v1788, 1
      %v2050 = vsel %vm1243, %v2048, %v2049
      %v2051 = vrot.slane %v1741, 1
      %v2052 = vrot.slane %v1789, 1
      %v2053 = vsel %vm1243, %v2051, %v2052
      %v2054 = vrot.slane %v1742, 1
      %v2055 = vrot.slane %v1790, 1
      %v2056 = vsel %vm1243, %v2054, %v2055
      %v2057 = vrot.slane %v1743, 1
      %v2058 = vrot.slane %v1791, 1
      %v2059 = vsel %vm1243, %v2057, %v2058
      %v2060 = vrot.slane %v1744, 1
      %v2061 = vrot.slane %v1792, 1
      %v2062 = vsel %vm1243, %v2060, %v2061
      %v2063 = vrot.slane %v1745, 1
      %v2064 = vrot.slane %v1793, 1
      %v2065 = vsel %vm1243, %v2063, %v2064
      %2066 = vrot.lane.b32.xlu0 %v2020, 8
      %v2067 = vpop.permute.xlu0 %2066
      %2068 = vrot.lane.b32.xlu0 %v2023, 8
      %v2069 = vpop.permute.xlu0 %2068
      %2070 = vrot.lane.b32.xlu0 %v2026, 8
      %v2071 = vpop.permute.xlu0 %2070
      %2072 = vrot.lane.b32.xlu0 %v2029, 8
      %v2073 = vpop.permute.xlu0 %2072
      %2074 = vrot.lane.b32.xlu0 %v2032, 8
      %v2075 = vpop.permute.xlu0 %2074
      %2076 = vrot.lane.b32.xlu0 %v2035, 8
      %v2077 = vpop.permute.xlu0 %2076
      %2078 = vrot.lane.b32.xlu0 %v2038, 8
      %v2079 = vpop.permute.xlu0 %2078
      %2080 = vrot.lane.b32.xlu0 %v2041, 8
      %v2081 = vpop.permute.xlu0 %2080
      %2082 = vrot.lane.b32.xlu0 %v2044, 8
      %v2083 = vpop.permute.xlu0 %2082
      %2084 = vrot.lane.b32.xlu0 %v2047, 8
      %v2085 = vpop.permute.xlu0 %2084
      %2086 = vrot.lane.b32.xlu0 %v2050, 8
      %v2087 = vpop.permute.xlu0 %2086
      %2088 = vrot.lane.b32.xlu0 %v2053, 8
      %v2089 = vpop.permute.xlu0 %2088
      %2090 = vrot.lane.b32.xlu0 %v2056, 8
      %v2091 = vpop.permute.xlu0 %2090
      %2092 = vrot.lane.b32.xlu0 %v2059, 8
      %v2093 = vpop.permute.xlu0 %2092
      %2094 = vrot.lane.b32.xlu0 %v2062, 8
      %v2095 = vpop.permute.xlu0 %2094
      %2096 = vrot.lane.b32.xlu0 %v2065, 8
      %v2097 = vpop.permute.xlu0 %2096
      %v2099 = vsel %vm1324, %v1730, %v1987
      %v2101 = vsel %vm1324, %v1731, %v1989
      %v2103 = vsel %vm1324, %v1732, %v1991
      %v2105 = vsel %vm1324, %v1733, %v1993
      %v2107 = vsel %vm1324, %v1734, %v1995
      %v2109 = vsel %vm1324, %v1735, %v1997
      %v2111 = vsel %vm1324, %v1736, %v1999
      %v2113 = vsel %vm1324, %v1737, %v2001
      %v2115 = vsel %vm1324, %v1738, %v2003
      %v2117 = vsel %vm1324, %v1739, %v2005
      %v2119 = vsel %vm1324, %v1740, %v2007
      %v2121 = vsel %vm1324, %v1741, %v2009
      %v2123 = vsel %vm1324, %v1742, %v2011
      %v2125 = vsel %vm1324, %v1743, %v2013
      %v2127 = vsel %vm1324, %v1744, %v2015
      %v2129 = vsel %vm1324, %v1745, %v2017
      %v2131 = vsel %vm809, %v2099, %v2067
      %v2133 = vsel %vm809, %v2101, %v2069
      %v2135 = vsel %vm809, %v2103, %v2071
      %v2137 = vsel %vm809, %v2105, %v2073
      %v2139 = vsel %vm809, %v2107, %v2075
      %v2141 = vsel %vm809, %v2109, %v2077
      %v2143 = vsel %vm809, %v2111, %v2079
      %v2145 = vsel %vm809, %v2113, %v2081
      %v2147 = vsel %vm809, %v2115, %v2083
      %v2149 = vsel %vm809, %v2117, %v2085
      %v2151 = vsel %vm809, %v2119, %v2087
      %v2153 = vsel %vm809, %v2121, %v2089
      %v2155 = vsel %vm809, %v2123, %v2091
      %v2157 = vsel %vm809, %v2125, %v2093
      %v2159 = vsel %vm809, %v2127, %v2095
      %v2161 = vsel %vm809, %v2129, %v2097
      %v2162 = vld [vmem:[#allocation4] sm:$0xff]
      %v2163 = vld [vmem:[#allocation4 + $0x8] sm:$0xff]
      %v2164 = vld [vmem:[#allocation4 + $0x10] sm:$0xff]
      %v2165 = vld [vmem:[#allocation4 + $0x18] sm:$0xff]
      %v2166 = vld [vmem:[#allocation4 + $0x20] sm:$0xff]
      %v2167 = vld [vmem:[#allocation4 + $0x28] sm:$0xff]
      %v2168 = vld [vmem:[#allocation4 + $0x30] sm:$0xff]
      %v2169 = vld [vmem:[#allocation4 + $0x38] sm:$0xff]
      %v2170 = vld [vmem:[#allocation4 + $0x40] sm:$0xff]
      %v2171 = vld [vmem:[#allocation4 + $0x48] sm:$0xff]
      %v2172 = vld [vmem:[#allocation4 + $0x50] sm:$0xff]
      %v2173 = vld [vmem:[#allocation4 + $0x58] sm:$0xff]
      %v2174 = vld [vmem:[#allocation4 + $0x60] sm:$0xff]
      %v2175 = vld [vmem:[#allocation4 + $0x68] sm:$0xff]
      %v2176 = vld [vmem:[#allocation4 + $0x70] sm:$0xff]
      %v2177 = vld [vmem:[#allocation4 + $0x78] sm:$0xff]
      %v2178 = vld [vmem:[#allocation4 + $0x80] sm:$0xff]
      %v2179 = vld [vmem:[#allocation4 + $0x88] sm:$0xff]
      %v2180 = vld [vmem:[#allocation4 + $0x90] sm:$0xff]
      %v2181 = vld [vmem:[#allocation4 + $0x98] sm:$0xff]
      %v2182 = vld [vmem:[#allocation4 + $0xa0] sm:$0xff]
      %v2183 = vld [vmem:[#allocation4 + $0xa8] sm:$0xff]
      %v2184 = vld [vmem:[#allocation4 + $0xb0] sm:$0xff]
      %v2185 = vld [vmem:[#allocation4 + $0xb8] sm:$0xff]
      %v2186 = vld [vmem:[#allocation4 + $0xc0] sm:$0xff]
      %v2187 = vld [vmem:[#allocation4 + $0xc8] sm:$0xff]
      %v2188 = vld [vmem:[#allocation4 + $0xd0] sm:$0xff]
      %v2189 = vld [vmem:[#allocation4 + $0xd8] sm:$0xff]
      %v2190 = vld [vmem:[#allocation4 + $0xe0] sm:$0xff]
      %v2191 = vld [vmem:[#allocation4 + $0xe8] sm:$0xff]
      %v2192 = vld [vmem:[#allocation4 + $0xf0] sm:$0xff]
      %v2193 = vld [vmem:[#allocation4 + $0xf8] sm:$0xff]
      %s2194 = scalar_lea.vmem %s1, 8
      %v2195 = vld [vmem:[%s2194] sm:$0xf]
      %v2196 = vld [vmem:[%s2194 + $0x4] sm:$0x3]
      %v2199 = vunpack.c.l.b16 %v2195
      %v2200 = vunpack.c.l.b16 %v2196
      %v2201 = vpack.c.b16 %v2200, %v2199
      %v2202 = vsel %vm1428, %v2131, 0
      %v2204 = vsel %vm1428, %v2133, 0
      %v2206 = vsel %vm1428, %v2135, 0
      %v2208 = vsel %vm1428, %v2137, 0
      %v2210 = vsel %vm1428, %v2139, 0
      %v2212 = vsel %vm1428, %v2141, 0
      %v2214 = vsel %vm1428, %v2143, 0
      %v2216 = vsel %vm1428, %v2145, 0
      %v2218 = vsel %vm1428, %v2147, 0
      %v2220 = vsel %vm1428, %v2149, 0
      %v2222 = vsel %vm1428, %v2151, 0
      %v2224 = vsel %vm1428, %v2153, 0
      %v2226 = vsel %vm1428, %v2155, 0
      %v2228 = vsel %vm1428, %v2157, 0
      %v2230 = vsel %vm1428, %v2159, 0
      %v2232 = vsel %vm1428, %v2161, 0
      %v2235 = vsel %vm1461, %v2201, 0
      %2237 = vmatpush.bf16.msra.mxu0 0
      %2238 = vmatpush.bf16.msra.mxu0 0
      %2239 = vmatpush.bf16.msra.mxu0 0
      %2240 = vmatpush.bf16.msra.mxu0 0
      %2241 = vmatpush.bf16.msra.mxu0 0
      %2242 = vmatpush.bf16.msra.mxu0 0
      %2243 = vmatpush.bf16.msra.mxu0 0
      %2244 = vmatpush.bf16.msra.mxu0 %v2235
      %2245 = vmatmul.bf16.gmra.mxu0 %v2202
      %v2246 = vpop.f32.mrf.mxu0
      %v2247 = vadd.f32 0.0, %v2246
      %v2248 = vpop.f32.mrf.mxu0
      %v2249 = vadd.f32 0.0, %v2248
      %2250 = vmatmul.bf16.gmra.mxu0 %v2204
      %v2251 = vpop.f32.mrf.mxu0
      %v2252 = vadd.f32 0.0, %v2251
      %v2253 = vpop.f32.mrf.mxu0
      %v2254 = vadd.f32 0.0, %v2253
      %2255 = vmatmul.bf16.gmra.mxu0 %v2206
      %v2256 = vpop.f32.mrf.mxu0
      %v2257 = vadd.f32 0.0, %v2256
      %v2258 = vpop.f32.mrf.mxu0
      %v2259 = vadd.f32 0.0, %v2258
      %2260 = vmatmul.bf16.gmra.mxu0 %v2208
      %v2261 = vpop.f32.mrf.mxu0
      %v2262 = vadd.f32 0.0, %v2261
      %v2263 = vpop.f32.mrf.mxu0
      %v2264 = vadd.f32 0.0, %v2263
      %2265 = vmatmul.bf16.gmra.mxu0 %v2210
      %v2266 = vpop.f32.mrf.mxu0
      %v2267 = vadd.f32 0.0, %v2266
      %v2268 = vpop.f32.mrf.mxu0
      %v2269 = vadd.f32 0.0, %v2268
      %2270 = vmatmul.bf16.gmra.mxu0 %v2212
      %v2271 = vpop.f32.mrf.mxu0
      %v2272 = vadd.f32 0.0, %v2271
      %v2273 = vpop.f32.mrf.mxu0
      %v2274 = vadd.f32 0.0, %v2273
      %2275 = vmatmul.bf16.gmra.mxu0 %v2214
      %v2276 = vpop.f32.mrf.mxu0
      %v2277 = vadd.f32 0.0, %v2276
      %v2278 = vpop.f32.mrf.mxu0
      %v2279 = vadd.f32 0.0, %v2278
      %2280 = vmatmul.bf16.gmra.mxu0 %v2216
      %v2281 = vpop.f32.mrf.mxu0
      %v2282 = vadd.f32 0.0, %v2281
      %v2283 = vpop.f32.mrf.mxu0
      %v2284 = vadd.f32 0.0, %v2283
      %2285 = vmatmul.bf16.gmra.mxu0 %v2218
      %v2286 = vpop.f32.mrf.mxu0
      %v2287 = vadd.f32 0.0, %v2286
      %v2288 = vpop.f32.mrf.mxu0
      %v2289 = vadd.f32 0.0, %v2288
      %2290 = vmatmul.bf16.gmra.mxu0 %v2220
      %v2291 = vpop.f32.mrf.mxu0
      %v2292 = vadd.f32 0.0, %v2291
      %v2293 = vpop.f32.mrf.mxu0
      %v2294 = vadd.f32 0.0, %v2293
      %2295 = vmatmul.bf16.gmra.mxu0 %v2222
      %v2296 = vpop.f32.mrf.mxu0
      %v2297 = vadd.f32 0.0, %v2296
      %v2298 = vpop.f32.mrf.mxu0
      %v2299 = vadd.f32 0.0, %v2298
      %2300 = vmatmul.bf16.gmra.mxu0 %v2224
      %v2301 = vpop.f32.mrf.mxu0
      %v2302 = vadd.f32 0.0, %v2301
      %v2303 = vpop.f32.mrf.mxu0
      %v2304 = vadd.f32 0.0, %v2303
      %2305 = vmatmul.bf16.gmra.mxu0 %v2226
      %v2306 = vpop.f32.mrf.mxu0
      %v2307 = vadd.f32 0.0, %v2306
      %v2308 = vpop.f32.mrf.mxu0
      %v2309 = vadd.f32 0.0, %v2308
      %2310 = vmatmul.bf16.gmra.mxu0 %v2228
      %v2311 = vpop.f32.mrf.mxu0
      %v2312 = vadd.f32 0.0, %v2311
      %v2313 = vpop.f32.mrf.mxu0
      %v2314 = vadd.f32 0.0, %v2313
      %2315 = vmatmul.bf16.gmra.mxu0 %v2230
      %v2316 = vpop.f32.mrf.mxu0
      %v2317 = vadd.f32 0.0, %v2316
      %v2318 = vpop.f32.mrf.mxu0
      %v2319 = vadd.f32 0.0, %v2318
      %2320 = vmatmul.bf16.gmra.mxu0 %v2232
      %v2321 = vpop.f32.mrf.mxu0
      %v2322 = vadd.f32 0.0, %v2321
      %v2323 = vpop.f32.mrf.mxu0
      %v2324 = vadd.f32 0.0, %v2323
      %2325 = vdwg.mxu0
      %v2326 = vadd.f32 %v2162, %v2247
      %v2327 = vadd.f32 %v2163, %v2249
      %v2328 = vadd.f32 %v2164, %v2252
      %v2329 = vadd.f32 %v2165, %v2254
      %v2330 = vadd.f32 %v2166, %v2257
      %v2331 = vadd.f32 %v2167, %v2259
      %v2332 = vadd.f32 %v2168, %v2262
      %v2333 = vadd.f32 %v2169, %v2264
      %v2334 = vadd.f32 %v2170, %v2267
      %v2335 = vadd.f32 %v2171, %v2269
      %v2336 = vadd.f32 %v2172, %v2272
      %v2337 = vadd.f32 %v2173, %v2274
      %v2338 = vadd.f32 %v2174, %v2277
      %v2339 = vadd.f32 %v2175, %v2279
      %v2340 = vadd.f32 %v2176, %v2282
      %v2341 = vadd.f32 %v2177, %v2284
      %v2342 = vadd.f32 %v2178, %v2287
      %v2343 = vadd.f32 %v2179, %v2289
      %v2344 = vadd.f32 %v2180, %v2292
      %v2345 = vadd.f32 %v2181, %v2294
      %v2346 = vadd.f32 %v2182, %v2297
      %v2347 = vadd.f32 %v2183, %v2299
      %v2348 = vadd.f32 %v2184, %v2302
      %v2349 = vadd.f32 %v2185, %v2304
      %v2350 = vadd.f32 %v2186, %v2307
      %v2351 = vadd.f32 %v2187, %v2309
      %v2352 = vadd.f32 %v2188, %v2312
      %v2353 = vadd.f32 %v2189, %v2314
      %v2354 = vadd.f32 %v2190, %v2317
      %v2355 = vadd.f32 %v2191, %v2319
      %v2356 = vadd.f32 %v2192, %v2322
      %v2357 = vadd.f32 %v2193, %v2324
      %2358 = vst.msk [vmem:[#allocation4] sm:$0xff] %vm809, %v2326
      %2359 = vst.msk [vmem:[#allocation4 + $0x8] sm:$0xff] %vm809, %v2327
      %2360 = vst.msk [vmem:[#allocation4 + $0x10] sm:$0xff] %vm809, %v2328
      %2361 = vst.msk [vmem:[#allocation4 + $0x18] sm:$0xff] %vm809, %v2329
      %2362 = vst.msk [vmem:[#allocation4 + $0x20] sm:$0xff] %vm809, %v2330
      %2363 = vst.msk [vmem:[#allocation4 + $0x28] sm:$0xff] %vm809, %v2331
      %2364 = vst.msk [vmem:[#allocation4 + $0x30] sm:$0xff] %vm809, %v2332
      %2365 = vst.msk [vmem:[#allocation4 + $0x38] sm:$0xff] %vm809, %v2333
      %2366 = vst.msk [vmem:[#allocation4 + $0x40] sm:$0xff] %vm809, %v2334
      %2367 = vst.msk [vmem:[#allocation4 + $0x48] sm:$0xff] %vm809, %v2335
      %2368 = vst.msk [vmem:[#allocation4 + $0x50] sm:$0xff] %vm809, %v2336
      %2369 = vst.msk [vmem:[#allocation4 + $0x58] sm:$0xff] %vm809, %v2337
      %2370 = vst.msk [vmem:[#allocation4 + $0x60] sm:$0xff] %vm809, %v2338
      %2371 = vst.msk [vmem:[#allocation4 + $0x68] sm:$0xff] %vm809, %v2339
      %2372 = vst.msk [vmem:[#allocation4 + $0x70] sm:$0xff] %vm809, %v2340
      %2373 = vst.msk [vmem:[#allocation4 + $0x78] sm:$0xff] %vm809, %v2341
      %2374 = vst.msk [vmem:[#allocation4 + $0x80] sm:$0xff] %vm809, %v2342
      %2375 = vst.msk [vmem:[#allocation4 + $0x88] sm:$0xff] %vm809, %v2343
      %2376 = vst.msk [vmem:[#allocation4 + $0x90] sm:$0xff] %vm809, %v2344
      %2377 = vst.msk [vmem:[#allocation4 + $0x98] sm:$0xff] %vm809, %v2345
      %2378 = vst.msk [vmem:[#allocation4 + $0xa0] sm:$0xff] %vm809, %v2346
      %2379 = vst.msk [vmem:[#allocation4 + $0xa8] sm:$0xff] %vm809, %v2347
      %2380 = vst.msk [vmem:[#allocation4 + $0xb0] sm:$0xff] %vm809, %v2348
      %2381 = vst.msk [vmem:[#allocation4 + $0xb8] sm:$0xff] %vm809, %v2349
      %2382 = vst.msk [vmem:[#allocation4 + $0xc0] sm:$0xff] %vm809, %v2350
      %2383 = vst.msk [vmem:[#allocation4 + $0xc8] sm:$0xff] %vm809, %v2351
      %2384 = vst.msk [vmem:[#allocation4 + $0xd0] sm:$0xff] %vm809, %v2352
      %2385 = vst.msk [vmem:[#allocation4 + $0xd8] sm:$0xff] %vm809, %v2353
      %2386 = vst.msk [vmem:[#allocation4 + $0xe0] sm:$0xff] %vm809, %v2354
      %2387 = vst.msk [vmem:[#allocation4 + $0xe8] sm:$0xff] %vm809, %v2355
      %2388 = vst.msk [vmem:[#allocation4 + $0xf0] sm:$0xff] %vm809, %v2356
      %2389 = vst.msk [vmem:[#allocation4 + $0xf8] sm:$0xff] %vm809, %v2357
      %s2390 = scalar_lea.vmem [#allocation2], 24
      %v2391 = vld [vmem:[%s2390] sm:$0xf]
      %v2392 = vld [vmem:[%s2390 + $0x4] sm:$0xf]
      %v2393 = vld [vmem:[%s2390 + $0x8] sm:$0x1]
      %v2394 = vld [vmem:[%s2390 + $0xc] sm:$0xf]
      %v2395 = vld [vmem:[%s2390 + $0x10] sm:$0xf]
      %v2396 = vld [vmem:[%s2390 + $0x14] sm:$0x1]
      %v2397 = vld [vmem:[%s2390 + $0x18] sm:$0xf]
      %v2398 = vld [vmem:[%s2390 + $0x1c] sm:$0xf]
      %v2399 = vld [vmem:[%s2390 + $0x20] sm:$0x1]
      %v2400 = vld [vmem:[%s2390 + $0x24] sm:$0xf]
      %v2401 = vld [vmem:[%s2390 + $0x28] sm:$0xf]
      %v2402 = vld [vmem:[%s2390 + $0x2c] sm:$0x1]
      %v2403 = vld [vmem:[%s2390 + $0x30] sm:$0xf]
      %v2404 = vld [vmem:[%s2390 + $0x34] sm:$0xf]
      %v2405 = vld [vmem:[%s2390 + $0x38] sm:$0x1]
      %v2406 = vld [vmem:[%s2390 + $0x3c] sm:$0xf]
      %v2407 = vld [vmem:[%s2390 + $0x40] sm:$0xf]
      %v2408 = vld [vmem:[%s2390 + $0x44] sm:$0x1]
      %v2409 = vld [vmem:[%s2390 + $0x48] sm:$0xf]
      %v2410 = vld [vmem:[%s2390 + $0x4c] sm:$0xf]
      %v2411 = vld [vmem:[%s2390 + $0x50] sm:$0x1]
      %v2412 = vld [vmem:[%s2390 + $0x54] sm:$0xf]
      %v2413 = vld [vmem:[%s2390 + $0x58] sm:$0xf]
      %v2414 = vld [vmem:[%s2390 + $0x5c] sm:$0x1]
      %v2415 = vld [vmem:[%s2390 + $0x60] sm:$0xf]
      %v2416 = vld [vmem:[%s2390 + $0x64] sm:$0xf]
      %v2417 = vld [vmem:[%s2390 + $0x68] sm:$0x1]
      %v2418 = vld [vmem:[%s2390 + $0x6c] sm:$0xf]
      %v2419 = vld [vmem:[%s2390 + $0x70] sm:$0xf]
      %v2420 = vld [vmem:[%s2390 + $0x74] sm:$0x1]
      %v2421 = vld [vmem:[%s2390 + $0x78] sm:$0xf]
      %v2422 = vld [vmem:[%s2390 + $0x7c] sm:$0xf]
      %v2423 = vld [vmem:[%s2390 + $0x80] sm:$0x1]
      %v2424 = vld [vmem:[%s2390 + $0x84] sm:$0xf]
      %v2425 = vld [vmem:[%s2390 + $0x88] sm:$0xf]
      %v2426 = vld [vmem:[%s2390 + $0x8c] sm:$0x1]
      %v2427 = vld [vmem:[%s2390 + $0x90] sm:$0xf]
      %v2428 = vld [vmem:[%s2390 + $0x94] sm:$0xf]
      %v2429 = vld [vmem:[%s2390 + $0x98] sm:$0x1]
      %v2430 = vld [vmem:[%s2390 + $0x9c] sm:$0xf]
      %v2431 = vld [vmem:[%s2390 + $0xa0] sm:$0xf]
      %v2432 = vld [vmem:[%s2390 + $0xa4] sm:$0x1]
      %v2433 = vld [vmem:[%s2390 + $0xa8] sm:$0xf]
      %v2434 = vld [vmem:[%s2390 + $0xac] sm:$0xf]
      %v2435 = vld [vmem:[%s2390 + $0xb0] sm:$0x1]
      %v2436 = vld [vmem:[%s2390 + $0xb4] sm:$0xf]
      %v2437 = vld [vmem:[%s2390 + $0xb8] sm:$0xf]
      %v2438 = vld [vmem:[%s2390 + $0xbc] sm:$0x1]
      %v2471 = vunpack.c.l.b16 %v2391
      %v2472 = vunpack.c.l.b16 %v2392
      %v2473 = vunpack.c.l.b16 %v2394
      %v2474 = vunpack.c.l.b16 %v2395
      %v2475 = vunpack.c.l.b16 %v2397
      %v2476 = vunpack.c.l.b16 %v2398
      %v2477 = vunpack.c.l.b16 %v2400
      %v2478 = vunpack.c.l.b16 %v2401
      %v2479 = vunpack.c.l.b16 %v2403
      %v2480 = vunpack.c.l.b16 %v2404
      %v2481 = vunpack.c.l.b16 %v2406
      %v2482 = vunpack.c.l.b16 %v2407
      %v2483 = vunpack.c.l.b16 %v2409
      %v2484 = vunpack.c.l.b16 %v2410
      %v2485 = vunpack.c.l.b16 %v2412
      %v2486 = vunpack.c.l.b16 %v2413
      %v2487 = vunpack.c.l.b16 %v2415
      %v2488 = vunpack.c.l.b16 %v2416
      %v2489 = vunpack.c.l.b16 %v2418
      %v2490 = vunpack.c.l.b16 %v2419
      %v2491 = vunpack.c.l.b16 %v2421
      %v2492 = vunpack.c.l.b16 %v2422
      %v2493 = vunpack.c.l.b16 %v2424
      %v2494 = vunpack.c.l.b16 %v2425
      %v2495 = vunpack.c.l.b16 %v2427
      %v2496 = vunpack.c.l.b16 %v2428
      %v2497 = vunpack.c.l.b16 %v2430
      %v2498 = vunpack.c.l.b16 %v2431
      %v2499 = vunpack.c.l.b16 %v2433
      %v2500 = vunpack.c.l.b16 %v2434
      %v2501 = vunpack.c.l.b16 %v2436
      %v2502 = vunpack.c.l.b16 %v2437
      %v2503 = vpack.c.b16 %v2472, %v2471
      %v2504 = vpack.c.b16 %v2474, %v2473
      %v2505 = vpack.c.b16 %v2476, %v2475
      %v2506 = vpack.c.b16 %v2478, %v2477
      %v2507 = vpack.c.b16 %v2480, %v2479
      %v2508 = vpack.c.b16 %v2482, %v2481
      %v2509 = vpack.c.b16 %v2484, %v2483
      %v2510 = vpack.c.b16 %v2486, %v2485
      %v2511 = vpack.c.b16 %v2488, %v2487
      %v2512 = vpack.c.b16 %v2490, %v2489
      %v2513 = vpack.c.b16 %v2492, %v2491
      %v2514 = vpack.c.b16 %v2494, %v2493
      %v2515 = vpack.c.b16 %v2496, %v2495
      %v2516 = vpack.c.b16 %v2498, %v2497
      %v2517 = vpack.c.b16 %v2500, %v2499
      %v2518 = vpack.c.b16 %v2502, %v2501
      %v2535 = vunpack.c.l.b16 %v2393
      %v2536 = vunpack.c.l.b16 %v2396
      %v2537 = vunpack.c.l.b16 %v2399
      %v2538 = vunpack.c.l.b16 %v2402
      %v2539 = vunpack.c.l.b16 %v2405
      %v2540 = vunpack.c.l.b16 %v2408
      %v2541 = vunpack.c.l.b16 %v2411
      %v2542 = vunpack.c.l.b16 %v2414
      %v2543 = vunpack.c.l.b16 %v2417
      %v2544 = vunpack.c.l.b16 %v2420
      %v2545 = vunpack.c.l.b16 %v2423
      %v2546 = vunpack.c.l.b16 %v2426
      %v2547 = vunpack.c.l.b16 %v2429
      %v2548 = vunpack.c.l.b16 %v2432
      %v2549 = vunpack.c.l.b16 %v2435
      %v2550 = vunpack.c.l.b16 %v2438
      %v2551 = vpack.c.b16 %v2535, %v2535
      %v2552 = vpack.c.b16 %v2536, %v2536
      %v2553 = vpack.c.b16 %v2537, %v2537
      %v2554 = vpack.c.b16 %v2538, %v2538
      %v2555 = vpack.c.b16 %v2539, %v2539
      %v2556 = vpack.c.b16 %v2540, %v2540
      %v2557 = vpack.c.b16 %v2541, %v2541
      %v2558 = vpack.c.b16 %v2542, %v2542
      %v2559 = vpack.c.b16 %v2543, %v2543
      %v2560 = vpack.c.b16 %v2544, %v2544
      %v2561 = vpack.c.b16 %v2545, %v2545
      %v2562 = vpack.c.b16 %v2546, %v2546
      %v2563 = vpack.c.b16 %v2547, %v2547
      %v2564 = vpack.c.b16 %v2548, %v2548
      %v2565 = vpack.c.b16 %v2549, %v2549
      %v2566 = vpack.c.b16 %v2550, %v2550
      %v2568 = vshrl.u32 %v2503, 16
      %v2570 = vshll.u32 %v2503, 16
      %v2572 = vrot.slane %v2570, 1
      %v2573 = vor.u32 %v2568, %v2572
      %v2575 = vshll.u32 %v2551, 16
      %v2577 = vrot.slane %v2575, 1
      %v2578 = vsel %vm1018, %v2573, %v2577
      %v2580 = vshrl.u32 %v2504, 16
      %v2582 = vshll.u32 %v2504, 16
      %v2584 = vrot.slane %v2582, 1
      %v2585 = vor.u32 %v2580, %v2584
      %v2587 = vshll.u32 %v2552, 16
      %v2589 = vrot.slane %v2587, 1
      %v2590 = vsel %vm1018, %v2585, %v2589
      %v2592 = vshrl.u32 %v2505, 16
      %v2594 = vshll.u32 %v2505, 16
      %v2596 = vrot.slane %v2594, 1
      %v2597 = vor.u32 %v2592, %v2596
      %v2599 = vshll.u32 %v2553, 16
      %v2601 = vrot.slane %v2599, 1
      %v2602 = vsel %vm1018, %v2597, %v2601
      %v2604 = vshrl.u32 %v2506, 16
      %v2606 = vshll.u32 %v2506, 16
      %v2608 = vrot.slane %v2606, 1
      %v2609 = vor.u32 %v2604, %v2608
      %v2611 = vshll.u32 %v2554, 16
      %v2613 = vrot.slane %v2611, 1
      %v2614 = vsel %vm1018, %v2609, %v2613
      %v2616 = vshrl.u32 %v2507, 16
      %v2618 = vshll.u32 %v2507, 16
      %v2620 = vrot.slane %v2618, 1
      %v2621 = vor.u32 %v2616, %v2620
      %v2623 = vshll.u32 %v2555, 16
      %v2625 = vrot.slane %v2623, 1
      %v2626 = vsel %vm1018, %v2621, %v2625
      %v2628 = vshrl.u32 %v2508, 16
      %v2630 = vshll.u32 %v2508, 16
      %v2632 = vrot.slane %v2630, 1
      %v2633 = vor.u32 %v2628, %v2632
      %v2635 = vshll.u32 %v2556, 16
      %v2637 = vrot.slane %v2635, 1
      %v2638 = vsel %vm1018, %v2633, %v2637
      %v2640 = vshrl.u32 %v2509, 16
      %v2642 = vshll.u32 %v2509, 16
      %v2644 = vrot.slane %v2642, 1
      %v2645 = vor.u32 %v2640, %v2644
      %v2647 = vshll.u32 %v2557, 16
      %v2649 = vrot.slane %v2647, 1
      %v2650 = vsel %vm1018, %v2645, %v2649
      %v2652 = vshrl.u32 %v2510, 16
      %v2654 = vshll.u32 %v2510, 16
      %v2656 = vrot.slane %v2654, 1
      %v2657 = vor.u32 %v2652, %v2656
      %v2659 = vshll.u32 %v2558, 16
      %v2661 = vrot.slane %v2659, 1
      %v2662 = vsel %vm1018, %v2657, %v2661
      %v2664 = vshrl.u32 %v2511, 16
      %v2666 = vshll.u32 %v2511, 16
      %v2668 = vrot.slane %v2666, 1
      %v2669 = vor.u32 %v2664, %v2668
      %v2671 = vshll.u32 %v2559, 16
      %v2673 = vrot.slane %v2671, 1
      %v2674 = vsel %vm1018, %v2669, %v2673
      %v2676 = vshrl.u32 %v2512, 16
      %v2678 = vshll.u32 %v2512, 16
      %v2680 = vrot.slane %v2678, 1
      %v2681 = vor.u32 %v2676, %v2680
      %v2683 = vshll.u32 %v2560, 16
      %v2685 = vrot.slane %v2683, 1
      %v2686 = vsel %vm1018, %v2681, %v2685
      %v2688 = vshrl.u32 %v2513, 16
      %v2690 = vshll.u32 %v2513, 16
      %v2692 = vrot.slane %v2690, 1
      %v2693 = vor.u32 %v2688, %v2692
      %v2695 = vshll.u32 %v2561, 16
      %v2697 = vrot.slane %v2695, 1
      %v2698 = vsel %vm1018, %v2693, %v2697
      %v2700 = vshrl.u32 %v2514, 16
      %v2702 = vshll.u32 %v2514, 16
      %v2704 = vrot.slane %v2702, 1
      %v2705 = vor.u32 %v2700, %v2704
      %v2707 = vshll.u32 %v2562, 16
      %v2709 = vrot.slane %v2707, 1
      %v2710 = vsel %vm1018, %v2705, %v2709
      %v2712 = vshrl.u32 %v2515, 16
      %v2714 = vshll.u32 %v2515, 16
      %v2716 = vrot.slane %v2714, 1
      %v2717 = vor.u32 %v2712, %v2716
      %v2719 = vshll.u32 %v2563, 16
      %v2721 = vrot.slane %v2719, 1
      %v2722 = vsel %vm1018, %v2717, %v2721
      %v2724 = vshrl.u32 %v2516, 16
      %v2726 = vshll.u32 %v2516, 16
      %v2728 = vrot.slane %v2726, 1
      %v2729 = vor.u32 %v2724, %v2728
      %v2731 = vshll.u32 %v2564, 16
      %v2733 = vrot.slane %v2731, 1
      %v2734 = vsel %vm1018, %v2729, %v2733
      %v2736 = vshrl.u32 %v2517, 16
      %v2738 = vshll.u32 %v2517, 16
      %v2740 = vrot.slane %v2738, 1
      %v2741 = vor.u32 %v2736, %v2740
      %v2743 = vshll.u32 %v2565, 16
      %v2745 = vrot.slane %v2743, 1
      %v2746 = vsel %vm1018, %v2741, %v2745
      %v2748 = vshrl.u32 %v2518, 16
      %v2750 = vshll.u32 %v2518, 16
      %v2752 = vrot.slane %v2750, 1
      %v2753 = vor.u32 %v2748, %v2752
      %v2755 = vshll.u32 %v2566, 16
      %v2757 = vrot.slane %v2755, 1
      %v2758 = vsel %vm1018, %v2753, %v2757
      %2759 = vrot.lane.b32.xlu0 %v2578, 4
      %v2760 = vpop.permute.xlu0 %2759
      %2761 = vrot.lane.b32.xlu0 %v2590, 4
      %v2762 = vpop.permute.xlu0 %2761
      %2763 = vrot.lane.b32.xlu0 %v2602, 4
      %v2764 = vpop.permute.xlu0 %2763
      %2765 = vrot.lane.b32.xlu0 %v2614, 4
      %v2766 = vpop.permute.xlu0 %2765
      %2767 = vrot.lane.b32.xlu0 %v2626, 4
      %v2768 = vpop.permute.xlu0 %2767
      %2769 = vrot.lane.b32.xlu0 %v2638, 4
      %v2770 = vpop.permute.xlu0 %2769
      %2771 = vrot.lane.b32.xlu0 %v2650, 4
      %v2772 = vpop.permute.xlu0 %2771
      %2773 = vrot.lane.b32.xlu0 %v2662, 4
      %v2774 = vpop.permute.xlu0 %2773
      %2775 = vrot.lane.b32.xlu0 %v2674, 4
      %v2776 = vpop.permute.xlu0 %2775
      %2777 = vrot.lane.b32.xlu0 %v2686, 4
      %v2778 = vpop.permute.xlu0 %2777
      %2779 = vrot.lane.b32.xlu0 %v2698, 4
      %v2780 = vpop.permute.xlu0 %2779
      %2781 = vrot.lane.b32.xlu0 %v2710, 4
      %v2782 = vpop.permute.xlu0 %2781
      %2783 = vrot.lane.b32.xlu0 %v2722, 4
      %v2784 = vpop.permute.xlu0 %2783
      %2785 = vrot.lane.b32.xlu0 %v2734, 4
      %v2786 = vpop.permute.xlu0 %2785
      %2787 = vrot.lane.b32.xlu0 %v2746, 4
      %v2788 = vpop.permute.xlu0 %2787
      %2789 = vrot.lane.b32.xlu0 %v2758, 4
      %v2790 = vpop.permute.xlu0 %2789
      %v2791 = vrot.slane %v2503, 1
      %v2792 = vrot.slane %v2551, 1
      %v2793 = vsel %vm1243, %v2791, %v2792
      %v2794 = vrot.slane %v2504, 1
      %v2795 = vrot.slane %v2552, 1
      %v2796 = vsel %vm1243, %v2794, %v2795
      %v2797 = vrot.slane %v2505, 1
      %v2798 = vrot.slane %v2553, 1
      %v2799 = vsel %vm1243, %v2797, %v2798
      %v2800 = vrot.slane %v2506, 1
      %v2801 = vrot.slane %v2554, 1
      %v2802 = vsel %vm1243, %v2800, %v2801
      %v2803 = vrot.slane %v2507, 1
      %v2804 = vrot.slane %v2555, 1
      %v2805 = vsel %vm1243, %v2803, %v2804
      %v2806 = vrot.slane %v2508, 1
      %v2807 = vrot.slane %v2556, 1
      %v2808 = vsel %vm1243, %v2806, %v2807
      %v2809 = vrot.slane %v2509, 1
      %v2810 = vrot.slane %v2557, 1
      %v2811 = vsel %vm1243, %v2809, %v2810
      %v2812 = vrot.slane %v2510, 1
      %v2813 = vrot.slane %v2558, 1
      %v2814 = vsel %vm1243, %v2812, %v2813
      %v2815 = vrot.slane %v2511, 1
      %v2816 = vrot.slane %v2559, 1
      %v2817 = vsel %vm1243, %v2815, %v2816
      %v2818 = vrot.slane %v2512, 1
      %v2819 = vrot.slane %v2560, 1
      %v2820 = vsel %vm1243, %v2818, %v2819
      %v2821 = vrot.slane %v2513, 1
      %v2822 = vrot.slane %v2561, 1
      %v2823 = vsel %vm1243, %v2821, %v2822
      %v2824 = vrot.slane %v2514, 1
      %v2825 = vrot.slane %v2562, 1
      %v2826 = vsel %vm1243, %v2824, %v2825
      %v2827 = vrot.slane %v2515, 1
      %v2828 = vrot.slane %v2563, 1
      %v2829 = vsel %vm1243, %v2827, %v2828
      %v2830 = vrot.slane %v2516, 1
      %v2831 = vrot.slane %v2564, 1
      %v2832 = vsel %vm1243, %v2830, %v2831
      %v2833 = vrot.slane %v2517, 1
      %v2834 = vrot.slane %v2565, 1
      %v2835 = vsel %vm1243, %v2833, %v2834
      %v2836 = vrot.slane %v2518, 1
      %v2837 = vrot.slane %v2566, 1
      %v2838 = vsel %vm1243, %v2836, %v2837
      %2839 = vrot.lane.b32.xlu0 %v2793, 8
      %v2840 = vpop.permute.xlu0 %2839
      %2841 = vrot.lane.b32.xlu0 %v2796, 8
      %v2842 = vpop.permute.xlu0 %2841
      %2843 = vrot.lane.b32.xlu0 %v2799, 8
      %v2844 = vpop.permute.xlu0 %2843
      %2845 = vrot.lane.b32.xlu0 %v2802, 8
      %v2846 = vpop.permute.xlu0 %2845
      %2847 = vrot.lane.b32.xlu0 %v2805, 8
      %v2848 = vpop.permute.xlu0 %2847
      %2849 = vrot.lane.b32.xlu0 %v2808, 8
      %v2850 = vpop.permute.xlu0 %2849
      %2851 = vrot.lane.b32.xlu0 %v2811, 8
      %v2852 = vpop.permute.xlu0 %2851
      %2853 = vrot.lane.b32.xlu0 %v2814, 8
      %v2854 = vpop.permute.xlu0 %2853
      %2855 = vrot.lane.b32.xlu0 %v2817, 8
      %v2856 = vpop.permute.xlu0 %2855
      %2857 = vrot.lane.b32.xlu0 %v2820, 8
      %v2858 = vpop.permute.xlu0 %2857
      %2859 = vrot.lane.b32.xlu0 %v2823, 8
      %v2860 = vpop.permute.xlu0 %2859
      %2861 = vrot.lane.b32.xlu0 %v2826, 8
      %v2862 = vpop.permute.xlu0 %2861
      %2863 = vrot.lane.b32.xlu0 %v2829, 8
      %v2864 = vpop.permute.xlu0 %2863
      %2865 = vrot.lane.b32.xlu0 %v2832, 8
      %v2866 = vpop.permute.xlu0 %2865
      %2867 = vrot.lane.b32.xlu0 %v2835, 8
      %v2868 = vpop.permute.xlu0 %2867
      %2869 = vrot.lane.b32.xlu0 %v2838, 8
      %v2870 = vpop.permute.xlu0 %2869
      %v2872 = vsel %vm1324, %v2503, %v2760
      %v2874 = vsel %vm1324, %v2504, %v2762
      %v2876 = vsel %vm1324, %v2505, %v2764
      %v2878 = vsel %vm1324, %v2506, %v2766
      %v2880 = vsel %vm1324, %v2507, %v2768
      %v2882 = vsel %vm1324, %v2508, %v2770
      %v2884 = vsel %vm1324, %v2509, %v2772
      %v2886 = vsel %vm1324, %v2510, %v2774
      %v2888 = vsel %vm1324, %v2511, %v2776
      %v2890 = vsel %vm1324, %v2512, %v2778
      %v2892 = vsel %vm1324, %v2513, %v2780
      %v2894 = vsel %vm1324, %v2514, %v2782
      %v2896 = vsel %vm1324, %v2515, %v2784
      %v2898 = vsel %vm1324, %v2516, %v2786
      %v2900 = vsel %vm1324, %v2517, %v2788
      %v2902 = vsel %vm1324, %v2518, %v2790
      %v2904 = vsel %vm809, %v2872, %v2840
      %v2906 = vsel %vm809, %v2874, %v2842
      %v2908 = vsel %vm809, %v2876, %v2844
      %v2910 = vsel %vm809, %v2878, %v2846
      %v2912 = vsel %vm809, %v2880, %v2848
      %v2914 = vsel %vm809, %v2882, %v2850
      %v2916 = vsel %vm809, %v2884, %v2852
      %v2918 = vsel %vm809, %v2886, %v2854
      %v2920 = vsel %vm809, %v2888, %v2856
      %v2922 = vsel %vm809, %v2890, %v2858
      %v2924 = vsel %vm809, %v2892, %v2860
      %v2926 = vsel %vm809, %v2894, %v2862
      %v2928 = vsel %vm809, %v2896, %v2864
      %v2930 = vsel %vm809, %v2898, %v2866
      %v2932 = vsel %vm809, %v2900, %v2868
      %v2934 = vsel %vm809, %v2902, %v2870
      %v2935 = vld [vmem:[#allocation4] sm:$0xff]
      %v2936 = vld [vmem:[#allocation4 + $0x8] sm:$0xff]
      %v2937 = vld [vmem:[#allocation4 + $0x10] sm:$0xff]
      %v2938 = vld [vmem:[#allocation4 + $0x18] sm:$0xff]
      %v2939 = vld [vmem:[#allocation4 + $0x20] sm:$0xff]
      %v2940 = vld [vmem:[#allocation4 + $0x28] sm:$0xff]
      %v2941 = vld [vmem:[#allocation4 + $0x30] sm:$0xff]
      %v2942 = vld [vmem:[#allocation4 + $0x38] sm:$0xff]
      %v2943 = vld [vmem:[#allocation4 + $0x40] sm:$0xff]
      %v2944 = vld [vmem:[#allocation4 + $0x48] sm:$0xff]
      %v2945 = vld [vmem:[#allocation4 + $0x50] sm:$0xff]
      %v2946 = vld [vmem:[#allocation4 + $0x58] sm:$0xff]
      %v2947 = vld [vmem:[#allocation4 + $0x60] sm:$0xff]
      %v2948 = vld [vmem:[#allocation4 + $0x68] sm:$0xff]
      %v2949 = vld [vmem:[#allocation4 + $0x70] sm:$0xff]
      %v2950 = vld [vmem:[#allocation4 + $0x78] sm:$0xff]
      %v2951 = vld [vmem:[#allocation4 + $0x80] sm:$0xff]
      %v2952 = vld [vmem:[#allocation4 + $0x88] sm:$0xff]
      %v2953 = vld [vmem:[#allocation4 + $0x90] sm:$0xff]
      %v2954 = vld [vmem:[#allocation4 + $0x98] sm:$0xff]
      %v2955 = vld [vmem:[#allocation4 + $0xa0] sm:$0xff]
      %v2956 = vld [vmem:[#allocation4 + $0xa8] sm:$0xff]
      %v2957 = vld [vmem:[#allocation4 + $0xb0] sm:$0xff]
      %v2958 = vld [vmem:[#allocation4 + $0xb8] sm:$0xff]
      %v2959 = vld [vmem:[#allocation4 + $0xc0] sm:$0xff]
      %v2960 = vld [vmem:[#allocation4 + $0xc8] sm:$0xff]
      %v2961 = vld [vmem:[#allocation4 + $0xd0] sm:$0xff]
      %v2962 = vld [vmem:[#allocation4 + $0xd8] sm:$0xff]
      %v2963 = vld [vmem:[#allocation4 + $0xe0] sm:$0xff]
      %v2964 = vld [vmem:[#allocation4 + $0xe8] sm:$0xff]
      %v2965 = vld [vmem:[#allocation4 + $0xf0] sm:$0xff]
      %v2966 = vld [vmem:[#allocation4 + $0xf8] sm:$0xff]
      %s2967 = scalar_lea.vmem %s1, 16
      %v2968 = vld [vmem:[%s2967] sm:$0xf]
      %v2969 = vld [vmem:[%s2967 + $0x4] sm:$0x3]
      %v2972 = vunpack.c.l.b16 %v2968
      %v2973 = vunpack.c.l.b16 %v2969
      %v2974 = vpack.c.b16 %v2973, %v2972
      %v2975 = vsel %vm1428, %v2904, 0
      %v2977 = vsel %vm1428, %v2906, 0
      %v2979 = vsel %vm1428, %v2908, 0
      %v2981 = vsel %vm1428, %v2910, 0
      %v2983 = vsel %vm1428, %v2912, 0
      %v2985 = vsel %vm1428, %v2914, 0
      %v2987 = vsel %vm1428, %v2916, 0
      %v2989 = vsel %vm1428, %v2918, 0
      %v2991 = vsel %vm1428, %v2920, 0
      %v2993 = vsel %vm1428, %v2922, 0
      %v2995 = vsel %vm1428, %v2924, 0
      %v2997 = vsel %vm1428, %v2926, 0
      %v2999 = vsel %vm1428, %v2928, 0
      %v3001 = vsel %vm1428, %v2930, 0
      %v3003 = vsel %vm1428, %v2932, 0
      %v3005 = vsel %vm1428, %v2934, 0
      %v3008 = vsel %vm1461, %v2974, 0
      %3010 = vmatpush.bf16.msra.mxu0 0
      %3011 = vmatpush.bf16.msra.mxu0 0
      %3012 = vmatpush.bf16.msra.mxu0 0
      %3013 = vmatpush.bf16.msra.mxu0 0
      %3014 = vmatpush.bf16.msra.mxu0 0
      %3015 = vmatpush.bf16.msra.mxu0 0
      %3016 = vmatpush.bf16.msra.mxu0 0
      %3017 = vmatpush.bf16.msra.mxu0 %v3008
      %3018 = vmatmul.bf16.gmra.mxu0 %v2975
      %v3019 = vpop.f32.mrf.mxu0
      %v3020 = vadd.f32 0.0, %v3019
      %v3021 = vpop.f32.mrf.mxu0
      %v3022 = vadd.f32 0.0, %v3021
      %3023 = vmatmul.bf16.gmra.mxu0 %v2977
      %v3024 = vpop.f32.mrf.mxu0
      %v3025 = vadd.f32 0.0, %v3024
      %v3026 = vpop.f32.mrf.mxu0
      %v3027 = vadd.f32 0.0, %v3026
      %3028 = vmatmul.bf16.gmra.mxu0 %v2979
      %v3029 = vpop.f32.mrf.mxu0
      %v3030 = vadd.f32 0.0, %v3029
      %v3031 = vpop.f32.mrf.mxu0
      %v3032 = vadd.f32 0.0, %v3031
      %3033 = vmatmul.bf16.gmra.mxu0 %v2981
      %v3034 = vpop.f32.mrf.mxu0
      %v3035 = vadd.f32 0.0, %v3034
      %v3036 = vpop.f32.mrf.mxu0
      %v3037 = vadd.f32 0.0, %v3036
      %3038 = vmatmul.bf16.gmra.mxu0 %v2983
      %v3039 = vpop.f32.mrf.mxu0
      %v3040 = vadd.f32 0.0, %v3039
      %v3041 = vpop.f32.mrf.mxu0
      %v3042 = vadd.f32 0.0, %v3041
      %3043 = vmatmul.bf16.gmra.mxu0 %v2985
      %v3044 = vpop.f32.mrf.mxu0
      %v3045 = vadd.f32 0.0, %v3044
      %v3046 = vpop.f32.mrf.mxu0
      %v3047 = vadd.f32 0.0, %v3046
      %3048 = vmatmul.bf16.gmra.mxu0 %v2987
      %v3049 = vpop.f32.mrf.mxu0
      %v3050 = vadd.f32 0.0, %v3049
      %v3051 = vpop.f32.mrf.mxu0
      %v3052 = vadd.f32 0.0, %v3051
      %3053 = vmatmul.bf16.gmra.mxu0 %v2989
      %v3054 = vpop.f32.mrf.mxu0
      %v3055 = vadd.f32 0.0, %v3054
      %v3056 = vpop.f32.mrf.mxu0
      %v3057 = vadd.f32 0.0, %v3056
      %3058 = vmatmul.bf16.gmra.mxu0 %v2991
      %v3059 = vpop.f32.mrf.mxu0
      %v3060 = vadd.f32 0.0, %v3059
      %v3061 = vpop.f32.mrf.mxu0
      %v3062 = vadd.f32 0.0, %v3061
      %3063 = vmatmul.bf16.gmra.mxu0 %v2993
      %v3064 = vpop.f32.mrf.mxu0
      %v3065 = vadd.f32 0.0, %v3064
      %v3066 = vpop.f32.mrf.mxu0
      %v3067 = vadd.f32 0.0, %v3066
      %3068 = vmatmul.bf16.gmra.mxu0 %v2995
      %v3069 = vpop.f32.mrf.mxu0
      %v3070 = vadd.f32 0.0, %v3069
      %v3071 = vpop.f32.mrf.mxu0
      %v3072 = vadd.f32 0.0, %v3071
      %3073 = vmatmul.bf16.gmra.mxu0 %v2997
      %v3074 = vpop.f32.mrf.mxu0
      %v3075 = vadd.f32 0.0, %v3074
      %v3076 = vpop.f32.mrf.mxu0
      %v3077 = vadd.f32 0.0, %v3076
      %3078 = vmatmul.bf16.gmra.mxu0 %v2999
      %v3079 = vpop.f32.mrf.mxu0
      %v3080 = vadd.f32 0.0, %v3079
      %v3081 = vpop.f32.mrf.mxu0
      %v3082 = vadd.f32 0.0, %v3081
      %3083 = vmatmul.bf16.gmra.mxu0 %v3001
      %v3084 = vpop.f32.mrf.mxu0
      %v3085 = vadd.f32 0.0, %v3084
      %v3086 = vpop.f32.mrf.mxu0
      %v3087 = vadd.f32 0.0, %v3086
      %3088 = vmatmul.bf16.gmra.mxu0 %v3003
      %v3089 = vpop.f32.mrf.mxu0
      %v3090 = vadd.f32 0.0, %v3089
      %v3091 = vpop.f32.mrf.mxu0
      %v3092 = vadd.f32 0.0, %v3091
      %3093 = vmatmul.bf16.gmra.mxu0 %v3005
      %v3094 = vpop.f32.mrf.mxu0
      %v3095 = vadd.f32 0.0, %v3094
      %v3096 = vpop.f32.mrf.mxu0
      %v3097 = vadd.f32 0.0, %v3096
      %3098 = vdwg.mxu0
      %v3099 = vadd.f32 %v2935, %v3020
      %v3100 = vadd.f32 %v2936, %v3022
      %v3101 = vadd.f32 %v2937, %v3025
      %v3102 = vadd.f32 %v2938, %v3027
      %v3103 = vadd.f32 %v2939, %v3030
      %v3104 = vadd.f32 %v2940, %v3032
      %v3105 = vadd.f32 %v2941, %v3035
      %v3106 = vadd.f32 %v2942, %v3037
      %v3107 = vadd.f32 %v2943, %v3040
      %v3108 = vadd.f32 %v2944, %v3042
      %v3109 = vadd.f32 %v2945, %v3045
      %v3110 = vadd.f32 %v2946, %v3047
      %v3111 = vadd.f32 %v2947, %v3050
      %v3112 = vadd.f32 %v2948, %v3052
      %v3113 = vadd.f32 %v2949, %v3055
      %v3114 = vadd.f32 %v2950, %v3057
      %v3115 = vadd.f32 %v2951, %v3060
      %v3116 = vadd.f32 %v2952, %v3062
      %v3117 = vadd.f32 %v2953, %v3065
      %v3118 = vadd.f32 %v2954, %v3067
      %v3119 = vadd.f32 %v2955, %v3070
      %v3120 = vadd.f32 %v2956, %v3072
      %v3121 = vadd.f32 %v2957, %v3075
      %v3122 = vadd.f32 %v2958, %v3077
      %v3123 = vadd.f32 %v2959, %v3080
      %v3124 = vadd.f32 %v2960, %v3082
      %v3125 = vadd.f32 %v2961, %v3085
      %v3126 = vadd.f32 %v2962, %v3087
      %v3127 = vadd.f32 %v2963, %v3090
      %v3128 = vadd.f32 %v2964, %v3092
      %v3129 = vadd.f32 %v2965, %v3095
      %v3130 = vadd.f32 %v2966, %v3097
      %3131 = vst.msk [vmem:[#allocation4] sm:$0xff] %vm809, %v3099
      %3132 = vst.msk [vmem:[#allocation4 + $0x8] sm:$0xff] %vm809, %v3100
      %3133 = vst.msk [vmem:[#allocation4 + $0x10] sm:$0xff] %vm809, %v3101
      %3134 = vst.msk [vmem:[#allocation4 + $0x18] sm:$0xff] %vm809, %v3102
      %3135 = vst.msk [vmem:[#allocation4 + $0x20] sm:$0xff] %vm809, %v3103
      %3136 = vst.msk [vmem:[#allocation4 + $0x28] sm:$0xff] %vm809, %v3104
      %3137 = vst.msk [vmem:[#allocation4 + $0x30] sm:$0xff] %vm809, %v3105
      %3138 = vst.msk [vmem:[#allocation4 + $0x38] sm:$0xff] %vm809, %v3106
      %3139 = vst.msk [vmem:[#allocation4 + $0x40] sm:$0xff] %vm809, %v3107
      %3140 = vst.msk [vmem:[#allocation4 + $0x48] sm:$0xff] %vm809, %v3108
      %3141 = vst.msk [vmem:[#allocation4 + $0x50] sm:$0xff] %vm809, %v3109
      %3142 = vst.msk [vmem:[#allocation4 + $0x58] sm:$0xff] %vm809, %v3110
      %3143 = vst.msk [vmem:[#allocation4 + $0x60] sm:$0xff] %vm809, %v3111
      %3144 = vst.msk [vmem:[#allocation4 + $0x68] sm:$0xff] %vm809, %v3112
      %3145 = vst.msk [vmem:[#allocation4 + $0x70] sm:$0xff] %vm809, %v3113
      %3146 = vst.msk [vmem:[#allocation4 + $0x78] sm:$0xff] %vm809, %v3114
      %3147 = vst.msk [vmem:[#allocation4 + $0x80] sm:$0xff] %vm809, %v3115
      %3148 = vst.msk [vmem:[#allocation4 + $0x88] sm:$0xff] %vm809, %v3116
      %3149 = vst.msk [vmem:[#allocation4 + $0x90] sm:$0xff] %vm809, %v3117
      %3150 = vst.msk [vmem:[#allocation4 + $0x98] sm:$0xff] %vm809, %v3118
      %3151 = vst.msk [vmem:[#allocation4 + $0xa0] sm:$0xff] %vm809, %v3119
      %3152 = vst.msk [vmem:[#allocation4 + $0xa8] sm:$0xff] %vm809, %v3120
      %3153 = vst.msk [vmem:[#allocation4 + $0xb0] sm:$0xff] %vm809, %v3121
      %3154 = vst.msk [vmem:[#allocation4 + $0xb8] sm:$0xff] %vm809, %v3122
      %3155 = vst.msk [vmem:[#allocation4 + $0xc0] sm:$0xff] %vm809, %v3123
      %3156 = vst.msk [vmem:[#allocation4 + $0xc8] sm:$0xff] %vm809, %v3124
      %3157 = vst.msk [vmem:[#allocation4 + $0xd0] sm:$0xff] %vm809, %v3125
      %3158 = vst.msk [vmem:[#allocation4 + $0xd8] sm:$0xff] %vm809, %v3126
      %3159 = vst.msk [vmem:[#allocation4 + $0xe0] sm:$0xff] %vm809, %v3127
      %3160 = vst.msk [vmem:[#allocation4 + $0xe8] sm:$0xff] %vm809, %v3128
      %3161 = vst.msk [vmem:[#allocation4 + $0xf0] sm:$0xff] %vm809, %v3129
      %3162 = vst.msk [vmem:[#allocation4 + $0xf8] sm:$0xff] %vm809, %v3130
      %v3163 = vld [vmem:[#allocation4] sm:$0xff]
      %v3164 = vld [vmem:[#allocation4 + $0x8] sm:$0xff]
      %v3165 = vld [vmem:[#allocation4 + $0x10] sm:$0xff]
      %v3166 = vld [vmem:[#allocation4 + $0x18] sm:$0xff]
      %v3167 = vld [vmem:[#allocation4 + $0x20] sm:$0xff]
      %v3168 = vld [vmem:[#allocation4 + $0x28] sm:$0xff]
      %v3169 = vld [vmem:[#allocation4 + $0x30] sm:$0xff]
      %v3170 = vld [vmem:[#allocation4 + $0x38] sm:$0xff]
      %v3171 = vld [vmem:[#allocation4 + $0x40] sm:$0xff]
      %v3172 = vld [vmem:[#allocation4 + $0x48] sm:$0xff]
      %v3173 = vld [vmem:[#allocation4 + $0x50] sm:$0xff]
      %v3174 = vld [vmem:[#allocation4 + $0x58] sm:$0xff]
      %v3175 = vld [vmem:[#allocation4 + $0x60] sm:$0xff]
      %v3176 = vld [vmem:[#allocation4 + $0x68] sm:$0xff]
      %v3177 = vld [vmem:[#allocation4 + $0x70] sm:$0xff]
      %v3178 = vld [vmem:[#allocation4 + $0x78] sm:$0xff]
      %v3179 = vld [vmem:[#allocation4 + $0x80] sm:$0xff]
      %v3180 = vld [vmem:[#allocation4 + $0x88] sm:$0xff]
      %v3181 = vld [vmem:[#allocation4 + $0x90] sm:$0xff]
      %v3182 = vld [vmem:[#allocation4 + $0x98] sm:$0xff]
      %v3183 = vld [vmem:[#allocation4 + $0xa0] sm:$0xff]
      %v3184 = vld [vmem:[#allocation4 + $0xa8] sm:$0xff]
      %v3185 = vld [vmem:[#allocation4 + $0xb0] sm:$0xff]
      %v3186 = vld [vmem:[#allocation4 + $0xb8] sm:$0xff]
      %v3187 = vld [vmem:[#allocation4 + $0xc0] sm:$0xff]
      %v3188 = vld [vmem:[#allocation4 + $0xc8] sm:$0xff]
      %v3189 = vld [vmem:[#allocation4 + $0xd0] sm:$0xff]
      %v3190 = vld [vmem:[#allocation4 + $0xd8] sm:$0xff]
      %v3191 = vld [vmem:[#allocation4 + $0xe0] sm:$0xff]
      %v3192 = vld [vmem:[#allocation4 + $0xe8] sm:$0xff]
      %v3193 = vld [vmem:[#allocation4 + $0xf0] sm:$0xff]
      %v3194 = vld [vmem:[#allocation4 + $0xf8] sm:$0xff]
      %v3195 = vmax.f32 %v3163, 0.0
      %v3196 = vmax.f32 %v3164, 0.0
      %v3197 = vmax.f32 %v3165, 0.0
      %v3198 = vmax.f32 %v3166, 0.0
      %v3199 = vmax.f32 %v3167, 0.0
      %v3200 = vmax.f32 %v3168, 0.0
      %v3201 = vmax.f32 %v3169, 0.0
      %v3202 = vmax.f32 %v3170, 0.0
      %v3203 = vmax.f32 %v3171, 0.0
      %v3204 = vmax.f32 %v3172, 0.0
      %v3205 = vmax.f32 %v3173, 0.0
      %v3206 = vmax.f32 %v3174, 0.0
      %v3207 = vmax.f32 %v3175, 0.0
      %v3208 = vmax.f32 %v3176, 0.0
      %v3209 = vmax.f32 %v3177, 0.0
      %v3210 = vmax.f32 %v3178, 0.0
      %v3211 = vmax.f32 %v3179, 0.0
      %v3212 = vmax.f32 %v3180, 0.0
      %v3213 = vmax.f32 %v3181, 0.0
      %v3214 = vmax.f32 %v3182, 0.0
      %v3215 = vmax.f32 %v3183, 0.0
      %v3216 = vmax.f32 %v3184, 0.0
      %v3217 = vmax.f32 %v3185, 0.0
      %v3218 = vmax.f32 %v3186, 0.0
      %v3219 = vmax.f32 %v3187, 0.0
      %v3220 = vmax.f32 %v3188, 0.0
      %v3221 = vmax.f32 %v3189, 0.0
      %v3222 = vmax.f32 %v3190, 0.0
      %v3223 = vmax.f32 %v3191, 0.0
      %v3224 = vmax.f32 %v3192, 0.0
      %v3225 = vmax.f32 %v3193, 0.0
      %v3226 = vmax.f32 %v3194, 0.0
      %v3227 = vpack.c.bf16 %v3195, %v3195
      %v3228 = vpack.c.bf16 %v3196, %v3196
      %v3229 = vpack.c.bf16 %v3197, %v3197
      %v3230 = vpack.c.bf16 %v3198, %v3198
      %v3231 = vpack.c.bf16 %v3199, %v3199
      %v3232 = vpack.c.bf16 %v3200, %v3200
      %v3233 = vpack.c.bf16 %v3201, %v3201
      %v3234 = vpack.c.bf16 %v3202, %v3202
      %v3235 = vpack.c.bf16 %v3203, %v3203
      %v3236 = vpack.c.bf16 %v3204, %v3204
      %v3237 = vpack.c.bf16 %v3205, %v3205
      %v3238 = vpack.c.bf16 %v3206, %v3206
      %v3239 = vpack.c.bf16 %v3207, %v3207
      %v3240 = vpack.c.bf16 %v3208, %v3208
      %v3241 = vpack.c.bf16 %v3209, %v3209
      %v3242 = vpack.c.bf16 %v3210, %v3210
      %v3243 = vpack.c.bf16 %v3211, %v3211
      %v3244 = vpack.c.bf16 %v3212, %v3212
      %v3245 = vpack.c.bf16 %v3213, %v3213
      %v3246 = vpack.c.bf16 %v3214, %v3214
      %v3247 = vpack.c.bf16 %v3215, %v3215
      %v3248 = vpack.c.bf16 %v3216, %v3216
      %v3249 = vpack.c.bf16 %v3217, %v3217
      %v3250 = vpack.c.bf16 %v3218, %v3218
      %v3251 = vpack.c.bf16 %v3219, %v3219
      %v3252 = vpack.c.bf16 %v3220, %v3220
      %v3253 = vpack.c.bf16 %v3221, %v3221
      %v3254 = vpack.c.bf16 %v3222, %v3222
      %v3255 = vpack.c.bf16 %v3223, %v3223
      %v3256 = vpack.c.bf16 %v3224, %v3224
      %v3257 = vpack.c.bf16 %v3225, %v3225
      %v3258 = vpack.c.bf16 %v3226, %v3226
      %v3291 = vunpack.c.l.b16 %v3227
      %v3292 = vunpack.c.l.b16 %v3228
      %v3293 = vunpack.c.l.b16 %v3229
      %v3294 = vunpack.c.l.b16 %v3230
      %v3295 = vunpack.c.l.b16 %v3231
      %v3296 = vunpack.c.l.b16 %v3232
      %v3297 = vunpack.c.l.b16 %v3233
      %v3298 = vunpack.c.l.b16 %v3234
      %v3299 = vunpack.c.l.b16 %v3235
      %v3300 = vunpack.c.l.b16 %v3236
      %v3301 = vunpack.c.l.b16 %v3237
      %v3302 = vunpack.c.l.b16 %v3238
      %v3303 = vunpack.c.l.b16 %v3239
      %v3304 = vunpack.c.l.b16 %v3240
      %v3305 = vunpack.c.l.b16 %v3241
      %v3306 = vunpack.c.l.b16 %v3242
      %v3307 = vunpack.c.l.b16 %v3243
      %v3308 = vunpack.c.l.b16 %v3244
      %v3309 = vunpack.c.l.b16 %v3245
      %v3310 = vunpack.c.l.b16 %v3246
      %v3311 = vunpack.c.l.b16 %v3247
      %v3312 = vunpack.c.l.b16 %v3248
      %v3313 = vunpack.c.l.b16 %v3249
      %v3314 = vunpack.c.l.b16 %v3250
      %v3315 = vunpack.c.l.b16 %v3251
      %v3316 = vunpack.c.l.b16 %v3252
      %v3317 = vunpack.c.l.b16 %v3253
      %v3318 = vunpack.c.l.b16 %v3254
      %v3319 = vunpack.c.l.b16 %v3255
      %v3320 = vunpack.c.l.b16 %v3256
      %v3321 = vunpack.c.l.b16 %v3257
      %v3322 = vunpack.c.l.b16 %v3258
      %v3323 = vpack.c.b16 %v3292, %v3291
      %v3324 = vpack.c.b16 %v3294, %v3293
      %v3325 = vpack.c.b16 %v3296, %v3295
      %v3326 = vpack.c.b16 %v3298, %v3297
      %v3327 = vpack.c.b16 %v3300, %v3299
      %v3328 = vpack.c.b16 %v3302, %v3301
      %v3329 = vpack.c.b16 %v3304, %v3303
      %v3330 = vpack.c.b16 %v3306, %v3305
      %v3331 = vpack.c.b16 %v3308, %v3307
      %v3332 = vpack.c.b16 %v3310, %v3309
      %v3333 = vpack.c.b16 %v3312, %v3311
      %v3334 = vpack.c.b16 %v3314, %v3313
      %v3335 = vpack.c.b16 %v3316, %v3315
      %v3336 = vpack.c.b16 %v3318, %v3317
      %v3337 = vpack.c.b16 %v3320, %v3319
      %v3338 = vpack.c.b16 %v3322, %v3321
      %v3340 = vshrl.u32 %v3323, 16
      %v3342 = vrot.slane %v3340, 7
      %v3343 = vshll.u32 %v3323, 16
      %v3345 = vor.u32 %v3342, %v3343
      %v3347 = vshrl.u32 %v3324, 16
      %v3349 = vrot.slane %v3347, 7
      %v3350 = vshll.u32 %v3324, 16
      %v3352 = vor.u32 %v3349, %v3350
      %v3354 = vshrl.u32 %v3325, 16
      %v3356 = vrot.slane %v3354, 7
      %v3357 = vshll.u32 %v3325, 16
      %v3359 = vor.u32 %v3356, %v3357
      %v3361 = vshrl.u32 %v3326, 16
      %v3363 = vrot.slane %v3361, 7
      %v3364 = vshll.u32 %v3326, 16
      %v3366 = vor.u32 %v3363, %v3364
      %v3368 = vshrl.u32 %v3327, 16
      %v3370 = vrot.slane %v3368, 7
      %v3371 = vshll.u32 %v3327, 16
      %v3373 = vor.u32 %v3370, %v3371
      %v3375 = vshrl.u32 %v3328, 16
      %v3377 = vrot.slane %v3375, 7
      %v3378 = vshll.u32 %v3328, 16
      %v3380 = vor.u32 %v3377, %v3378
      %v3382 = vshrl.u32 %v3329, 16
      %v3384 = vrot.slane %v3382, 7
      %v3385 = vshll.u32 %v3329, 16
      %v3387 = vor.u32 %v3384, %v3385
      %v3389 = vshrl.u32 %v3330, 16
      %v3391 = vrot.slane %v3389, 7
      %v3392 = vshll.u32 %v3330, 16
      %v3394 = vor.u32 %v3391, %v3392
      %v3396 = vshrl.u32 %v3331, 16
      %v3398 = vrot.slane %v3396, 7
      %v3399 = vshll.u32 %v3331, 16
      %v3401 = vor.u32 %v3398, %v3399
      %v3403 = vshrl.u32 %v3332, 16
      %v3405 = vrot.slane %v3403, 7
      %v3406 = vshll.u32 %v3332, 16
      %v3408 = vor.u32 %v3405, %v3406
      %v3410 = vshrl.u32 %v3333, 16
      %v3412 = vrot.slane %v3410, 7
      %v3413 = vshll.u32 %v3333, 16
      %v3415 = vor.u32 %v3412, %v3413
      %v3417 = vshrl.u32 %v3334, 16
      %v3419 = vrot.slane %v3417, 7
      %v3420 = vshll.u32 %v3334, 16
      %v3422 = vor.u32 %v3419, %v3420
      %v3424 = vshrl.u32 %v3335, 16
      %v3426 = vrot.slane %v3424, 7
      %v3427 = vshll.u32 %v3335, 16
      %v3429 = vor.u32 %v3426, %v3427
      %v3431 = vshrl.u32 %v3336, 16
      %v3433 = vrot.slane %v3431, 7
      %v3434 = vshll.u32 %v3336, 16
      %v3436 = vor.u32 %v3433, %v3434
      %v3438 = vshrl.u32 %v3337, 16
      %v3440 = vrot.slane %v3438, 7
      %v3441 = vshll.u32 %v3337, 16
      %v3443 = vor.u32 %v3440, %v3441
      %v3445 = vshrl.u32 %v3338, 16
      %v3447 = vrot.slane %v3445, 7
      %v3448 = vshll.u32 %v3338, 16
      %v3450 = vor.u32 %v3447, %v3448
      %v3483 = vsel %vm538, 0, %v3345
      %v3484 = vsel %vm538, 0, %v3352
      %v3485 = vsel %vm538, 0, %v3359
      %v3486 = vsel %vm538, 0, %v3366
      %v3487 = vsel %vm538, 0, %v3373
      %v3488 = vsel %vm538, 0, %v3380
      %v3489 = vsel %vm538, 0, %v3387
      %v3490 = vsel %vm538, 0, %v3394
      %v3491 = vsel %vm538, 0, %v3401
      %v3492 = vsel %vm538, 0, %v3408
      %v3493 = vsel %vm538, 0, %v3415
      %v3494 = vsel %vm538, 0, %v3422
      %v3495 = vsel %vm538, 0, %v3429
      %v3496 = vsel %vm538, 0, %v3436
      %v3497 = vsel %vm538, 0, %v3443
      %v3498 = vsel %vm538, 0, %v3450
      %v3499 = vsel %vm538, %v3342, 0
      %v3500 = vsel %vm538, %v3349, 0
      %v3501 = vsel %vm538, %v3356, 0
      %v3502 = vsel %vm538, %v3363, 0
      %v3503 = vsel %vm538, %v3370, 0
      %v3504 = vsel %vm538, %v3377, 0
      %v3505 = vsel %vm538, %v3384, 0
      %v3506 = vsel %vm538, %v3391, 0
      %v3507 = vsel %vm538, %v3398, 0
      %v3508 = vsel %vm538, %v3405, 0
      %v3509 = vsel %vm538, %v3412, 0
      %v3510 = vsel %vm538, %v3419, 0
      %v3511 = vsel %vm538, %v3426, 0
      %v3512 = vsel %vm538, %v3433, 0
      %v3513 = vsel %vm538, %v3440, 0
      %v3514 = vsel %vm538, %v3447, 0
      %v3547 = vunpack.c.l.b16 %v3483
      %v3548 = vunpack.c.h.b16 %v3483
      %v3549 = vunpack.c.l.b16 %v3499
      %v3550 = vunpack.c.l.b16 %v3484
      %v3551 = vunpack.c.h.b16 %v3484
      %v3552 = vunpack.c.l.b16 %v3500
      %v3553 = vunpack.c.l.b16 %v3485
      %v3554 = vunpack.c.h.b16 %v3485
      %v3555 = vunpack.c.l.b16 %v3501
      %v3556 = vunpack.c.l.b16 %v3486
      %v3557 = vunpack.c.h.b16 %v3486
      %v3558 = vunpack.c.l.b16 %v3502
      %v3559 = vunpack.c.l.b16 %v3487
      %v3560 = vunpack.c.h.b16 %v3487
      %v3561 = vunpack.c.l.b16 %v3503
      %v3562 = vunpack.c.l.b16 %v3488
      %v3563 = vunpack.c.h.b16 %v3488
      %v3564 = vunpack.c.l.b16 %v3504
      %v3565 = vunpack.c.l.b16 %v3489
      %v3566 = vunpack.c.h.b16 %v3489
      %v3567 = vunpack.c.l.b16 %v3505
      %v3568 = vunpack.c.l.b16 %v3490
      %v3569 = vunpack.c.h.b16 %v3490
      %v3570 = vunpack.c.l.b16 %v3506
      %v3571 = vunpack.c.l.b16 %v3491
      %v3572 = vunpack.c.h.b16 %v3491
      %v3573 = vunpack.c.l.b16 %v3507
      %v3574 = vunpack.c.l.b16 %v3492
      %v3575 = vunpack.c.h.b16 %v3492
      %v3576 = vunpack.c.l.b16 %v3508
      %v3577 = vunpack.c.l.b16 %v3493
      %v3578 = vunpack.c.h.b16 %v3493
      %v3579 = vunpack.c.l.b16 %v3509
      %v3580 = vunpack.c.l.b16 %v3494
      %v3581 = vunpack.c.h.b16 %v3494
      %v3582 = vunpack.c.l.b16 %v3510
      %v3583 = vunpack.c.l.b16 %v3495
      %v3584 = vunpack.c.h.b16 %v3495
      %v3585 = vunpack.c.l.b16 %v3511
      %v3586 = vunpack.c.l.b16 %v3496
      %v3587 = vunpack.c.h.b16 %v3496
      %v3588 = vunpack.c.l.b16 %v3512
      %v3589 = vunpack.c.l.b16 %v3497
      %v3590 = vunpack.c.h.b16 %v3497
      %v3591 = vunpack.c.l.b16 %v3513
      %v3592 = vunpack.c.l.b16 %v3498
      %v3593 = vunpack.c.h.b16 %v3498
      %v3594 = vunpack.c.l.b16 %v3514
      %v3595 = vpack.c.b16 %v3547, %v3547
      %v3596 = vpack.c.b16 %v3548, %v3548
      %v3597 = vpack.c.b16 %v3549, %v3549
      %v3598 = vpack.c.b16 %v3550, %v3550
      %v3599 = vpack.c.b16 %v3551, %v3551
      %v3600 = vpack.c.b16 %v3552, %v3552
      %v3601 = vpack.c.b16 %v3553, %v3553
      %v3602 = vpack.c.b16 %v3554, %v3554
      %v3603 = vpack.c.b16 %v3555, %v3555
      %v3604 = vpack.c.b16 %v3556, %v3556
      %v3605 = vpack.c.b16 %v3557, %v3557
      %v3606 = vpack.c.b16 %v3558, %v3558
      %v3607 = vpack.c.b16 %v3559, %v3559
      %v3608 = vpack.c.b16 %v3560, %v3560
      %v3609 = vpack.c.b16 %v3561, %v3561
      %v3610 = vpack.c.b16 %v3562, %v3562
      %v3611 = vpack.c.b16 %v3563, %v3563
      %v3612 = vpack.c.b16 %v3564, %v3564
      %v3613 = vpack.c.b16 %v3565, %v3565
      %v3614 = vpack.c.b16 %v3566, %v3566
      %v3615 = vpack.c.b16 %v3567, %v3567
      %v3616 = vpack.c.b16 %v3568, %v3568
      %v3617 = vpack.c.b16 %v3569, %v3569
      %v3618 = vpack.c.b16 %v3570, %v3570
      %v3619 = vpack.c.b16 %v3571, %v3571
      %v3620 = vpack.c.b16 %v3572, %v3572
      %v3621 = vpack.c.b16 %v3573, %v3573
      %v3622 = vpack.c.b16 %v3574, %v3574
      %v3623 = vpack.c.b16 %v3575, %v3575
      %v3624 = vpack.c.b16 %v3576, %v3576
      %v3625 = vpack.c.b16 %v3577, %v3577
      %v3626 = vpack.c.b16 %v3578, %v3578
      %v3627 = vpack.c.b16 %v3579, %v3579
      %v3628 = vpack.c.b16 %v3580, %v3580
      %v3629 = vpack.c.b16 %v3581, %v3581
      %v3630 = vpack.c.b16 %v3582, %v3582
      %v3631 = vpack.c.b16 %v3583, %v3583
      %v3632 = vpack.c.b16 %v3584, %v3584
      %v3633 = vpack.c.b16 %v3585, %v3585
      %v3634 = vpack.c.b16 %v3586, %v3586
      %v3635 = vpack.c.b16 %v3587, %v3587
      %v3636 = vpack.c.b16 %v3588, %v3588
      %v3637 = vpack.c.b16 %v3589, %v3589
      %v3638 = vpack.c.b16 %v3590, %v3590
      %v3639 = vpack.c.b16 %v3591, %v3591
      %v3640 = vpack.c.b16 %v3592, %v3592
      %v3641 = vpack.c.b16 %v3593, %v3593
      %v3642 = vpack.c.b16 %v3594, %v3594
      %s3691 = scalar_lea.vmem [#allocation3], 12
      %vm3692 = vcmask 60416
      %3693 = vst.msk [vmem:[%s3691] sm:$0xf] %vm3692, %v3595
      %3694 = vst.msk [vmem:[%s3691 + $0x4] sm:$0xf] %vm3692, %v3596
      %vm3695 = vcmask 57344
      %3696 = vst.msk [vmem:[%s3691 + $0x8] sm:$0x1] %vm3695, %v3597
      %3697 = vst.msk [vmem:[%s3691 + $0xc] sm:$0xf] %vm3692, %v3598
      %3698 = vst.msk [vmem:[%s3691 + $0x10] sm:$0xf] %vm3692, %v3599
      %3699 = vst.msk [vmem:[%s3691 + $0x14] sm:$0x1] %vm3695, %v3600
      %3700 = vst.msk [vmem:[%s3691 + $0x18] sm:$0xf] %vm3692, %v3601
      %3701 = vst.msk [vmem:[%s3691 + $0x1c] sm:$0xf] %vm3692, %v3602
      %3702 = vst.msk [vmem:[%s3691 + $0x20] sm:$0x1] %vm3695, %v3603
      %3703 = vst.msk [vmem:[%s3691 + $0x24] sm:$0xf] %vm3692, %v3604
      %3704 = vst.msk [vmem:[%s3691 + $0x28] sm:$0xf] %vm3692, %v3605
      %3705 = vst.msk [vmem:[%s3691 + $0x2c] sm:$0x1] %vm3695, %v3606
      %3706 = vst.msk [vmem:[%s3691 + $0x30] sm:$0xf] %vm3692, %v3607
      %3707 = vst.msk [vmem:[%s3691 + $0x34] sm:$0xf] %vm3692, %v3608
      %3708 = vst.msk [vmem:[%s3691 + $0x38] sm:$0x1] %vm3695, %v3609
      %3709 = vst.msk [vmem:[%s3691 + $0x3c] sm:$0xf] %vm3692, %v3610
      %3710 = vst.msk [vmem:[%s3691 + $0x40] sm:$0xf] %vm3692, %v3611
      %3711 = vst.msk [vmem:[%s3691 + $0x44] sm:$0x1] %vm3695, %v3612
      %3712 = vst.msk [vmem:[%s3691 + $0x48] sm:$0xf] %vm3692, %v3613
      %3713 = vst.msk [vmem:[%s3691 + $0x4c] sm:$0xf] %vm3692, %v3614
      %3714 = vst.msk [vmem:[%s3691 + $0x50] sm:$0x1] %vm3695, %v3615
      %3715 = vst.msk [vmem:[%s3691 + $0x54] sm:$0xf] %vm3692, %v3616
      %3716 = vst.msk [vmem:[%s3691 + $0x58] sm:$0xf] %vm3692, %v3617
      %3717 = vst.msk [vmem:[%s3691 + $0x5c] sm:$0x1] %vm3695, %v3618
      %3718 = vst.msk [vmem:[%s3691 + $0x60] sm:$0xf] %vm3692, %v3619
      %3719 = vst.msk [vmem:[%s3691 + $0x64] sm:$0xf] %vm3692, %v3620
      %3720 = vst.msk [vmem:[%s3691 + $0x68] sm:$0x1] %vm3695, %v3621
      %3721 = vst.msk [vmem:[%s3691 + $0x6c] sm:$0xf] %vm3692, %v3622
      %3722 = vst.msk [vmem:[%s3691 + $0x70] sm:$0xf] %vm3692, %v3623
      %3723 = vst.msk [vmem:[%s3691 + $0x74] sm:$0x1] %vm3695, %v3624
      %3724 = vst.msk [vmem:[%s3691 + $0x78] sm:$0xf] %vm3692, %v3625
      %3725 = vst.msk [vmem:[%s3691 + $0x7c] sm:$0xf] %vm3692, %v3626
      %3726 = vst.msk [vmem:[%s3691 + $0x80] sm:$0x1] %vm3695, %v3627
      %3727 = vst.msk [vmem:[%s3691 + $0x84] sm:$0xf] %vm3692, %v3628
      %3728 = vst.msk [vmem:[%s3691 + $0x88] sm:$0xf] %vm3692, %v3629
      %3729 = vst.msk [vmem:[%s3691 + $0x8c] sm:$0x1] %vm3695, %v3630
      %3730 = vst.msk [vmem:[%s3691 + $0x90] sm:$0xf] %vm3692, %v3631
      %3731 = vst.msk [vmem:[%s3691 + $0x94] sm:$0xf] %vm3692, %v3632
      %3732 = vst.msk [vmem:[%s3691 + $0x98] sm:$0x1] %vm3695, %v3633
      %3733 = vst.msk [vmem:[%s3691 + $0x9c] sm:$0xf] %vm3692, %v3634
      %3734 = vst.msk [vmem:[%s3691 + $0xa0] sm:$0xf] %vm3692, %v3635
      %3735 = vst.msk [vmem:[%s3691 + $0xa4] sm:$0x1] %vm3695, %v3636
      %3736 = vst.msk [vmem:[%s3691 + $0xa8] sm:$0xf] %vm3692, %v3637
      %3737 = vst.msk [vmem:[%s3691 + $0xac] sm:$0xf] %vm3692, %v3638
      %3738 = vst.msk [vmem:[%s3691 + $0xb0] sm:$0x1] %vm3695, %v3639
      %3739 = vst.msk [vmem:[%s3691 + $0xb4] sm:$0xf] %vm3692, %v3640
      %3740 = vst.msk [vmem:[%s3691 + $0xb8] sm:$0xf] %vm3692, %v3641
      %3741 = vst.msk [vmem:[%s3691 + $0xbc] sm:$0x1] %vm3695, %v3642
      %3742 = vst.msk [vmem:[#allocation3] sm:$0xf] %vm3692, 0
      %3743 = vst.msk [vmem:[#allocation3 + $0x4] sm:$0xf] %vm3692, 0
      %3744 = vst.msk [vmem:[#allocation3 + $0x8] sm:$0x1] %vm3695, 0
      %s3745 = scalar_lea.vmem [#allocation3], 204
      %3746 = vst.msk [vmem:[%s3745] sm:$0xf] %vm3692, 0
      %3747 = vst.msk [vmem:[%s3745 + $0x4] sm:$0xf] %vm3692, 0
      %3748 = vst.msk [vmem:[%s3745 + $0x8] sm:$0x1] %vm3695, 0
      %v3749 = vld [vmem:[%s5] sm:$0x3]
      %v3750 = vld [vmem:[%s4] sm:$0x1]
      %v3751 = vld [vmem:[%s6] sm:$0x1]
      %v3752 = vadd.f32 %v3750, %v3751
      %v3754 = vperm.slane %v3752, 0
      %v3756 = vsel %vm1324, %v376, 0
      %v3758 = vsel %vm1324, %v377, 0
      %v3760 = vsel %vm1324, %v378, 0
      %v3762 = vsel %vm1324, %v379, 0
      %v3764 = vsel %vm1324, %v380, 0
      %v3766 = vsel %vm1324, %v381, 0
      %v3768 = vsel %vm1324, %v382, 0
      %v3770 = vsel %vm1324, %v383, 0
      %v3772 = vsel %vm1324, %v384, 0
      %v3774 = vsel %vm1324, %v385, 0
      %v3776 = vsel %vm1324, %v386, 0
      %v3778 = vsel %vm1324, %v387, 0
      %v3780 = vsel %vm1324, %v388, 0
      %v3782 = vsel %vm1324, %v389, 0
      %v3784 = vsel %vm1324, %v390, 0
      %v3786 = vsel %vm1324, %v391, 0
      %vm3788 = vcmask 1041408
      %v3790 = vsel %vm3788, %v3749, 0
      %3792 = vmatpush.bf16.msra.mxu0 0
      %3793 = vmatpush.bf16.msra.mxu0 0
      %3794 = vmatpush.bf16.msra.mxu0 0
      %3795 = vmatpush.bf16.msra.mxu0 0
      %3796 = vmatpush.bf16.msra.mxu0 0
      %3797 = vmatpush.bf16.msra.mxu0 0
      %3798 = vmatpush.bf16.msra.mxu0 0
      %3799 = vmatpush.bf16.msra.mxu0 %v3790
      %3800 = vmatmul.bf16.gmra.mxu0 %v3756
      %v3801 = vpop.f32.mrf.mxu0
      %v3802 = vadd.f32 %v3754, %v3801
      %v3803 = vpop.f32.mrf.mxu0
      %v3804 = vadd.f32 %v3754, %v3803
      %3805 = vmatmul.bf16.gmra.mxu0 %v3758
      %v3806 = vpop.f32.mrf.mxu0
      %v3807 = vadd.f32 %v3754, %v3806
      %v3808 = vpop.f32.mrf.mxu0
      %v3809 = vadd.f32 %v3754, %v3808
      %3810 = vmatmul.bf16.gmra.mxu0 %v3760
      %v3811 = vpop.f32.mrf.mxu0
      %v3812 = vadd.f32 %v3754, %v3811
      %v3813 = vpop.f32.mrf.mxu0
      %v3814 = vadd.f32 %v3754, %v3813
      %3815 = vmatmul.bf16.gmra.mxu0 %v3762
      %v3816 = vpop.f32.mrf.mxu0
      %v3817 = vadd.f32 %v3754, %v3816
      %v3818 = vpop.f32.mrf.mxu0
      %v3819 = vadd.f32 %v3754, %v3818
      %3820 = vmatmul.bf16.gmra.mxu0 %v3764
      %v3821 = vpop.f32.mrf.mxu0
      %v3822 = vadd.f32 %v3754, %v3821
      %v3823 = vpop.f32.mrf.mxu0
      %v3824 = vadd.f32 %v3754, %v3823
      %3825 = vmatmul.bf16.gmra.mxu0 %v3766
      %v3826 = vpop.f32.mrf.mxu0
      %v3827 = vadd.f32 %v3754, %v3826
      %v3828 = vpop.f32.mrf.mxu0
      %v3829 = vadd.f32 %v3754, %v3828
      %3830 = vmatmul.bf16.gmra.mxu0 %v3768
      %v3831 = vpop.f32.mrf.mxu0
      %v3832 = vadd.f32 %v3754, %v3831
      %v3833 = vpop.f32.mrf.mxu0
      %v3834 = vadd.f32 %v3754, %v3833
      %3835 = vmatmul.bf16.gmra.mxu0 %v3770
      %v3836 = vpop.f32.mrf.mxu0
      %v3837 = vadd.f32 %v3754, %v3836
      %v3838 = vpop.f32.mrf.mxu0
      %v3839 = vadd.f32 %v3754, %v3838
      %3840 = vmatmul.bf16.gmra.mxu0 %v3772
      %v3841 = vpop.f32.mrf.mxu0
      %v3842 = vadd.f32 %v3754, %v3841
      %v3843 = vpop.f32.mrf.mxu0
      %v3844 = vadd.f32 %v3754, %v3843
      %3845 = vmatmul.bf16.gmra.mxu0 %v3774
      %v3846 = vpop.f32.mrf.mxu0
      %v3847 = vadd.f32 %v3754, %v3846
      %v3848 = vpop.f32.mrf.mxu0
      %v3849 = vadd.f32 %v3754, %v3848
      %3850 = vmatmul.bf16.gmra.mxu0 %v3776
      %v3851 = vpop.f32.mrf.mxu0
      %v3852 = vadd.f32 %v3754, %v3851
      %v3853 = vpop.f32.mrf.mxu0
      %v3854 = vadd.f32 %v3754, %v3853
      %3855 = vmatmul.bf16.gmra.mxu0 %v3778
      %v3856 = vpop.f32.mrf.mxu0
      %v3857 = vadd.f32 %v3754, %v3856
      %v3858 = vpop.f32.mrf.mxu0
      %v3859 = vadd.f32 %v3754, %v3858
      %3860 = vmatmul.bf16.gmra.mxu0 %v3780
      %v3861 = vpop.f32.mrf.mxu0
      %v3862 = vadd.f32 %v3754, %v3861
      %v3863 = vpop.f32.mrf.mxu0
      %v3864 = vadd.f32 %v3754, %v3863
      %3865 = vmatmul.bf16.gmra.mxu0 %v3782
      %v3866 = vpop.f32.mrf.mxu0
      %v3867 = vadd.f32 %v3754, %v3866
      %v3868 = vpop.f32.mrf.mxu0
      %v3869 = vadd.f32 %v3754, %v3868
      %3870 = vmatmul.bf16.gmra.mxu0 %v3784
      %v3871 = vpop.f32.mrf.mxu0
      %v3872 = vadd.f32 %v3754, %v3871
      %v3873 = vpop.f32.mrf.mxu0
      %v3874 = vadd.f32 %v3754, %v3873
      %3875 = vmatmul.bf16.gmra.mxu0 %v3786
      %v3876 = vpop.f32.mrf.mxu0
      %v3877 = vadd.f32 %v3754, %v3876
      %v3878 = vpop.f32.mrf.mxu0
      %v3879 = vadd.f32 %v3754, %v3878
      %3880 = vdwg.mxu0
      %3881 = vst.msk [vmem:[#allocation4] sm:$0xff] %vm809, %v3802
      %3882 = vst.msk [vmem:[#allocation4 + $0x8] sm:$0xff] %vm809, %v3804
      %3883 = vst.msk [vmem:[#allocation4 + $0x10] sm:$0xff] %vm809, %v3807
      %3884 = vst.msk [vmem:[#allocation4 + $0x18] sm:$0xff] %vm809, %v3809
      %3885 = vst.msk [vmem:[#allocation4 + $0x20] sm:$0xff] %vm809, %v3812
      %3886 = vst.msk [vmem:[#allocation4 + $0x28] sm:$0xff] %vm809, %v3814
      %3887 = vst.msk [vmem:[#allocation4 + $0x30] sm:$0xff] %vm809, %v3817
      %3888 = vst.msk [vmem:[#allocation4 + $0x38] sm:$0xff] %vm809, %v3819
      %3889 = vst.msk [vmem:[#allocation4 + $0x40] sm:$0xff] %vm809, %v3822
      %3890 = vst.msk [vmem:[#allocation4 + $0x48] sm:$0xff] %vm809, %v3824
      %3891 = vst.msk [vmem:[#allocation4 + $0x50] sm:$0xff] %vm809, %v3827
      %3892 = vst.msk [vmem:[#allocation4 + $0x58] sm:$0xff] %vm809, %v3829
      %3893 = vst.msk [vmem:[#allocation4 + $0x60] sm:$0xff] %vm809, %v3832
      %3894 = vst.msk [vmem:[#allocation4 + $0x68] sm:$0xff] %vm809, %v3834
      %3895 = vst.msk [vmem:[#allocation4 + $0x70] sm:$0xff] %vm809, %v3837
      %3896 = vst.msk [vmem:[#allocation4 + $0x78] sm:$0xff] %vm809, %v3839
      %3897 = vst.msk [vmem:[#allocation4 + $0x80] sm:$0xff] %vm809, %v3842
      %3898 = vst.msk [vmem:[#allocation4 + $0x88] sm:$0xff] %vm809, %v3844
      %3899 = vst.msk [vmem:[#allocation4 + $0x90] sm:$0xff] %vm809, %v3847
      %3900 = vst.msk [vmem:[#allocation4 + $0x98] sm:$0xff] %vm809, %v3849
      %3901 = vst.msk [vmem:[#allocation4 + $0xa0] sm:$0xff] %vm809, %v3852
      %3902 = vst.msk [vmem:[#allocation4 + $0xa8] sm:$0xff] %vm809, %v3854
      %3903 = vst.msk [vmem:[#allocation4 + $0xb0] sm:$0xff] %vm809, %v3857
      %3904 = vst.msk [vmem:[#allocation4 + $0xb8] sm:$0xff] %vm809, %v3859
      %3905 = vst.msk [vmem:[#allocation4 + $0xc0] sm:$0xff] %vm809, %v3862
      %3906 = vst.msk [vmem:[#allocation4 + $0xc8] sm:$0xff] %vm809, %v3864
      %3907 = vst.msk [vmem:[#allocation4 + $0xd0] sm:$0xff] %vm809, %v3867
      %3908 = vst.msk [vmem:[#allocation4 + $0xd8] sm:$0xff] %vm809, %v3869
      %3909 = vst.msk [vmem:[#allocation4 + $0xe0] sm:$0xff] %vm809, %v3872
      %3910 = vst.msk [vmem:[#allocation4 + $0xe8] sm:$0xff] %vm809, %v3874
      %3911 = vst.msk [vmem:[#allocation4 + $0xf0] sm:$0xff] %vm809, %v3877
      %3912 = vst.msk [vmem:[#allocation4 + $0xf8] sm:$0xff] %vm809, %v3879
      %v3913 = vld [vmem:[#allocation3] sm:$0xf]
      %v3914 = vld [vmem:[#allocation3 + $0x4] sm:$0xf]
      %v3915 = vld [vmem:[#allocation3 + $0x8] sm:$0x1]
      %v3916 = vld [vmem:[#allocation3 + $0xc] sm:$0xf]
      %v3917 = vld [vmem:[#allocation3 + $0x10] sm:$0xf]
      %v3918 = vld [vmem:[#allocation3 + $0x14] sm:$0x1]
      %v3919 = vld [vmem:[#allocation3 + $0x18] sm:$0xf]
      %v3920 = vld [vmem:[#allocation3 + $0x1c] sm:$0xf]
      %v3921 = vld [vmem:[#allocation3 + $0x20] sm:$0x1]
      %v3922 = vld [vmem:[#allocation3 + $0x24] sm:$0xf]
      %v3923 = vld [vmem:[#allocation3 + $0x28] sm:$0xf]
      %v3924 = vld [vmem:[#allocation3 + $0x2c] sm:$0x1]
      %v3925 = vld [vmem:[#allocation3 + $0x30] sm:$0xf]
      %v3926 = vld [vmem:[#allocation3 + $0x34] sm:$0xf]
      %v3927 = vld [vmem:[#allocation3 + $0x38] sm:$0x1]
      %v3928 = vld [vmem:[#allocation3 + $0x3c] sm:$0xf]
      %v3929 = vld [vmem:[#allocation3 + $0x40] sm:$0xf]
      %v3930 = vld [vmem:[#allocation3 + $0x44] sm:$0x1]
      %v3931 = vld [vmem:[#allocation3 + $0x48] sm:$0xf]
      %v3932 = vld [vmem:[#allocation3 + $0x4c] sm:$0xf]
      %v3933 = vld [vmem:[#allocation3 + $0x50] sm:$0x1]
      %v3934 = vld [vmem:[#allocation3 + $0x54] sm:$0xf]
      %v3935 = vld [vmem:[#allocation3 + $0x58] sm:$0xf]
      %v3936 = vld [vmem:[#allocation3 + $0x5c] sm:$0x1]
      %v3937 = vld [vmem:[#allocation3 + $0x60] sm:$0xf]
      %v3938 = vld [vmem:[#allocation3 + $0x64] sm:$0xf]
      %v3939 = vld [vmem:[#allocation3 + $0x68] sm:$0x1]
      %v3940 = vld [vmem:[#allocation3 + $0x6c] sm:$0xf]
      %v3941 = vld [vmem:[#allocation3 + $0x70] sm:$0xf]
      %v3942 = vld [vmem:[#allocation3 + $0x74] sm:$0x1]
      %v3943 = vld [vmem:[#allocation3 + $0x78] sm:$0xf]
      %v3944 = vld [vmem:[#allocation3 + $0x7c] sm:$0xf]
      %v3945 = vld [vmem:[#allocation3 + $0x80] sm:$0x1]
      %v3946 = vld [vmem:[#allocation3 + $0x84] sm:$0xf]
      %v3947 = vld [vmem:[#allocation3 + $0x88] sm:$0xf]
      %v3948 = vld [vmem:[#allocation3 + $0x8c] sm:$0x1]
      %v3949 = vld [vmem:[#allocation3 + $0x90] sm:$0xf]
      %v3950 = vld [vmem:[#allocation3 + $0x94] sm:$0xf]
      %v3951 = vld [vmem:[#allocation3 + $0x98] sm:$0x1]
      %v3952 = vld [vmem:[#allocation3 + $0x9c] sm:$0xf]
      %v3953 = vld [vmem:[#allocation3 + $0xa0] sm:$0xf]
      %v3954 = vld [vmem:[#allocation3 + $0xa4] sm:$0x1]
      %v3955 = vld [vmem:[#allocation3 + $0xa8] sm:$0xf]
      %v3956 = vld [vmem:[#allocation3 + $0xac] sm:$0xf]
      %v3957 = vld [vmem:[#allocation3 + $0xb0] sm:$0x1]
      %v3958 = vld [vmem:[#allocation3 + $0xb4] sm:$0xf]
      %v3959 = vld [vmem:[#allocation3 + $0xb8] sm:$0xf]
      %v3960 = vld [vmem:[#allocation3 + $0xbc] sm:$0x1]
      %v3993 = vunpack.c.l.b16 %v3913
      %v3994 = vunpack.c.l.b16 %v3914
      %v3995 = vunpack.c.l.b16 %v3916
      %v3996 = vunpack.c.l.b16 %v3917
      %v3997 = vunpack.c.l.b16 %v3919
      %v3998 = vunpack.c.l.b16 %v3920
      %v3999 = vunpack.c.l.b16 %v3922
      %v4000 = vunpack.c.l.b16 %v3923
      %v4001 = vunpack.c.l.b16 %v3925
      %v4002 = vunpack.c.l.b16 %v3926
      %v4003 = vunpack.c.l.b16 %v3928
      %v4004 = vunpack.c.l.b16 %v3929
      %v4005 = vunpack.c.l.b16 %v3931
      %v4006 = vunpack.c.l.b16 %v3932
      %v4007 = vunpack.c.l.b16 %v3934
      %v4008 = vunpack.c.l.b16 %v3935
      %v4009 = vunpack.c.l.b16 %v3937
      %v4010 = vunpack.c.l.b16 %v3938
      %v4011 = vunpack.c.l.b16 %v3940
      %v4012 = vunpack.c.l.b16 %v3941
      %v4013 = vunpack.c.l.b16 %v3943
      %v4014 = vunpack.c.l.b16 %v3944
      %v4015 = vunpack.c.l.b16 %v3946
      %v4016 = vunpack.c.l.b16 %v3947
      %v4017 = vunpack.c.l.b16 %v3949
      %v4018 = vunpack.c.l.b16 %v3950
      %v4019 = vunpack.c.l.b16 %v3952
      %v4020 = vunpack.c.l.b16 %v3953
      %v4021 = vunpack.c.l.b16 %v3955
      %v4022 = vunpack.c.l.b16 %v3956
      %v4023 = vunpack.c.l.b16 %v3958
      %v4024 = vunpack.c.l.b16 %v3959
      %v4025 = vpack.c.b16 %v3994, %v3993
      %v4026 = vpack.c.b16 %v3996, %v3995
      %v4027 = vpack.c.b16 %v3998, %v3997
      %v4028 = vpack.c.b16 %v4000, %v3999
      %v4029 = vpack.c.b16 %v4002, %v4001
      %v4030 = vpack.c.b16 %v4004, %v4003
      %v4031 = vpack.c.b16 %v4006, %v4005
      %v4032 = vpack.c.b16 %v4008, %v4007
      %v4033 = vpack.c.b16 %v4010, %v4009
      %v4034 = vpack.c.b16 %v4012, %v4011
      %v4035 = vpack.c.b16 %v4014, %v4013
      %v4036 = vpack.c.b16 %v4016, %v4015
      %v4037 = vpack.c.b16 %v4018, %v4017
      %v4038 = vpack.c.b16 %v4020, %v4019
      %v4039 = vpack.c.b16 %v4022, %v4021
      %v4040 = vpack.c.b16 %v4024, %v4023
      %v4057 = vunpack.c.l.b16 %v3915
      %v4058 = vunpack.c.l.b16 %v3918
      %v4059 = vunpack.c.l.b16 %v3921
      %v4060 = vunpack.c.l.b16 %v3924
      %v4061 = vunpack.c.l.b16 %v3927
      %v4062 = vunpack.c.l.b16 %v3930
      %v4063 = vunpack.c.l.b16 %v3933
      %v4064 = vunpack.c.l.b16 %v3936
      %v4065 = vunpack.c.l.b16 %v3939
      %v4066 = vunpack.c.l.b16 %v3942
      %v4067 = vunpack.c.l.b16 %v3945
      %v4068 = vunpack.c.l.b16 %v3948
      %v4069 = vunpack.c.l.b16 %v3951
      %v4070 = vunpack.c.l.b16 %v3954
      %v4071 = vunpack.c.l.b16 %v3957
      %v4072 = vunpack.c.l.b16 %v3960
      %v4073 = vpack.c.b16 %v4057, %v4057
      %v4074 = vpack.c.b16 %v4058, %v4058
      %v4075 = vpack.c.b16 %v4059, %v4059
      %v4076 = vpack.c.b16 %v4060, %v4060
      %v4077 = vpack.c.b16 %v4061, %v4061
      %v4078 = vpack.c.b16 %v4062, %v4062
      %v4079 = vpack.c.b16 %v4063, %v4063
      %v4080 = vpack.c.b16 %v4064, %v4064
      %v4081 = vpack.c.b16 %v4065, %v4065
      %v4082 = vpack.c.b16 %v4066, %v4066
      %v4083 = vpack.c.b16 %v4067, %v4067
      %v4084 = vpack.c.b16 %v4068, %v4068
      %v4085 = vpack.c.b16 %v4069, %v4069
      %v4086 = vpack.c.b16 %v4070, %v4070
      %v4087 = vpack.c.b16 %v4071, %v4071
      %v4088 = vpack.c.b16 %v4072, %v4072
      %v4090 = vshrl.u32 %v4025, 16
      %v4092 = vshll.u32 %v4025, 16
      %v4094 = vrot.slane %v4092, 1
      %v4095 = vor.u32 %v4090, %v4094
      %v4097 = vshll.u32 %v4073, 16
      %v4099 = vrot.slane %v4097, 1
      %v4100 = vsel %vm1018, %v4095, %v4099
      %v4102 = vshrl.u32 %v4026, 16
      %v4104 = vshll.u32 %v4026, 16
      %v4106 = vrot.slane %v4104, 1
      %v4107 = vor.u32 %v4102, %v4106
      %v4109 = vshll.u32 %v4074, 16
      %v4111 = vrot.slane %v4109, 1
      %v4112 = vsel %vm1018, %v4107, %v4111
      %v4114 = vshrl.u32 %v4027, 16
      %v4116 = vshll.u32 %v4027, 16
      %v4118 = vrot.slane %v4116, 1
      %v4119 = vor.u32 %v4114, %v4118
      %v4121 = vshll.u32 %v4075, 16
      %v4123 = vrot.slane %v4121, 1
      %v4124 = vsel %vm1018, %v4119, %v4123
      %v4126 = vshrl.u32 %v4028, 16
      %v4128 = vshll.u32 %v4028, 16
      %v4130 = vrot.slane %v4128, 1
      %v4131 = vor.u32 %v4126, %v4130
      %v4133 = vshll.u32 %v4076, 16
      %v4135 = vrot.slane %v4133, 1
      %v4136 = vsel %vm1018, %v4131, %v4135
      %v4138 = vshrl.u32 %v4029, 16
      %v4140 = vshll.u32 %v4029, 16
      %v4142 = vrot.slane %v4140, 1
      %v4143 = vor.u32 %v4138, %v4142
      %v4145 = vshll.u32 %v4077, 16
      %v4147 = vrot.slane %v4145, 1
      %v4148 = vsel %vm1018, %v4143, %v4147
      %v4150 = vshrl.u32 %v4030, 16
      %v4152 = vshll.u32 %v4030, 16
      %v4154 = vrot.slane %v4152, 1
      %v4155 = vor.u32 %v4150, %v4154
      %v4157 = vshll.u32 %v4078, 16
      %v4159 = vrot.slane %v4157, 1
      %v4160 = vsel %vm1018, %v4155, %v4159
      %v4162 = vshrl.u32 %v4031, 16
      %v4164 = vshll.u32 %v4031, 16
      %v4166 = vrot.slane %v4164, 1
      %v4167 = vor.u32 %v4162, %v4166
      %v4169 = vshll.u32 %v4079, 16
      %v4171 = vrot.slane %v4169, 1
      %v4172 = vsel %vm1018, %v4167, %v4171
      %v4174 = vshrl.u32 %v4032, 16
      %v4176 = vshll.u32 %v4032, 16
      %v4178 = vrot.slane %v4176, 1
      %v4179 = vor.u32 %v4174, %v4178
      %v4181 = vshll.u32 %v4080, 16
      %v4183 = vrot.slane %v4181, 1
      %v4184 = vsel %vm1018, %v4179, %v4183
      %v4186 = vshrl.u32 %v4033, 16
      %v4188 = vshll.u32 %v4033, 16
      %v4190 = vrot.slane %v4188, 1
      %v4191 = vor.u32 %v4186, %v4190
      %v4193 = vshll.u32 %v4081, 16
      %v4195 = vrot.slane %v4193, 1
      %v4196 = vsel %vm1018, %v4191, %v4195
      %v4198 = vshrl.u32 %v4034, 16
      %v4200 = vshll.u32 %v4034, 16
      %v4202 = vrot.slane %v4200, 1
      %v4203 = vor.u32 %v4198, %v4202
      %v4205 = vshll.u32 %v4082, 16
      %v4207 = vrot.slane %v4205, 1
      %v4208 = vsel %vm1018, %v4203, %v4207
      %v4210 = vshrl.u32 %v4035, 16
      %v4212 = vshll.u32 %v4035, 16
      %v4214 = vrot.slane %v4212, 1
      %v4215 = vor.u32 %v4210, %v4214
      %v4217 = vshll.u32 %v4083, 16
      %v4219 = vrot.slane %v4217, 1
      %v4220 = vsel %vm1018, %v4215, %v4219
      %v4222 = vshrl.u32 %v4036, 16
      %v4224 = vshll.u32 %v4036, 16
      %v4226 = vrot.slane %v4224, 1
      %v4227 = vor.u32 %v4222, %v4226
      %v4229 = vshll.u32 %v4084, 16
      %v4231 = vrot.slane %v4229, 1
      %v4232 = vsel %vm1018, %v4227, %v4231
      %v4234 = vshrl.u32 %v4037, 16
      %v4236 = vshll.u32 %v4037, 16
      %v4238 = vrot.slane %v4236, 1
      %v4239 = vor.u32 %v4234, %v4238
      %v4241 = vshll.u32 %v4085, 16
      %v4243 = vrot.slane %v4241, 1
      %v4244 = vsel %vm1018, %v4239, %v4243
      %v4246 = vshrl.u32 %v4038, 16
      %v4248 = vshll.u32 %v4038, 16
      %v4250 = vrot.slane %v4248, 1
      %v4251 = vor.u32 %v4246, %v4250
      %v4253 = vshll.u32 %v4086, 16
      %v4255 = vrot.slane %v4253, 1
      %v4256 = vsel %vm1018, %v4251, %v4255
      %v4258 = vshrl.u32 %v4039, 16
      %v4260 = vshll.u32 %v4039, 16
      %v4262 = vrot.slane %v4260, 1
      %v4263 = vor.u32 %v4258, %v4262
      %v4265 = vshll.u32 %v4087, 16
      %v4267 = vrot.slane %v4265, 1
      %v4268 = vsel %vm1018, %v4263, %v4267
      %v4270 = vshrl.u32 %v4040, 16
      %v4272 = vshll.u32 %v4040, 16
      %v4274 = vrot.slane %v4272, 1
      %v4275 = vor.u32 %v4270, %v4274
      %v4277 = vshll.u32 %v4088, 16
      %v4279 = vrot.slane %v4277, 1
      %v4280 = vsel %vm1018, %v4275, %v4279
      %4281 = vrot.lane.b32.xlu0 %v4100, 8
      %v4282 = vpop.permute.xlu0 %4281
      %4283 = vrot.lane.b32.xlu0 %v4112, 8
      %v4284 = vpop.permute.xlu0 %4283
      %4285 = vrot.lane.b32.xlu0 %v4124, 8
      %v4286 = vpop.permute.xlu0 %4285
      %4287 = vrot.lane.b32.xlu0 %v4136, 8
      %v4288 = vpop.permute.xlu0 %4287
      %4289 = vrot.lane.b32.xlu0 %v4148, 8
      %v4290 = vpop.permute.xlu0 %4289
      %4291 = vrot.lane.b32.xlu0 %v4160, 8
      %v4292 = vpop.permute.xlu0 %4291
      %4293 = vrot.lane.b32.xlu0 %v4172, 8
      %v4294 = vpop.permute.xlu0 %4293
      %4295 = vrot.lane.b32.xlu0 %v4184, 8
      %v4296 = vpop.permute.xlu0 %4295
      %4297 = vrot.lane.b32.xlu0 %v4196, 8
      %v4298 = vpop.permute.xlu0 %4297
      %4299 = vrot.lane.b32.xlu0 %v4208, 8
      %v4300 = vpop.permute.xlu0 %4299
      %4301 = vrot.lane.b32.xlu0 %v4220, 8
      %v4302 = vpop.permute.xlu0 %4301
      %4303 = vrot.lane.b32.xlu0 %v4232, 8
      %v4304 = vpop.permute.xlu0 %4303
      %4305 = vrot.lane.b32.xlu0 %v4244, 8
      %v4306 = vpop.permute.xlu0 %4305
      %4307 = vrot.lane.b32.xlu0 %v4256, 8
      %v4308 = vpop.permute.xlu0 %4307
      %4309 = vrot.lane.b32.xlu0 %v4268, 8
      %v4310 = vpop.permute.xlu0 %4309
      %4311 = vrot.lane.b32.xlu0 %v4280, 8
      %v4312 = vpop.permute.xlu0 %4311
      %v4313 = vrot.slane %v4025, 1
      %v4314 = vrot.slane %v4073, 1
      %v4315 = vsel %vm1243, %v4313, %v4314
      %v4316 = vrot.slane %v4026, 1
      %v4317 = vrot.slane %v4074, 1
      %v4318 = vsel %vm1243, %v4316, %v4317
      %v4319 = vrot.slane %v4027, 1
      %v4320 = vrot.slane %v4075, 1
      %v4321 = vsel %vm1243, %v4319, %v4320
      %v4322 = vrot.slane %v4028, 1
      %v4323 = vrot.slane %v4076, 1
      %v4324 = vsel %vm1243, %v4322, %v4323
      %v4325 = vrot.slane %v4029, 1
      %v4326 = vrot.slane %v4077, 1
      %v4327 = vsel %vm1243, %v4325, %v4326
      %v4328 = vrot.slane %v4030, 1
      %v4329 = vrot.slane %v4078, 1
      %v4330 = vsel %vm1243, %v4328, %v4329
      %v4331 = vrot.slane %v4031, 1
      %v4332 = vrot.slane %v4079, 1
      %v4333 = vsel %vm1243, %v4331, %v4332
      %v4334 = vrot.slane %v4032, 1
      %v4335 = vrot.slane %v4080, 1
      %v4336 = vsel %vm1243, %v4334, %v4335
      %v4337 = vrot.slane %v4033, 1
      %v4338 = vrot.slane %v4081, 1
      %v4339 = vsel %vm1243, %v4337, %v4338
      %v4340 = vrot.slane %v4034, 1
      %v4341 = vrot.slane %v4082, 1
      %v4342 = vsel %vm1243, %v4340, %v4341
      %v4343 = vrot.slane %v4035, 1
      %v4344 = vrot.slane %v4083, 1
      %v4345 = vsel %vm1243, %v4343, %v4344
      %v4346 = vrot.slane %v4036, 1
      %v4347 = vrot.slane %v4084, 1
      %v4348 = vsel %vm1243, %v4346, %v4347
      %v4349 = vrot.slane %v4037, 1
      %v4350 = vrot.slane %v4085, 1
      %v4351 = vsel %vm1243, %v4349, %v4350
      %v4352 = vrot.slane %v4038, 1
      %v4353 = vrot.slane %v4086, 1
      %v4354 = vsel %vm1243, %v4352, %v4353
      %v4355 = vrot.slane %v4039, 1
      %v4356 = vrot.slane %v4087, 1
      %v4357 = vsel %vm1243, %v4355, %v4356
      %v4358 = vrot.slane %v4040, 1
      %v4359 = vrot.slane %v4088, 1
      %v4360 = vsel %vm1243, %v4358, %v4359
      %4361 = vrot.lane.b32.xlu0 %v4315, 16
      %v4362 = vpop.permute.xlu0 %4361
      %4363 = vrot.lane.b32.xlu0 %v4318, 16
      %v4364 = vpop.permute.xlu0 %4363
      %4365 = vrot.lane.b32.xlu0 %v4321, 16
      %v4366 = vpop.permute.xlu0 %4365
      %4367 = vrot.lane.b32.xlu0 %v4324, 16
      %v4368 = vpop.permute.xlu0 %4367
      %4369 = vrot.lane.b32.xlu0 %v4327, 16
      %v4370 = vpop.permute.xlu0 %4369
      %4371 = vrot.lane.b32.xlu0 %v4330, 16
      %v4372 = vpop.permute.xlu0 %4371
      %4373 = vrot.lane.b32.xlu0 %v4333, 16
      %v4374 = vpop.permute.xlu0 %4373
      %4375 = vrot.lane.b32.xlu0 %v4336, 16
      %v4376 = vpop.permute.xlu0 %4375
      %4377 = vrot.lane.b32.xlu0 %v4339, 16
      %v4378 = vpop.permute.xlu0 %4377
      %4379 = vrot.lane.b32.xlu0 %v4342, 16
      %v4380 = vpop.permute.xlu0 %4379
      %4381 = vrot.lane.b32.xlu0 %v4345, 16
      %v4382 = vpop.permute.xlu0 %4381
      %4383 = vrot.lane.b32.xlu0 %v4348, 16
      %v4384 = vpop.permute.xlu0 %4383
      %4385 = vrot.lane.b32.xlu0 %v4351, 16
      %v4386 = vpop.permute.xlu0 %4385
      %4387 = vrot.lane.b32.xlu0 %v4354, 16
      %v4388 = vpop.permute.xlu0 %4387
      %4389 = vrot.lane.b32.xlu0 %v4357, 16
      %v4390 = vpop.permute.xlu0 %4389
      %4391 = vrot.lane.b32.xlu0 %v4360, 16
      %v4392 = vpop.permute.xlu0 %4391
      %v4394 = vsel %vm809, %v4025, %v4282
      %v4396 = vsel %vm809, %v4026, %v4284
      %v4398 = vsel %vm809, %v4027, %v4286
      %v4400 = vsel %vm809, %v4028, %v4288
      %v4402 = vsel %vm809, %v4029, %v4290
      %v4404 = vsel %vm809, %v4030, %v4292
      %v4406 = vsel %vm809, %v4031, %v4294
      %v4408 = vsel %vm809, %v4032, %v4296
      %v4410 = vsel %vm809, %v4033, %v4298
      %v4412 = vsel %vm809, %v4034, %v4300
      %v4414 = vsel %vm809, %v4035, %v4302
      %v4416 = vsel %vm809, %v4036, %v4304
      %v4418 = vsel %vm809, %v4037, %v4306
      %v4420 = vsel %vm809, %v4038, %v4308
      %v4422 = vsel %vm809, %v4039, %v4310
      %v4424 = vsel %vm809, %v4040, %v4312
      %vm4425 = vcmask 130048
      %v4427 = vsel %vm4425, %v4394, %v4362
      %v4429 = vsel %vm4425, %v4396, %v4364
      %v4431 = vsel %vm4425, %v4398, %v4366
      %v4433 = vsel %vm4425, %v4400, %v4368
      %v4435 = vsel %vm4425, %v4402, %v4370
      %v4437 = vsel %vm4425, %v4404, %v4372
      %v4439 = vsel %vm4425, %v4406, %v4374
      %v4441 = vsel %vm4425, %v4408, %v4376
      %v4443 = vsel %vm4425, %v4410, %v4378
      %v4445 = vsel %vm4425, %v4412, %v4380
      %v4447 = vsel %vm4425, %v4414, %v4382
      %v4449 = vsel %vm4425, %v4416, %v4384
      %v4451 = vsel %vm4425, %v4418, %v4386
      %v4453 = vsel %vm4425, %v4420, %v4388
      %v4455 = vsel %vm4425, %v4422, %v4390
      %v4457 = vsel %vm4425, %v4424, %v4392
      %v4458 = vld [vmem:[#allocation4] sm:$0xff]
      %v4459 = vld [vmem:[#allocation4 + $0x8] sm:$0xff]
      %v4460 = vld [vmem:[#allocation4 + $0x10] sm:$0xff]
      %v4461 = vld [vmem:[#allocation4 + $0x18] sm:$0xff]
      %v4462 = vld [vmem:[#allocation4 + $0x20] sm:$0xff]
      %v4463 = vld [vmem:[#allocation4 + $0x28] sm:$0xff]
      %v4464 = vld [vmem:[#allocation4 + $0x30] sm:$0xff]
      %v4465 = vld [vmem:[#allocation4 + $0x38] sm:$0xff]
      %v4466 = vld [vmem:[#allocation4 + $0x40] sm:$0xff]
      %v4467 = vld [vmem:[#allocation4 + $0x48] sm:$0xff]
      %v4468 = vld [vmem:[#allocation4 + $0x50] sm:$0xff]
      %v4469 = vld [vmem:[#allocation4 + $0x58] sm:$0xff]
      %v4470 = vld [vmem:[#allocation4 + $0x60] sm:$0xff]
      %v4471 = vld [vmem:[#allocation4 + $0x68] sm:$0xff]
      %v4472 = vld [vmem:[#allocation4 + $0x70] sm:$0xff]
      %v4473 = vld [vmem:[#allocation4 + $0x78] sm:$0xff]
      %v4474 = vld [vmem:[#allocation4 + $0x80] sm:$0xff]
      %v4475 = vld [vmem:[#allocation4 + $0x88] sm:$0xff]
      %v4476 = vld [vmem:[#allocation4 + $0x90] sm:$0xff]
      %v4477 = vld [vmem:[#allocation4 + $0x98] sm:$0xff]
      %v4478 = vld [vmem:[#allocation4 + $0xa0] sm:$0xff]
      %v4479 = vld [vmem:[#allocation4 + $0xa8] sm:$0xff]
      %v4480 = vld [vmem:[#allocation4 + $0xb0] sm:$0xff]
      %v4481 = vld [vmem:[#allocation4 + $0xb8] sm:$0xff]
      %v4482 = vld [vmem:[#allocation4 + $0xc0] sm:$0xff]
      %v4483 = vld [vmem:[#allocation4 + $0xc8] sm:$0xff]
      %v4484 = vld [vmem:[#allocation4 + $0xd0] sm:$0xff]
      %v4485 = vld [vmem:[#allocation4 + $0xd8] sm:$0xff]
      %v4486 = vld [vmem:[#allocation4 + $0xe0] sm:$0xff]
      %v4487 = vld [vmem:[#allocation4 + $0xe8] sm:$0xff]
      %v4488 = vld [vmem:[#allocation4 + $0xf0] sm:$0xff]
      %v4489 = vld [vmem:[#allocation4 + $0xf8] sm:$0xff]
      %v4490 = vld [vmem:[%s3] sm:$0xf]
      %v4491 = vld [vmem:[%s3 + $0x4] sm:$0xf]
      %v4492 = vld [vmem:[%s3 + $0x8] sm:$0xf]
      %v4496 = vunpack.c.l.b16 %v4490
      %v4497 = vunpack.c.l.b16 %v4491
      %v4498 = vunpack.c.l.b16 %v4492
      %v4499 = vpack.c.b16 %v4497, %v4496
      %v4500 = vpack.c.b16 %v4498, %v4498
      %vm4502 = vcmask 195584
      %v4503 = vsel %vm4502, %v4427, 0
      %v4505 = vsel %vm4502, %v4429, 0
      %v4507 = vsel %vm4502, %v4431, 0
      %v4509 = vsel %vm4502, %v4433, 0
      %v4511 = vsel %vm4502, %v4435, 0
      %v4513 = vsel %vm4502, %v4437, 0
      %v4515 = vsel %vm4502, %v4439, 0
      %v4517 = vsel %vm4502, %v4441, 0
      %v4519 = vsel %vm4502, %v4443, 0
      %v4521 = vsel %vm4502, %v4445, 0
      %v4523 = vsel %vm4502, %v4447, 0
      %v4525 = vsel %vm4502, %v4449, 0
      %v4527 = vsel %vm4502, %v4451, 0
      %v4529 = vsel %vm4502, %v4453, 0
      %v4531 = vsel %vm4502, %v4455, 0
      %v4533 = vsel %vm4502, %v4457, 0
      %vm4535 = vcmask 1043456
      %v4537 = vsel %vm4535, %v4500, 0
      %4539 = vmatpush.bf16.msra.mxu0 0
      %4540 = vmatpush.bf16.msra.mxu0 0
      %4541 = vmatpush.bf16.msra.mxu0 0
      %4542 = vmatpush.bf16.msra.mxu0 0
      %4543 = vmatpush.bf16.msra.mxu0 0
      %4544 = vmatpush.bf16.msra.mxu0 0
      %4545 = vmatpush.bf16.msra.mxu0 %v4537
      %4546 = vmatpush.bf16.msra.mxu0 %v4499
      %4547 = vmatmul.bf16.gmra.mxu0 %v4503
      %v4548 = vpop.f32.mrf.mxu0
      %v4549 = vadd.f32 0.0, %v4548
      %v4550 = vpop.f32.mrf.mxu0
      %v4551 = vadd.f32 0.0, %v4550
      %4552 = vmatmul.bf16.gmra.mxu0 %v4505
      %v4553 = vpop.f32.mrf.mxu0
      %v4554 = vadd.f32 0.0, %v4553
      %v4555 = vpop.f32.mrf.mxu0
      %v4556 = vadd.f32 0.0, %v4555
      %4557 = vmatmul.bf16.gmra.mxu0 %v4507
      %v4558 = vpop.f32.mrf.mxu0
      %v4559 = vadd.f32 0.0, %v4558
      %v4560 = vpop.f32.mrf.mxu0
      %v4561 = vadd.f32 0.0, %v4560
      %4562 = vmatmul.bf16.gmra.mxu0 %v4509
      %v4563 = vpop.f32.mrf.mxu0
      %v4564 = vadd.f32 0.0, %v4563
      %v4565 = vpop.f32.mrf.mxu0
      %v4566 = vadd.f32 0.0, %v4565
      %4567 = vmatmul.bf16.gmra.mxu0 %v4511
      %v4568 = vpop.f32.mrf.mxu0
      %v4569 = vadd.f32 0.0, %v4568
      %v4570 = vpop.f32.mrf.mxu0
      %v4571 = vadd.f32 0.0, %v4570
      %4572 = vmatmul.bf16.gmra.mxu0 %v4513
      %v4573 = vpop.f32.mrf.mxu0
      %v4574 = vadd.f32 0.0, %v4573
      %v4575 = vpop.f32.mrf.mxu0
      %v4576 = vadd.f32 0.0, %v4575
      %4577 = vmatmul.bf16.gmra.mxu0 %v4515
      %v4578 = vpop.f32.mrf.mxu0
      %v4579 = vadd.f32 0.0, %v4578
      %v4580 = vpop.f32.mrf.mxu0
      %v4581 = vadd.f32 0.0, %v4580
      %4582 = vmatmul.bf16.gmra.mxu0 %v4517
      %v4583 = vpop.f32.mrf.mxu0
      %v4584 = vadd.f32 0.0, %v4583
      %v4585 = vpop.f32.mrf.mxu0
      %v4586 = vadd.f32 0.0, %v4585
      %4587 = vmatmul.bf16.gmra.mxu0 %v4519
      %v4588 = vpop.f32.mrf.mxu0
      %v4589 = vadd.f32 0.0, %v4588
      %v4590 = vpop.f32.mrf.mxu0
      %v4591 = vadd.f32 0.0, %v4590
      %4592 = vmatmul.bf16.gmra.mxu0 %v4521
      %v4593 = vpop.f32.mrf.mxu0
      %v4594 = vadd.f32 0.0, %v4593
      %v4595 = vpop.f32.mrf.mxu0
      %v4596 = vadd.f32 0.0, %v4595
      %4597 = vmatmul.bf16.gmra.mxu0 %v4523
      %v4598 = vpop.f32.mrf.mxu0
      %v4599 = vadd.f32 0.0, %v4598
      %v4600 = vpop.f32.mrf.mxu0
      %v4601 = vadd.f32 0.0, %v4600
      %4602 = vmatmul.bf16.gmra.mxu0 %v4525
      %v4603 = vpop.f32.mrf.mxu0
      %v4604 = vadd.f32 0.0, %v4603
      %v4605 = vpop.f32.mrf.mxu0
      %v4606 = vadd.f32 0.0, %v4605
      %4607 = vmatmul.bf16.gmra.mxu0 %v4527
      %v4608 = vpop.f32.mrf.mxu0
      %v4609 = vadd.f32 0.0, %v4608
      %v4610 = vpop.f32.mrf.mxu0
      %v4611 = vadd.f32 0.0, %v4610
      %4612 = vmatmul.bf16.gmra.mxu0 %v4529
      %v4613 = vpop.f32.mrf.mxu0
      %v4614 = vadd.f32 0.0, %v4613
      %v4615 = vpop.f32.mrf.mxu0
      %v4616 = vadd.f32 0.0, %v4615
      %4617 = vmatmul.bf16.gmra.mxu0 %v4531
      %v4618 = vpop.f32.mrf.mxu0
      %v4619 = vadd.f32 0.0, %v4618
      %v4620 = vpop.f32.mrf.mxu0
      %v4621 = vadd.f32 0.0, %v4620
      %4622 = vmatmul.bf16.gmra.mxu0 %v4533
      %v4623 = vpop.f32.mrf.mxu0
      %v4624 = vadd.f32 0.0, %v4623
      %v4625 = vpop.f32.mrf.mxu0
      %v4626 = vadd.f32 0.0, %v4625
      %4627 = vdwg.mxu0
      %v4628 = vadd.f32 %v4458, %v4549
      %v4629 = vadd.f32 %v4459, %v4551
      %v4630 = vadd.f32 %v4460, %v4554
      %v4631 = vadd.f32 %v4461, %v4556
      %v4632 = vadd.f32 %v4462, %v4559
      %v4633 = vadd.f32 %v4463, %v4561
      %v4634 = vadd.f32 %v4464, %v4564
      %v4635 = vadd.f32 %v4465, %v4566
      %v4636 = vadd.f32 %v4466, %v4569
      %v4637 = vadd.f32 %v4467, %v4571
      %v4638 = vadd.f32 %v4468, %v4574
      %v4639 = vadd.f32 %v4469, %v4576
      %v4640 = vadd.f32 %v4470, %v4579
      %v4641 = vadd.f32 %v4471, %v4581
      %v4642 = vadd.f32 %v4472, %v4584
      %v4643 = vadd.f32 %v4473, %v4586
      %v4644 = vadd.f32 %v4474, %v4589
      %v4645 = vadd.f32 %v4475, %v4591
      %v4646 = vadd.f32 %v4476, %v4594
      %v4647 = vadd.f32 %v4477, %v4596
      %v4648 = vadd.f32 %v4478, %v4599
      %v4649 = vadd.f32 %v4479, %v4601
      %v4650 = vadd.f32 %v4480, %v4604
      %v4651 = vadd.f32 %v4481, %v4606
      %v4652 = vadd.f32 %v4482, %v4609
      %v4653 = vadd.f32 %v4483, %v4611
      %v4654 = vadd.f32 %v4484, %v4614
      %v4655 = vadd.f32 %v4485, %v4616
      %v4656 = vadd.f32 %v4486, %v4619
      %v4657 = vadd.f32 %v4487, %v4621
      %v4658 = vadd.f32 %v4488, %v4624
      %v4659 = vadd.f32 %v4489, %v4626
      %4660 = vst.msk [vmem:[#allocation4] sm:$0xff] %vm809, %v4628
      %4661 = vst.msk [vmem:[#allocation4 + $0x8] sm:$0xff] %vm809, %v4629
      %4662 = vst.msk [vmem:[#allocation4 + $0x10] sm:$0xff] %vm809, %v4630
      %4663 = vst.msk [vmem:[#allocation4 + $0x18] sm:$0xff] %vm809, %v4631
      %4664 = vst.msk [vmem:[#allocation4 + $0x20] sm:$0xff] %vm809, %v4632
      %4665 = vst.msk [vmem:[#allocation4 + $0x28] sm:$0xff] %vm809, %v4633
      %4666 = vst.msk [vmem:[#allocation4 + $0x30] sm:$0xff] %vm809, %v4634
      %4667 = vst.msk [vmem:[#allocation4 + $0x38] sm:$0xff] %vm809, %v4635
      %4668 = vst.msk [vmem:[#allocation4 + $0x40] sm:$0xff] %vm809, %v4636
      %4669 = vst.msk [vmem:[#allocation4 + $0x48] sm:$0xff] %vm809, %v4637
      %4670 = vst.msk [vmem:[#allocation4 + $0x50] sm:$0xff] %vm809, %v4638
      %4671 = vst.msk [vmem:[#allocation4 + $0x58] sm:$0xff] %vm809, %v4639
      %4672 = vst.msk [vmem:[#allocation4 + $0x60] sm:$0xff] %vm809, %v4640
      %4673 = vst.msk [vmem:[#allocation4 + $0x68] sm:$0xff] %vm809, %v4641
      %4674 = vst.msk [vmem:[#allocation4 + $0x70] sm:$0xff] %vm809, %v4642
      %4675 = vst.msk [vmem:[#allocation4 + $0x78] sm:$0xff] %vm809, %v4643
      %4676 = vst.msk [vmem:[#allocation4 + $0x80] sm:$0xff] %vm809, %v4644
      %4677 = vst.msk [vmem:[#allocation4 + $0x88] sm:$0xff] %vm809, %v4645
      %4678 = vst.msk [vmem:[#allocation4 + $0x90] sm:$0xff] %vm809, %v4646
      %4679 = vst.msk [vmem:[#allocation4 + $0x98] sm:$0xff] %vm809, %v4647
      %4680 = vst.msk [vmem:[#allocation4 + $0xa0] sm:$0xff] %vm809, %v4648
      %4681 = vst.msk [vmem:[#allocation4 + $0xa8] sm:$0xff] %vm809, %v4649
      %4682 = vst.msk [vmem:[#allocation4 + $0xb0] sm:$0xff] %vm809, %v4650
      %4683 = vst.msk [vmem:[#allocation4 + $0xb8] sm:$0xff] %vm809, %v4651
      %4684 = vst.msk [vmem:[#allocation4 + $0xc0] sm:$0xff] %vm809, %v4652
      %4685 = vst.msk [vmem:[#allocation4 + $0xc8] sm:$0xff] %vm809, %v4653
      %4686 = vst.msk [vmem:[#allocation4 + $0xd0] sm:$0xff] %vm809, %v4654
      %4687 = vst.msk [vmem:[#allocation4 + $0xd8] sm:$0xff] %vm809, %v4655
      %4688 = vst.msk [vmem:[#allocation4 + $0xe0] sm:$0xff] %vm809, %v4656
      %4689 = vst.msk [vmem:[#allocation4 + $0xe8] sm:$0xff] %vm809, %v4657
      %4690 = vst.msk [vmem:[#allocation4 + $0xf0] sm:$0xff] %vm809, %v4658
      %4691 = vst.msk [vmem:[#allocation4 + $0xf8] sm:$0xff] %vm809, %v4659
      %v4692 = vld [vmem:[%s3691] sm:$0xf]
      %v4693 = vld [vmem:[%s3691 + $0x4] sm:$0xf]
      %v4694 = vld [vmem:[%s3691 + $0x8] sm:$0x1]
      %v4695 = vld [vmem:[%s3691 + $0xc] sm:$0xf]
      %v4696 = vld [vmem:[%s3691 + $0x10] sm:$0xf]
      %v4697 = vld [vmem:[%s3691 + $0x14] sm:$0x1]
      %v4698 = vld [vmem:[%s3691 + $0x18] sm:$0xf]
      %v4699 = vld [vmem:[%s3691 + $0x1c] sm:$0xf]
      %v4700 = vld [vmem:[%s3691 + $0x20] sm:$0x1]
      %v4701 = vld [vmem:[%s3691 + $0x24] sm:$0xf]
      %v4702 = vld [vmem:[%s3691 + $0x28] sm:$0xf]
      %v4703 = vld [vmem:[%s3691 + $0x2c] sm:$0x1]
      %v4704 = vld [vmem:[%s3691 + $0x30] sm:$0xf]
      %v4705 = vld [vmem:[%s3691 + $0x34] sm:$0xf]
      %v4706 = vld [vmem:[%s3691 + $0x38] sm:$0x1]
      %v4707 = vld [vmem:[%s3691 + $0x3c] sm:$0xf]
      %v4708 = vld [vmem:[%s3691 + $0x40] sm:$0xf]
      %v4709 = vld [vmem:[%s3691 + $0x44] sm:$0x1]
      %v4710 = vld [vmem:[%s3691 + $0x48] sm:$0xf]
      %v4711 = vld [vmem:[%s3691 + $0x4c] sm:$0xf]
      %v4712 = vld [vmem:[%s3691 + $0x50] sm:$0x1]
      %v4713 = vld [vmem:[%s3691 + $0x54] sm:$0xf]
      %v4714 = vld [vmem:[%s3691 + $0x58] sm:$0xf]
      %v4715 = vld [vmem:[%s3691 + $0x5c] sm:$0x1]
      %v4716 = vld [vmem:[%s3691 + $0x60] sm:$0xf]
      %v4717 = vld [vmem:[%s3691 + $0x64] sm:$0xf]
      %v4718 = vld [vmem:[%s3691 + $0x68] sm:$0x1]
      %v4719 = vld [vmem:[%s3691 + $0x6c] sm:$0xf]
      %v4720 = vld [vmem:[%s3691 + $0x70] sm:$0xf]
      %v4721 = vld [vmem:[%s3691 + $0x74] sm:$0x1]
      %v4722 = vld [vmem:[%s3691 + $0x78] sm:$0xf]
      %v4723 = vld [vmem:[%s3691 + $0x7c] sm:$0xf]
      %v4724 = vld [vmem:[%s3691 + $0x80] sm:$0x1]
      %v4725 = vld [vmem:[%s3691 + $0x84] sm:$0xf]
      %v4726 = vld [vmem:[%s3691 + $0x88] sm:$0xf]
      %v4727 = vld [vmem:[%s3691 + $0x8c] sm:$0x1]
      %v4728 = vld [vmem:[%s3691 + $0x90] sm:$0xf]
      %v4729 = vld [vmem:[%s3691 + $0x94] sm:$0xf]
      %v4730 = vld [vmem:[%s3691 + $0x98] sm:$0x1]
      %v4731 = vld [vmem:[%s3691 + $0x9c] sm:$0xf]
      %v4732 = vld [vmem:[%s3691 + $0xa0] sm:$0xf]
      %v4733 = vld [vmem:[%s3691 + $0xa4] sm:$0x1]
      %v4734 = vld [vmem:[%s3691 + $0xa8] sm:$0xf]
      %v4735 = vld [vmem:[%s3691 + $0xac] sm:$0xf]
      %v4736 = vld [vmem:[%s3691 + $0xb0] sm:$0x1]
      %v4737 = vld [vmem:[%s3691 + $0xb4] sm:$0xf]
      %v4738 = vld [vmem:[%s3691 + $0xb8] sm:$0xf]
      %v4739 = vld [vmem:[%s3691 + $0xbc] sm:$0x1]
      %v4772 = vunpack.c.l.b16 %v4692
      %v4773 = vunpack.c.l.b16 %v4693
      %v4774 = vunpack.c.l.b16 %v4695
      %v4775 = vunpack.c.l.b16 %v4696
      %v4776 = vunpack.c.l.b16 %v4698
      %v4777 = vunpack.c.l.b16 %v4699
      %v4778 = vunpack.c.l.b16 %v4701
      %v4779 = vunpack.c.l.b16 %v4702
      %v4780 = vunpack.c.l.b16 %v4704
      %v4781 = vunpack.c.l.b16 %v4705
      %v4782 = vunpack.c.l.b16 %v4707
      %v4783 = vunpack.c.l.b16 %v4708
      %v4784 = vunpack.c.l.b16 %v4710
      %v4785 = vunpack.c.l.b16 %v4711
      %v4786 = vunpack.c.l.b16 %v4713
      %v4787 = vunpack.c.l.b16 %v4714
      %v4788 = vunpack.c.l.b16 %v4716
      %v4789 = vunpack.c.l.b16 %v4717
      %v4790 = vunpack.c.l.b16 %v4719
      %v4791 = vunpack.c.l.b16 %v4720
      %v4792 = vunpack.c.l.b16 %v4722
      %v4793 = vunpack.c.l.b16 %v4723
      %v4794 = vunpack.c.l.b16 %v4725
      %v4795 = vunpack.c.l.b16 %v4726
      %v4796 = vunpack.c.l.b16 %v4728
      %v4797 = vunpack.c.l.b16 %v4729
      %v4798 = vunpack.c.l.b16 %v4731
      %v4799 = vunpack.c.l.b16 %v4732
      %v4800 = vunpack.c.l.b16 %v4734
      %v4801 = vunpack.c.l.b16 %v4735
      %v4802 = vunpack.c.l.b16 %v4737
      %v4803 = vunpack.c.l.b16 %v4738
      %v4804 = vpack.c.b16 %v4773, %v4772
      %v4805 = vpack.c.b16 %v4775, %v4774
      %v4806 = vpack.c.b16 %v4777, %v4776
      %v4807 = vpack.c.b16 %v4779, %v4778
      %v4808 = vpack.c.b16 %v4781, %v4780
      %v4809 = vpack.c.b16 %v4783, %v4782
      %v4810 = vpack.c.b16 %v4785, %v4784
      %v4811 = vpack.c.b16 %v4787, %v4786
      %v4812 = vpack.c.b16 %v4789, %v4788
      %v4813 = vpack.c.b16 %v4791, %v4790
      %v4814 = vpack.c.b16 %v4793, %v4792
      %v4815 = vpack.c.b16 %v4795, %v4794
      %v4816 = vpack.c.b16 %v4797, %v4796
      %v4817 = vpack.c.b16 %v4799, %v4798
      %v4818 = vpack.c.b16 %v4801, %v4800
      %v4819 = vpack.c.b16 %v4803, %v4802
      %v4836 = vunpack.c.l.b16 %v4694
      %v4837 = vunpack.c.l.b16 %v4697
      %v4838 = vunpack.c.l.b16 %v4700
      %v4839 = vunpack.c.l.b16 %v4703
      %v4840 = vunpack.c.l.b16 %v4706
      %v4841 = vunpack.c.l.b16 %v4709
      %v4842 = vunpack.c.l.b16 %v4712
      %v4843 = vunpack.c.l.b16 %v4715
      %v4844 = vunpack.c.l.b16 %v4718
      %v4845 = vunpack.c.l.b16 %v4721
      %v4846 = vunpack.c.l.b16 %v4724
      %v4847 = vunpack.c.l.b16 %v4727
      %v4848 = vunpack.c.l.b16 %v4730
      %v4849 = vunpack.c.l.b16 %v4733
      %v4850 = vunpack.c.l.b16 %v4736
      %v4851 = vunpack.c.l.b16 %v4739
      %v4852 = vpack.c.b16 %v4836, %v4836
      %v4853 = vpack.c.b16 %v4837, %v4837
      %v4854 = vpack.c.b16 %v4838, %v4838
      %v4855 = vpack.c.b16 %v4839, %v4839
      %v4856 = vpack.c.b16 %v4840, %v4840
      %v4857 = vpack.c.b16 %v4841, %v4841
      %v4858 = vpack.c.b16 %v4842, %v4842
      %v4859 = vpack.c.b16 %v4843, %v4843
      %v4860 = vpack.c.b16 %v4844, %v4844
      %v4861 = vpack.c.b16 %v4845, %v4845
      %v4862 = vpack.c.b16 %v4846, %v4846
      %v4863 = vpack.c.b16 %v4847, %v4847
      %v4864 = vpack.c.b16 %v4848, %v4848
      %v4865 = vpack.c.b16 %v4849, %v4849
      %v4866 = vpack.c.b16 %v4850, %v4850
      %v4867 = vpack.c.b16 %v4851, %v4851
      %v4869 = vshrl.u32 %v4804, 16
      %v4871 = vshll.u32 %v4804, 16
      %v4873 = vrot.slane %v4871, 1
      %v4874 = vor.u32 %v4869, %v4873
      %v4876 = vshll.u32 %v4852, 16
      %v4878 = vrot.slane %v4876, 1
      %v4879 = vsel %vm1018, %v4874, %v4878
      %v4881 = vshrl.u32 %v4805, 16
      %v4883 = vshll.u32 %v4805, 16
      %v4885 = vrot.slane %v4883, 1
      %v4886 = vor.u32 %v4881, %v4885
      %v4888 = vshll.u32 %v4853, 16
      %v4890 = vrot.slane %v4888, 1
      %v4891 = vsel %vm1018, %v4886, %v4890
      %v4893 = vshrl.u32 %v4806, 16
      %v4895 = vshll.u32 %v4806, 16
      %v4897 = vrot.slane %v4895, 1
      %v4898 = vor.u32 %v4893, %v4897
      %v4900 = vshll.u32 %v4854, 16
      %v4902 = vrot.slane %v4900, 1
      %v4903 = vsel %vm1018, %v4898, %v4902
      %v4905 = vshrl.u32 %v4807, 16
      %v4907 = vshll.u32 %v4807, 16
      %v4909 = vrot.slane %v4907, 1
      %v4910 = vor.u32 %v4905, %v4909
      %v4912 = vshll.u32 %v4855, 16
      %v4914 = vrot.slane %v4912, 1
      %v4915 = vsel %vm1018, %v4910, %v4914
      %v4917 = vshrl.u32 %v4808, 16
      %v4919 = vshll.u32 %v4808, 16
      %v4921 = vrot.slane %v4919, 1
      %v4922 = vor.u32 %v4917, %v4921
      %v4924 = vshll.u32 %v4856, 16
      %v4926 = vrot.slane %v4924, 1
      %v4927 = vsel %vm1018, %v4922, %v4926
      %v4929 = vshrl.u32 %v4809, 16
      %v4931 = vshll.u32 %v4809, 16
      %v4933 = vrot.slane %v4931, 1
      %v4934 = vor.u32 %v4929, %v4933
      %v4936 = vshll.u32 %v4857, 16
      %v4938 = vrot.slane %v4936, 1
      %v4939 = vsel %vm1018, %v4934, %v4938
      %v4941 = vshrl.u32 %v4810, 16
      %v4943 = vshll.u32 %v4810, 16
      %v4945 = vrot.slane %v4943, 1
      %v4946 = vor.u32 %v4941, %v4945
      %v4948 = vshll.u32 %v4858, 16
      %v4950 = vrot.slane %v4948, 1
      %v4951 = vsel %vm1018, %v4946, %v4950
      %v4953 = vshrl.u32 %v4811, 16
      %v4955 = vshll.u32 %v4811, 16
      %v4957 = vrot.slane %v4955, 1
      %v4958 = vor.u32 %v4953, %v4957
      %v4960 = vshll.u32 %v4859, 16
      %v4962 = vrot.slane %v4960, 1
      %v4963 = vsel %vm1018, %v4958, %v4962
      %v4965 = vshrl.u32 %v4812, 16
      %v4967 = vshll.u32 %v4812, 16
      %v4969 = vrot.slane %v4967, 1
      %v4970 = vor.u32 %v4965, %v4969
      %v4972 = vshll.u32 %v4860, 16
      %v4974 = vrot.slane %v4972, 1
      %v4975 = vsel %vm1018, %v4970, %v4974
      %v4977 = vshrl.u32 %v4813, 16
      %v4979 = vshll.u32 %v4813, 16
      %v4981 = vrot.slane %v4979, 1
      %v4982 = vor.u32 %v4977, %v4981
      %v4984 = vshll.u32 %v4861, 16
      %v4986 = vrot.slane %v4984, 1
      %v4987 = vsel %vm1018, %v4982, %v4986
      %v4989 = vshrl.u32 %v4814, 16
      %v4991 = vshll.u32 %v4814, 16
      %v4993 = vrot.slane %v4991, 1
      %v4994 = vor.u32 %v4989, %v4993
      %v4996 = vshll.u32 %v4862, 16
      %v4998 = vrot.slane %v4996, 1
      %v4999 = vsel %vm1018, %v4994, %v4998
      %v5001 = vshrl.u32 %v4815, 16
      %v5003 = vshll.u32 %v4815, 16
      %v5005 = vrot.slane %v5003, 1
      %v5006 = vor.u32 %v5001, %v5005
      %v5008 = vshll.u32 %v4863, 16
      %v5010 = vrot.slane %v5008, 1
      %v5011 = vsel %vm1018, %v5006, %v5010
      %v5013 = vshrl.u32 %v4816, 16
      %v5015 = vshll.u32 %v4816, 16
      %v5017 = vrot.slane %v5015, 1
      %v5018 = vor.u32 %v5013, %v5017
      %v5020 = vshll.u32 %v4864, 16
      %v5022 = vrot.slane %v5020, 1
      %v5023 = vsel %vm1018, %v5018, %v5022
      %v5025 = vshrl.u32 %v4817, 16
      %v5027 = vshll.u32 %v4817, 16
      %v5029 = vrot.slane %v5027, 1
      %v5030 = vor.u32 %v5025, %v5029
      %v5032 = vshll.u32 %v4865, 16
      %v5034 = vrot.slane %v5032, 1
      %v5035 = vsel %vm1018, %v5030, %v5034
      %v5037 = vshrl.u32 %v4818, 16
      %v5039 = vshll.u32 %v4818, 16
      %v5041 = vrot.slane %v5039, 1
      %v5042 = vor.u32 %v5037, %v5041
      %v5044 = vshll.u32 %v4866, 16
      %v5046 = vrot.slane %v5044, 1
      %v5047 = vsel %vm1018, %v5042, %v5046
      %v5049 = vshrl.u32 %v4819, 16
      %v5051 = vshll.u32 %v4819, 16
      %v5053 = vrot.slane %v5051, 1
      %v5054 = vor.u32 %v5049, %v5053
      %v5056 = vshll.u32 %v4867, 16
      %v5058 = vrot.slane %v5056, 1
      %v5059 = vsel %vm1018, %v5054, %v5058
      %5060 = vrot.lane.b32.xlu0 %v4879, 8
      %v5061 = vpop.permute.xlu0 %5060
      %5062 = vrot.lane.b32.xlu0 %v4891, 8
      %v5063 = vpop.permute.xlu0 %5062
      %5064 = vrot.lane.b32.xlu0 %v4903, 8
      %v5065 = vpop.permute.xlu0 %5064
      %5066 = vrot.lane.b32.xlu0 %v4915, 8
      %v5067 = vpop.permute.xlu0 %5066
      %5068 = vrot.lane.b32.xlu0 %v4927, 8
      %v5069 = vpop.permute.xlu0 %5068
      %5070 = vrot.lane.b32.xlu0 %v4939, 8
      %v5071 = vpop.permute.xlu0 %5070
      %5072 = vrot.lane.b32.xlu0 %v4951, 8
      %v5073 = vpop.permute.xlu0 %5072
      %5074 = vrot.lane.b32.xlu0 %v4963, 8
      %v5075 = vpop.permute.xlu0 %5074
      %5076 = vrot.lane.b32.xlu0 %v4975, 8
      %v5077 = vpop.permute.xlu0 %5076
      %5078 = vrot.lane.b32.xlu0 %v4987, 8
      %v5079 = vpop.permute.xlu0 %5078
      %5080 = vrot.lane.b32.xlu0 %v4999, 8
      %v5081 = vpop.permute.xlu0 %5080
      %5082 = vrot.lane.b32.xlu0 %v5011, 8
      %v5083 = vpop.permute.xlu0 %5082
      %5084 = vrot.lane.b32.xlu0 %v5023, 8
      %v5085 = vpop.permute.xlu0 %5084
      %5086 = vrot.lane.b32.xlu0 %v5035, 8
      %v5087 = vpop.permute.xlu0 %5086
      %5088 = vrot.lane.b32.xlu0 %v5047, 8
      %v5089 = vpop.permute.xlu0 %5088
      %5090 = vrot.lane.b32.xlu0 %v5059, 8
      %v5091 = vpop.permute.xlu0 %5090
      %v5092 = vrot.slane %v4804, 1
      %v5093 = vrot.slane %v4852, 1
      %v5094 = vsel %vm1243, %v5092, %v5093
      %v5095 = vrot.slane %v4805, 1
      %v5096 = vrot.slane %v4853, 1
      %v5097 = vsel %vm1243, %v5095, %v5096
      %v5098 = vrot.slane %v4806, 1
      %v5099 = vrot.slane %v4854, 1
      %v5100 = vsel %vm1243, %v5098, %v5099
      %v5101 = vrot.slane %v4807, 1
      %v5102 = vrot.slane %v4855, 1
      %v5103 = vsel %vm1243, %v5101, %v5102
      %v5104 = vrot.slane %v4808, 1
      %v5105 = vrot.slane %v4856, 1
      %v5106 = vsel %vm1243, %v5104, %v5105
      %v5107 = vrot.slane %v4809, 1
      %v5108 = vrot.slane %v4857, 1
      %v5109 = vsel %vm1243, %v5107, %v5108
      %v5110 = vrot.slane %v4810, 1
      %v5111 = vrot.slane %v4858, 1
      %v5112 = vsel %vm1243, %v5110, %v5111
      %v5113 = vrot.slane %v4811, 1
      %v5114 = vrot.slane %v4859, 1
      %v5115 = vsel %vm1243, %v5113, %v5114
      %v5116 = vrot.slane %v4812, 1
      %v5117 = vrot.slane %v4860, 1
      %v5118 = vsel %vm1243, %v5116, %v5117
      %v5119 = vrot.slane %v4813, 1
      %v5120 = vrot.slane %v4861, 1
      %v5121 = vsel %vm1243, %v5119, %v5120
      %v5122 = vrot.slane %v4814, 1
      %v5123 = vrot.slane %v4862, 1
      %v5124 = vsel %vm1243, %v5122, %v5123
      %v5125 = vrot.slane %v4815, 1
      %v5126 = vrot.slane %v4863, 1
      %v5127 = vsel %vm1243, %v5125, %v5126
      %v5128 = vrot.slane %v4816, 1
      %v5129 = vrot.slane %v4864, 1
      %v5130 = vsel %vm1243, %v5128, %v5129
      %v5131 = vrot.slane %v4817, 1
      %v5132 = vrot.slane %v4865, 1
      %v5133 = vsel %vm1243, %v5131, %v5132
      %v5134 = vrot.slane %v4818, 1
      %v5135 = vrot.slane %v4866, 1
      %v5136 = vsel %vm1243, %v5134, %v5135
      %v5137 = vrot.slane %v4819, 1
      %v5138 = vrot.slane %v4867, 1
      %v5139 = vsel %vm1243, %v5137, %v5138
      %5140 = vrot.lane.b32.xlu0 %v5094, 16
      %v5141 = vpop.permute.xlu0 %5140
      %5142 = vrot.lane.b32.xlu0 %v5097, 16
      %v5143 = vpop.permute.xlu0 %5142
      %5144 = vrot.lane.b32.xlu0 %v5100, 16
      %v5145 = vpop.permute.xlu0 %5144
      %5146 = vrot.lane.b32.xlu0 %v5103, 16
      %v5147 = vpop.permute.xlu0 %5146
      %5148 = vrot.lane.b32.xlu0 %v5106, 16
      %v5149 = vpop.permute.xlu0 %5148
      %5150 = vrot.lane.b32.xlu0 %v5109, 16
      %v5151 = vpop.permute.xlu0 %5150
      %5152 = vrot.lane.b32.xlu0 %v5112, 16
      %v5153 = vpop.permute.xlu0 %5152
      %5154 = vrot.lane.b32.xlu0 %v5115, 16
      %v5155 = vpop.permute.xlu0 %5154
      %5156 = vrot.lane.b32.xlu0 %v5118, 16
      %v5157 = vpop.permute.xlu0 %5156
      %5158 = vrot.lane.b32.xlu0 %v5121, 16
      %v5159 = vpop.permute.xlu0 %5158
      %5160 = vrot.lane.b32.xlu0 %v5124, 16
      %v5161 = vpop.permute.xlu0 %5160
      %5162 = vrot.lane.b32.xlu0 %v5127, 16
      %v5163 = vpop.permute.xlu0 %5162
      %5164 = vrot.lane.b32.xlu0 %v5130, 16
      %v5165 = vpop.permute.xlu0 %5164
      %5166 = vrot.lane.b32.xlu0 %v5133, 16
      %v5167 = vpop.permute.xlu0 %5166
      %5168 = vrot.lane.b32.xlu0 %v5136, 16
      %v5169 = vpop.permute.xlu0 %5168
      %5170 = vrot.lane.b32.xlu0 %v5139, 16
      %v5171 = vpop.permute.xlu0 %5170
      %v5173 = vsel %vm809, %v4804, %v5061
      %v5175 = vsel %vm809, %v4805, %v5063
      %v5177 = vsel %vm809, %v4806, %v5065
      %v5179 = vsel %vm809, %v4807, %v5067
      %v5181 = vsel %vm809, %v4808, %v5069
      %v5183 = vsel %vm809, %v4809, %v5071
      %v5185 = vsel %vm809, %v4810, %v5073
      %v5187 = vsel %vm809, %v4811, %v5075
      %v5189 = vsel %vm809, %v4812, %v5077
      %v5191 = vsel %vm809, %v4813, %v5079
      %v5193 = vsel %vm809, %v4814, %v5081
      %v5195 = vsel %vm809, %v4815, %v5083
      %v5197 = vsel %vm809, %v4816, %v5085
      %v5199 = vsel %vm809, %v4817, %v5087
      %v5201 = vsel %vm809, %v4818, %v5089
      %v5203 = vsel %vm809, %v4819, %v5091
      %v5205 = vsel %vm4425, %v5173, %v5141
      %v5207 = vsel %vm4425, %v5175, %v5143
      %v5209 = vsel %vm4425, %v5177, %v5145
      %v5211 = vsel %vm4425, %v5179, %v5147
      %v5213 = vsel %vm4425, %v5181, %v5149
      %v5215 = vsel %vm4425, %v5183, %v5151
      %v5217 = vsel %vm4425, %v5185, %v5153
      %v5219 = vsel %vm4425, %v5187, %v5155
      %v5221 = vsel %vm4425, %v5189, %v5157
      %v5223 = vsel %vm4425, %v5191, %v5159
      %v5225 = vsel %vm4425, %v5193, %v5161
      %v5227 = vsel %vm4425, %v5195, %v5163
      %v5229 = vsel %vm4425, %v5197, %v5165
      %v5231 = vsel %vm4425, %v5199, %v5167
      %v5233 = vsel %vm4425, %v5201, %v5169
      %v5235 = vsel %vm4425, %v5203, %v5171
      %v5236 = vld [vmem:[#allocation4] sm:$0xff]
      %v5237 = vld [vmem:[#allocation4 + $0x8] sm:$0xff]
      %v5238 = vld [vmem:[#allocation4 + $0x10] sm:$0xff]
      %v5239 = vld [vmem:[#allocation4 + $0x18] sm:$0xff]
      %v5240 = vld [vmem:[#allocation4 + $0x20] sm:$0xff]
      %v5241 = vld [vmem:[#allocation4 + $0x28] sm:$0xff]
      %v5242 = vld [vmem:[#allocation4 + $0x30] sm:$0xff]
      %v5243 = vld [vmem:[#allocation4 + $0x38] sm:$0xff]
      %v5244 = vld [vmem:[#allocation4 + $0x40] sm:$0xff]
      %v5245 = vld [vmem:[#allocation4 + $0x48] sm:$0xff]
      %v5246 = vld [vmem:[#allocation4 + $0x50] sm:$0xff]
      %v5247 = vld [vmem:[#allocation4 + $0x58] sm:$0xff]
      %v5248 = vld [vmem:[#allocation4 + $0x60] sm:$0xff]
      %v5249 = vld [vmem:[#allocation4 + $0x68] sm:$0xff]
      %v5250 = vld [vmem:[#allocation4 + $0x70] sm:$0xff]
      %v5251 = vld [vmem:[#allocation4 + $0x78] sm:$0xff]
      %v5252 = vld [vmem:[#allocation4 + $0x80] sm:$0xff]
      %v5253 = vld [vmem:[#allocation4 + $0x88] sm:$0xff]
      %v5254 = vld [vmem:[#allocation4 + $0x90] sm:$0xff]
      %v5255 = vld [vmem:[#allocation4 + $0x98] sm:$0xff]
      %v5256 = vld [vmem:[#allocation4 + $0xa0] sm:$0xff]
      %v5257 = vld [vmem:[#allocation4 + $0xa8] sm:$0xff]
      %v5258 = vld [vmem:[#allocation4 + $0xb0] sm:$0xff]
      %v5259 = vld [vmem:[#allocation4 + $0xb8] sm:$0xff]
      %v5260 = vld [vmem:[#allocation4 + $0xc0] sm:$0xff]
      %v5261 = vld [vmem:[#allocation4 + $0xc8] sm:$0xff]
      %v5262 = vld [vmem:[#allocation4 + $0xd0] sm:$0xff]
      %v5263 = vld [vmem:[#allocation4 + $0xd8] sm:$0xff]
      %v5264 = vld [vmem:[#allocation4 + $0xe0] sm:$0xff]
      %v5265 = vld [vmem:[#allocation4 + $0xe8] sm:$0xff]
      %v5266 = vld [vmem:[#allocation4 + $0xf0] sm:$0xff]
      %v5267 = vld [vmem:[#allocation4 + $0xf8] sm:$0xff]
      %s5268 = scalar_lea.vmem %s3, 12
      %v5269 = vld [vmem:[%s5268] sm:$0xf]
      %v5270 = vld [vmem:[%s5268 + $0x4] sm:$0xf]
      %v5271 = vld [vmem:[%s5268 + $0x8] sm:$0xf]
      %v5275 = vunpack.c.l.b16 %v5269
      %v5276 = vunpack.c.l.b16 %v5270
      %v5277 = vunpack.c.l.b16 %v5271
      %v5278 = vpack.c.b16 %v5276, %v5275
      %v5279 = vpack.c.b16 %v5277, %v5277
      %v5281 = vsel %vm4502, %v5205, 0
      %v5283 = vsel %vm4502, %v5207, 0
      %v5285 = vsel %vm4502, %v5209, 0
      %v5287 = vsel %vm4502, %v5211, 0
      %v5289 = vsel %vm4502, %v5213, 0
      %v5291 = vsel %vm4502, %v5215, 0
      %v5293 = vsel %vm4502, %v5217, 0
      %v5295 = vsel %vm4502, %v5219, 0
      %v5297 = vsel %vm4502, %v5221, 0
      %v5299 = vsel %vm4502, %v5223, 0
      %v5301 = vsel %vm4502, %v5225, 0
      %v5303 = vsel %vm4502, %v5227, 0
      %v5305 = vsel %vm4502, %v5229, 0
      %v5307 = vsel %vm4502, %v5231, 0
      %v5309 = vsel %vm4502, %v5233, 0
      %v5311 = vsel %vm4502, %v5235, 0
      %v5314 = vsel %vm4535, %v5279, 0
      %5316 = vmatpush.bf16.msra.mxu0 0
      %5317 = vmatpush.bf16.msra.mxu0 0
      %5318 = vmatpush.bf16.msra.mxu0 0
      %5319 = vmatpush.bf16.msra.mxu0 0
      %5320 = vmatpush.bf16.msra.mxu0 0
      %5321 = vmatpush.bf16.msra.mxu0 0
      %5322 = vmatpush.bf16.msra.mxu0 %v5314
      %5323 = vmatpush.bf16.msra.mxu0 %v5278
      %5324 = vmatmul.bf16.gmra.mxu0 %v5281
      %v5325 = vpop.f32.mrf.mxu0
      %v5326 = vadd.f32 0.0, %v5325
      %v5327 = vpop.f32.mrf.mxu0
      %v5328 = vadd.f32 0.0, %v5327
      %5329 = vmatmul.bf16.gmra.mxu0 %v5283
      %v5330 = vpop.f32.mrf.mxu0
      %v5331 = vadd.f32 0.0, %v5330
      %v5332 = vpop.f32.mrf.mxu0
      %v5333 = vadd.f32 0.0, %v5332
      %5334 = vmatmul.bf16.gmra.mxu0 %v5285
      %v5335 = vpop.f32.mrf.mxu0
      %v5336 = vadd.f32 0.0, %v5335
      %v5337 = vpop.f32.mrf.mxu0
      %v5338 = vadd.f32 0.0, %v5337
      %5339 = vmatmul.bf16.gmra.mxu0 %v5287
      %v5340 = vpop.f32.mrf.mxu0
      %v5341 = vadd.f32 0.0, %v5340
      %v5342 = vpop.f32.mrf.mxu0
      %v5343 = vadd.f32 0.0, %v5342
      %5344 = vmatmul.bf16.gmra.mxu0 %v5289
      %v5345 = vpop.f32.mrf.mxu0
      %v5346 = vadd.f32 0.0, %v5345
      %v5347 = vpop.f32.mrf.mxu0
      %v5348 = vadd.f32 0.0, %v5347
      %5349 = vmatmul.bf16.gmra.mxu0 %v5291
      %v5350 = vpop.f32.mrf.mxu0
      %v5351 = vadd.f32 0.0, %v5350
      %v5352 = vpop.f32.mrf.mxu0
      %v5353 = vadd.f32 0.0, %v5352
      %5354 = vmatmul.bf16.gmra.mxu0 %v5293
      %v5355 = vpop.f32.mrf.mxu0
      %v5356 = vadd.f32 0.0, %v5355
      %v5357 = vpop.f32.mrf.mxu0
      %v5358 = vadd.f32 0.0, %v5357
      %5359 = vmatmul.bf16.gmra.mxu0 %v5295
      %v5360 = vpop.f32.mrf.mxu0
      %v5361 = vadd.f32 0.0, %v5360
      %v5362 = vpop.f32.mrf.mxu0
      %v5363 = vadd.f32 0.0, %v5362
      %5364 = vmatmul.bf16.gmra.mxu0 %v5297
      %v5365 = vpop.f32.mrf.mxu0
      %v5366 = vadd.f32 0.0, %v5365
      %v5367 = vpop.f32.mrf.mxu0
      %v5368 = vadd.f32 0.0, %v5367
      %5369 = vmatmul.bf16.gmra.mxu0 %v5299
      %v5370 = vpop.f32.mrf.mxu0
      %v5371 = vadd.f32 0.0, %v5370
      %v5372 = vpop.f32.mrf.mxu0
      %v5373 = vadd.f32 0.0, %v5372
      %5374 = vmatmul.bf16.gmra.mxu0 %v5301
      %v5375 = vpop.f32.mrf.mxu0
      %v5376 = vadd.f32 0.0, %v5375
      %v5377 = vpop.f32.mrf.mxu0
      %v5378 = vadd.f32 0.0, %v5377
      %5379 = vmatmul.bf16.gmra.mxu0 %v5303
      %v5380 = vpop.f32.mrf.mxu0
      %v5381 = vadd.f32 0.0, %v5380
      %v5382 = vpop.f32.mrf.mxu0
      %v5383 = vadd.f32 0.0, %v5382
      %5384 = vmatmul.bf16.gmra.mxu0 %v5305
      %v5385 = vpop.f32.mrf.mxu0
      %v5386 = vadd.f32 0.0, %v5385
      %v5387 = vpop.f32.mrf.mxu0
      %v5388 = vadd.f32 0.0, %v5387
      %5389 = vmatmul.bf16.gmra.mxu0 %v5307
      %v5390 = vpop.f32.mrf.mxu0
      %v5391 = vadd.f32 0.0, %v5390
      %v5392 = vpop.f32.mrf.mxu0
      %v5393 = vadd.f32 0.0, %v5392
      %5394 = vmatmul.bf16.gmra.mxu0 %v5309
      %v5395 = vpop.f32.mrf.mxu0
      %v5396 = vadd.f32 0.0, %v5395
      %v5397 = vpop.f32.mrf.mxu0
      %v5398 = vadd.f32 0.0, %v5397
      %5399 = vmatmul.bf16.gmra.mxu0 %v5311
      %v5400 = vpop.f32.mrf.mxu0
      %v5401 = vadd.f32 0.0, %v5400
      %v5402 = vpop.f32.mrf.mxu0
      %v5403 = vadd.f32 0.0, %v5402
      %5404 = vdwg.mxu0
      %v5405 = vadd.f32 %v5236, %v5326
      %v5406 = vadd.f32 %v5237, %v5328
      %v5407 = vadd.f32 %v5238, %v5331
      %v5408 = vadd.f32 %v5239, %v5333
      %v5409 = vadd.f32 %v5240, %v5336
      %v5410 = vadd.f32 %v5241, %v5338
      %v5411 = vadd.f32 %v5242, %v5341
      %v5412 = vadd.f32 %v5243, %v5343
      %v5413 = vadd.f32 %v5244, %v5346
      %v5414 = vadd.f32 %v5245, %v5348
      %v5415 = vadd.f32 %v5246, %v5351
      %v5416 = vadd.f32 %v5247, %v5353
      %v5417 = vadd.f32 %v5248, %v5356
      %v5418 = vadd.f32 %v5249, %v5358
      %v5419 = vadd.f32 %v5250, %v5361
      %v5420 = vadd.f32 %v5251, %v5363
      %v5421 = vadd.f32 %v5252, %v5366
      %v5422 = vadd.f32 %v5253, %v5368
      %v5423 = vadd.f32 %v5254, %v5371
      %v5424 = vadd.f32 %v5255, %v5373
      %v5425 = vadd.f32 %v5256, %v5376
      %v5426 = vadd.f32 %v5257, %v5378
      %v5427 = vadd.f32 %v5258, %v5381
      %v5428 = vadd.f32 %v5259, %v5383
      %v5429 = vadd.f32 %v5260, %v5386
      %v5430 = vadd.f32 %v5261, %v5388
      %v5431 = vadd.f32 %v5262, %v5391
      %v5432 = vadd.f32 %v5263, %v5393
      %v5433 = vadd.f32 %v5264, %v5396
      %v5434 = vadd.f32 %v5265, %v5398
      %v5435 = vadd.f32 %v5266, %v5401
      %v5436 = vadd.f32 %v5267, %v5403
      %5437 = vst.msk [vmem:[#allocation4] sm:$0xff] %vm809, %v5405
      %5438 = vst.msk [vmem:[#allocation4 + $0x8] sm:$0xff] %vm809, %v5406
      %5439 = vst.msk [vmem:[#allocation4 + $0x10] sm:$0xff] %vm809, %v5407
      %5440 = vst.msk [vmem:[#allocation4 + $0x18] sm:$0xff] %vm809, %v5408
      %5441 = vst.msk [vmem:[#allocation4 + $0x20] sm:$0xff] %vm809, %v5409
      %5442 = vst.msk [vmem:[#allocation4 + $0x28] sm:$0xff] %vm809, %v5410
      %5443 = vst.msk [vmem:[#allocation4 + $0x30] sm:$0xff] %vm809, %v5411
      %5444 = vst.msk [vmem:[#allocation4 + $0x38] sm:$0xff] %vm809, %v5412
      %5445 = vst.msk [vmem:[#allocation4 + $0x40] sm:$0xff] %vm809, %v5413
      %5446 = vst.msk [vmem:[#allocation4 + $0x48] sm:$0xff] %vm809, %v5414
      %5447 = vst.msk [vmem:[#allocation4 + $0x50] sm:$0xff] %vm809, %v5415
      %5448 = vst.msk [vmem:[#allocation4 + $0x58] sm:$0xff] %vm809, %v5416
      %5449 = vst.msk [vmem:[#allocation4 + $0x60] sm:$0xff] %vm809, %v5417
      %5450 = vst.msk [vmem:[#allocation4 + $0x68] sm:$0xff] %vm809, %v5418
      %5451 = vst.msk [vmem:[#allocation4 + $0x70] sm:$0xff] %vm809, %v5419
      %5452 = vst.msk [vmem:[#allocation4 + $0x78] sm:$0xff] %vm809, %v5420
      %5453 = vst.msk [vmem:[#allocation4 + $0x80] sm:$0xff] %vm809, %v5421
      %5454 = vst.msk [vmem:[#allocation4 + $0x88] sm:$0xff] %vm809, %v5422
      %5455 = vst.msk [vmem:[#allocation4 + $0x90] sm:$0xff] %vm809, %v5423
      %5456 = vst.msk [vmem:[#allocation4 + $0x98] sm:$0xff] %vm809, %v5424
      %5457 = vst.msk [vmem:[#allocation4 + $0xa0] sm:$0xff] %vm809, %v5425
      %5458 = vst.msk [vmem:[#allocation4 + $0xa8] sm:$0xff] %vm809, %v5426
      %5459 = vst.msk [vmem:[#allocation4 + $0xb0] sm:$0xff] %vm809, %v5427
      %5460 = vst.msk [vmem:[#allocation4 + $0xb8] sm:$0xff] %vm809, %v5428
      %5461 = vst.msk [vmem:[#allocation4 + $0xc0] sm:$0xff] %vm809, %v5429
      %5462 = vst.msk [vmem:[#allocation4 + $0xc8] sm:$0xff] %vm809, %v5430
      %5463 = vst.msk [vmem:[#allocation4 + $0xd0] sm:$0xff] %vm809, %v5431
      %5464 = vst.msk [vmem:[#allocation4 + $0xd8] sm:$0xff] %vm809, %v5432
      %5465 = vst.msk [vmem:[#allocation4 + $0xe0] sm:$0xff] %vm809, %v5433
      %5466 = vst.msk [vmem:[#allocation4 + $0xe8] sm:$0xff] %vm809, %v5434
      %5467 = vst.msk [vmem:[#allocation4 + $0xf0] sm:$0xff] %vm809, %v5435
      %5468 = vst.msk [vmem:[#allocation4 + $0xf8] sm:$0xff] %vm809, %v5436
      %s5469 = scalar_lea.vmem [#allocation3], 24
      %v5470 = vld [vmem:[%s5469] sm:$0xf]
      %v5471 = vld [vmem:[%s5469 + $0x4] sm:$0xf]
      %v5472 = vld [vmem:[%s5469 + $0x8] sm:$0x1]
      %v5473 = vld [vmem:[%s5469 + $0xc] sm:$0xf]
      %v5474 = vld [vmem:[%s5469 + $0x10] sm:$0xf]
      %v5475 = vld [vmem:[%s5469 + $0x14] sm:$0x1]
      %v5476 = vld [vmem:[%s5469 + $0x18] sm:$0xf]
      %v5477 = vld [vmem:[%s5469 + $0x1c] sm:$0xf]
      %v5478 = vld [vmem:[%s5469 + $0x20] sm:$0x1]
      %v5479 = vld [vmem:[%s5469 + $0x24] sm:$0xf]
      %v5480 = vld [vmem:[%s5469 + $0x28] sm:$0xf]
      %v5481 = vld [vmem:[%s5469 + $0x2c] sm:$0x1]
      %v5482 = vld [vmem:[%s5469 + $0x30] sm:$0xf]
      %v5483 = vld [vmem:[%s5469 + $0x34] sm:$0xf]
      %v5484 = vld [vmem:[%s5469 + $0x38] sm:$0x1]
      %v5485 = vld [vmem:[%s5469 + $0x3c] sm:$0xf]
      %v5486 = vld [vmem:[%s5469 + $0x40] sm:$0xf]
      %v5487 = vld [vmem:[%s5469 + $0x44] sm:$0x1]
      %v5488 = vld [vmem:[%s5469 + $0x48] sm:$0xf]
      %v5489 = vld [vmem:[%s5469 + $0x4c] sm:$0xf]
      %v5490 = vld [vmem:[%s5469 + $0x50] sm:$0x1]
      %v5491 = vld [vmem:[%s5469 + $0x54] sm:$0xf]
      %v5492 = vld [vmem:[%s5469 + $0x58] sm:$0xf]
      %v5493 = vld [vmem:[%s5469 + $0x5c] sm:$0x1]
      %v5494 = vld [vmem:[%s5469 + $0x60] sm:$0xf]
      %v5495 = vld [vmem:[%s5469 + $0x64] sm:$0xf]
      %v5496 = vld [vmem:[%s5469 + $0x68] sm:$0x1]
      %v5497 = vld [vmem:[%s5469 + $0x6c] sm:$0xf]
      %v5498 = vld [vmem:[%s5469 + $0x70] sm:$0xf]
      %v5499 = vld [vmem:[%s5469 + $0x74] sm:$0x1]
      %v5500 = vld [vmem:[%s5469 + $0x78] sm:$0xf]
      %v5501 = vld [vmem:[%s5469 + $0x7c] sm:$0xf]
      %v5502 = vld [vmem:[%s5469 + $0x80] sm:$0x1]
      %v5503 = vld [vmem:[%s5469 + $0x84] sm:$0xf]
      %v5504 = vld [vmem:[%s5469 + $0x88] sm:$0xf]
      %v5505 = vld [vmem:[%s5469 + $0x8c] sm:$0x1]
      %v5506 = vld [vmem:[%s5469 + $0x90] sm:$0xf]
      %v5507 = vld [vmem:[%s5469 + $0x94] sm:$0xf]
      %v5508 = vld [vmem:[%s5469 + $0x98] sm:$0x1]
      %v5509 = vld [vmem:[%s5469 + $0x9c] sm:$0xf]
      %v5510 = vld [vmem:[%s5469 + $0xa0] sm:$0xf]
      %v5511 = vld [vmem:[%s5469 + $0xa4] sm:$0x1]
      %v5512 = vld [vmem:[%s5469 + $0xa8] sm:$0xf]
      %v5513 = vld [vmem:[%s5469 + $0xac] sm:$0xf]
      %v5514 = vld [vmem:[%s5469 + $0xb0] sm:$0x1]
      %v5515 = vld [vmem:[%s5469 + $0xb4] sm:$0xf]
      %v5516 = vld [vmem:[%s5469 + $0xb8] sm:$0xf]
      %v5517 = vld [vmem:[%s5469 + $0xbc] sm:$0x1]
      %v5550 = vunpack.c.l.b16 %v5470
      %v5551 = vunpack.c.l.b16 %v5471
      %v5552 = vunpack.c.l.b16 %v5473
      %v5553 = vunpack.c.l.b16 %v5474
      %v5554 = vunpack.c.l.b16 %v5476
      %v5555 = vunpack.c.l.b16 %v5477
      %v5556 = vunpack.c.l.b16 %v5479
      %v5557 = vunpack.c.l.b16 %v5480
      %v5558 = vunpack.c.l.b16 %v5482
      %v5559 = vunpack.c.l.b16 %v5483
      %v5560 = vunpack.c.l.b16 %v5485
      %v5561 = vunpack.c.l.b16 %v5486
      %v5562 = vunpack.c.l.b16 %v5488
      %v5563 = vunpack.c.l.b16 %v5489
      %v5564 = vunpack.c.l.b16 %v5491
      %v5565 = vunpack.c.l.b16 %v5492
      %v5566 = vunpack.c.l.b16 %v5494
      %v5567 = vunpack.c.l.b16 %v5495
      %v5568 = vunpack.c.l.b16 %v5497
      %v5569 = vunpack.c.l.b16 %v5498
      %v5570 = vunpack.c.l.b16 %v5500
      %v5571 = vunpack.c.l.b16 %v5501
      %v5572 = vunpack.c.l.b16 %v5503
      %v5573 = vunpack.c.l.b16 %v5504
      %v5574 = vunpack.c.l.b16 %v5506
      %v5575 = vunpack.c.l.b16 %v5507
      %v5576 = vunpack.c.l.b16 %v5509
      %v5577 = vunpack.c.l.b16 %v5510
      %v5578 = vunpack.c.l.b16 %v5512
      %v5579 = vunpack.c.l.b16 %v5513
      %v5580 = vunpack.c.l.b16 %v5515
      %v5581 = vunpack.c.l.b16 %v5516
      %v5582 = vpack.c.b16 %v5551, %v5550
      %v5583 = vpack.c.b16 %v5553, %v5552
      %v5584 = vpack.c.b16 %v5555, %v5554
      %v5585 = vpack.c.b16 %v5557, %v5556
      %v5586 = vpack.c.b16 %v5559, %v5558
      %v5587 = vpack.c.b16 %v5561, %v5560
      %v5588 = vpack.c.b16 %v5563, %v5562
      %v5589 = vpack.c.b16 %v5565, %v5564
      %v5590 = vpack.c.b16 %v5567, %v5566
      %v5591 = vpack.c.b16 %v5569, %v5568
      %v5592 = vpack.c.b16 %v5571, %v5570
      %v5593 = vpack.c.b16 %v5573, %v5572
      %v5594 = vpack.c.b16 %v5575, %v5574
      %v5595 = vpack.c.b16 %v5577, %v5576
      %v5596 = vpack.c.b16 %v5579, %v5578
      %v5597 = vpack.c.b16 %v5581, %v5580
      %v5614 = vunpack.c.l.b16 %v5472
      %v5615 = vunpack.c.l.b16 %v5475
      %v5616 = vunpack.c.l.b16 %v5478
      %v5617 = vunpack.c.l.b16 %v5481
      %v5618 = vunpack.c.l.b16 %v5484
      %v5619 = vunpack.c.l.b16 %v5487
      %v5620 = vunpack.c.l.b16 %v5490
      %v5621 = vunpack.c.l.b16 %v5493
      %v5622 = vunpack.c.l.b16 %v5496
      %v5623 = vunpack.c.l.b16 %v5499
      %v5624 = vunpack.c.l.b16 %v5502
      %v5625 = vunpack.c.l.b16 %v5505
      %v5626 = vunpack.c.l.b16 %v5508
      %v5627 = vunpack.c.l.b16 %v5511
      %v5628 = vunpack.c.l.b16 %v5514
      %v5629 = vunpack.c.l.b16 %v5517
      %v5630 = vpack.c.b16 %v5614, %v5614
      %v5631 = vpack.c.b16 %v5615, %v5615
      %v5632 = vpack.c.b16 %v5616, %v5616
      %v5633 = vpack.c.b16 %v5617, %v5617
      %v5634 = vpack.c.b16 %v5618, %v5618
      %v5635 = vpack.c.b16 %v5619, %v5619
      %v5636 = vpack.c.b16 %v5620, %v5620
      %v5637 = vpack.c.b16 %v5621, %v5621
      %v5638 = vpack.c.b16 %v5622, %v5622
      %v5639 = vpack.c.b16 %v5623, %v5623
      %v5640 = vpack.c.b16 %v5624, %v5624
      %v5641 = vpack.c.b16 %v5625, %v5625
      %v5642 = vpack.c.b16 %v5626, %v5626
      %v5643 = vpack.c.b16 %v5627, %v5627
      %v5644 = vpack.c.b16 %v5628, %v5628
      %v5645 = vpack.c.b16 %v5629, %v5629
      %v5647 = vshrl.u32 %v5582, 16
      %v5649 = vshll.u32 %v5582, 16
      %v5651 = vrot.slane %v5649, 1
      %v5652 = vor.u32 %v5647, %v5651
      %v5654 = vshll.u32 %v5630, 16
      %v5656 = vrot.slane %v5654, 1
      %v5657 = vsel %vm1018, %v5652, %v5656
      %v5659 = vshrl.u32 %v5583, 16
      %v5661 = vshll.u32 %v5583, 16
      %v5663 = vrot.slane %v5661, 1
      %v5664 = vor.u32 %v5659, %v5663
      %v5666 = vshll.u32 %v5631, 16
      %v5668 = vrot.slane %v5666, 1
      %v5669 = vsel %vm1018, %v5664, %v5668
      %v5671 = vshrl.u32 %v5584, 16
      %v5673 = vshll.u32 %v5584, 16
      %v5675 = vrot.slane %v5673, 1
      %v5676 = vor.u32 %v5671, %v5675
      %v5678 = vshll.u32 %v5632, 16
      %v5680 = vrot.slane %v5678, 1
      %v5681 = vsel %vm1018, %v5676, %v5680
      %v5683 = vshrl.u32 %v5585, 16
      %v5685 = vshll.u32 %v5585, 16
      %v5687 = vrot.slane %v5685, 1
      %v5688 = vor.u32 %v5683, %v5687
      %v5690 = vshll.u32 %v5633, 16
      %v5692 = vrot.slane %v5690, 1
      %v5693 = vsel %vm1018, %v5688, %v5692
      %v5695 = vshrl.u32 %v5586, 16
      %v5697 = vshll.u32 %v5586, 16
      %v5699 = vrot.slane %v5697, 1
      %v5700 = vor.u32 %v5695, %v5699
      %v5702 = vshll.u32 %v5634, 16
      %v5704 = vrot.slane %v5702, 1
      %v5705 = vsel %vm1018, %v5700, %v5704
      %v5707 = vshrl.u32 %v5587, 16
      %v5709 = vshll.u32 %v5587, 16
      %v5711 = vrot.slane %v5709, 1
      %v5712 = vor.u32 %v5707, %v5711
      %v5714 = vshll.u32 %v5635, 16
      %v5716 = vrot.slane %v5714, 1
      %v5717 = vsel %vm1018, %v5712, %v5716
      %v5719 = vshrl.u32 %v5588, 16
      %v5721 = vshll.u32 %v5588, 16
      %v5723 = vrot.slane %v5721, 1
      %v5724 = vor.u32 %v5719, %v5723
      %v5726 = vshll.u32 %v5636, 16
      %v5728 = vrot.slane %v5726, 1
      %v5729 = vsel %vm1018, %v5724, %v5728
      %v5731 = vshrl.u32 %v5589, 16
      %v5733 = vshll.u32 %v5589, 16
      %v5735 = vrot.slane %v5733, 1
      %v5736 = vor.u32 %v5731, %v5735
      %v5738 = vshll.u32 %v5637, 16
      %v5740 = vrot.slane %v5738, 1
      %v5741 = vsel %vm1018, %v5736, %v5740
      %v5743 = vshrl.u32 %v5590, 16
      %v5745 = vshll.u32 %v5590, 16
      %v5747 = vrot.slane %v5745, 1
      %v5748 = vor.u32 %v5743, %v5747
      %v5750 = vshll.u32 %v5638, 16
      %v5752 = vrot.slane %v5750, 1
      %v5753 = vsel %vm1018, %v5748, %v5752
      %v5755 = vshrl.u32 %v5591, 16
      %v5757 = vshll.u32 %v5591, 16
      %v5759 = vrot.slane %v5757, 1
      %v5760 = vor.u32 %v5755, %v5759
      %v5762 = vshll.u32 %v5639, 16
      %v5764 = vrot.slane %v5762, 1
      %v5765 = vsel %vm1018, %v5760, %v5764
      %v5767 = vshrl.u32 %v5592, 16
      %v5769 = vshll.u32 %v5592, 16
      %v5771 = vrot.slane %v5769, 1
      %v5772 = vor.u32 %v5767, %v5771
      %v5774 = vshll.u32 %v5640, 16
      %v5776 = vrot.slane %v5774, 1
      %v5777 = vsel %vm1018, %v5772, %v5776
      %v5779 = vshrl.u32 %v5593, 16
      %v5781 = vshll.u32 %v5593, 16
      %v5783 = vrot.slane %v5781, 1
      %v5784 = vor.u32 %v5779, %v5783
      %v5786 = vshll.u32 %v5641, 16
      %v5788 = vrot.slane %v5786, 1
      %v5789 = vsel %vm1018, %v5784, %v5788
      %v5791 = vshrl.u32 %v5594, 16
      %v5793 = vshll.u32 %v5594, 16
      %v5795 = vrot.slane %v5793, 1
      %v5796 = vor.u32 %v5791, %v5795
      %v5798 = vshll.u32 %v5642, 16
      %v5800 = vrot.slane %v5798, 1
      %v5801 = vsel %vm1018, %v5796, %v5800
      %v5803 = vshrl.u32 %v5595, 16
      %v5805 = vshll.u32 %v5595, 16
      %v5807 = vrot.slane %v5805, 1
      %v5808 = vor.u32 %v5803, %v5807
      %v5810 = vshll.u32 %v5643, 16
      %v5812 = vrot.slane %v5810, 1
      %v5813 = vsel %vm1018, %v5808, %v5812
      %v5815 = vshrl.u32 %v5596, 16
      %v5817 = vshll.u32 %v5596, 16
      %v5819 = vrot.slane %v5817, 1
      %v5820 = vor.u32 %v5815, %v5819
      %v5822 = vshll.u32 %v5644, 16
      %v5824 = vrot.slane %v5822, 1
      %v5825 = vsel %vm1018, %v5820, %v5824
      %v5827 = vshrl.u32 %v5597, 16
      %v5829 = vshll.u32 %v5597, 16
      %v5831 = vrot.slane %v5829, 1
      %v5832 = vor.u32 %v5827, %v5831
      %v5834 = vshll.u32 %v5645, 16
      %v5836 = vrot.slane %v5834, 1
      %v5837 = vsel %vm1018, %v5832, %v5836
      %5838 = vrot.lane.b32.xlu0 %v5657, 8
      %v5839 = vpop.permute.xlu0 %5838
      %5840 = vrot.lane.b32.xlu0 %v5669, 8
      %v5841 = vpop.permute.xlu0 %5840
      %5842 = vrot.lane.b32.xlu0 %v5681, 8
      %v5843 = vpop.permute.xlu0 %5842
      %5844 = vrot.lane.b32.xlu0 %v5693, 8
      %v5845 = vpop.permute.xlu0 %5844
      %5846 = vrot.lane.b32.xlu0 %v5705, 8
      %v5847 = vpop.permute.xlu0 %5846
      %5848 = vrot.lane.b32.xlu0 %v5717, 8
      %v5849 = vpop.permute.xlu0 %5848
      %5850 = vrot.lane.b32.xlu0 %v5729, 8
      %v5851 = vpop.permute.xlu0 %5850
      %5852 = vrot.lane.b32.xlu0 %v5741, 8
      %v5853 = vpop.permute.xlu0 %5852
      %5854 = vrot.lane.b32.xlu0 %v5753, 8
      %v5855 = vpop.permute.xlu0 %5854
      %5856 = vrot.lane.b32.xlu0 %v5765, 8
      %v5857 = vpop.permute.xlu0 %5856
      %5858 = vrot.lane.b32.xlu0 %v5777, 8
      %v5859 = vpop.permute.xlu0 %5858
      %5860 = vrot.lane.b32.xlu0 %v5789, 8
      %v5861 = vpop.permute.xlu0 %5860
      %5862 = vrot.lane.b32.xlu0 %v5801, 8
      %v5863 = vpop.permute.xlu0 %5862
      %5864 = vrot.lane.b32.xlu0 %v5813, 8
      %v5865 = vpop.permute.xlu0 %5864
      %5866 = vrot.lane.b32.xlu0 %v5825, 8
      %v5867 = vpop.permute.xlu0 %5866
      %5868 = vrot.lane.b32.xlu0 %v5837, 8
      %v5869 = vpop.permute.xlu0 %5868
      %v5870 = vrot.slane %v5582, 1
      %v5871 = vrot.slane %v5630, 1
      %v5872 = vsel %vm1243, %v5870, %v5871
      %v5873 = vrot.slane %v5583, 1
      %v5874 = vrot.slane %v5631, 1
      %v5875 = vsel %vm1243, %v5873, %v5874
      %v5876 = vrot.slane %v5584, 1
      %v5877 = vrot.slane %v5632, 1
      %v5878 = vsel %vm1243, %v5876, %v5877
      %v5879 = vrot.slane %v5585, 1
      %v5880 = vrot.slane %v5633, 1
      %v5881 = vsel %vm1243, %v5879, %v5880
      %v5882 = vrot.slane %v5586, 1
      %v5883 = vrot.slane %v5634, 1
      %v5884 = vsel %vm1243, %v5882, %v5883
      %v5885 = vrot.slane %v5587, 1
      %v5886 = vrot.slane %v5635, 1
      %v5887 = vsel %vm1243, %v5885, %v5886
      %v5888 = vrot.slane %v5588, 1
      %v5889 = vrot.slane %v5636, 1
      %v5890 = vsel %vm1243, %v5888, %v5889
      %v5891 = vrot.slane %v5589, 1
      %v5892 = vrot.slane %v5637, 1
      %v5893 = vsel %vm1243, %v5891, %v5892
      %v5894 = vrot.slane %v5590, 1
      %v5895 = vrot.slane %v5638, 1
      %v5896 = vsel %vm1243, %v5894, %v5895
      %v5897 = vrot.slane %v5591, 1
      %v5898 = vrot.slane %v5639, 1
      %v5899 = vsel %vm1243, %v5897, %v5898
      %v5900 = vrot.slane %v5592, 1
      %v5901 = vrot.slane %v5640, 1
      %v5902 = vsel %vm1243, %v5900, %v5901
      %v5903 = vrot.slane %v5593, 1
      %v5904 = vrot.slane %v5641, 1
      %v5905 = vsel %vm1243, %v5903, %v5904
      %v5906 = vrot.slane %v5594, 1
      %v5907 = vrot.slane %v5642, 1
      %v5908 = vsel %vm1243, %v5906, %v5907
      %v5909 = vrot.slane %v5595, 1
      %v5910 = vrot.slane %v5643, 1
      %v5911 = vsel %vm1243, %v5909, %v5910
      %v5912 = vrot.slane %v5596, 1
      %v5913 = vrot.slane %v5644, 1
      %v5914 = vsel %vm1243, %v5912, %v5913
      %v5915 = vrot.slane %v5597, 1
      %v5916 = vrot.slane %v5645, 1
      %v5917 = vsel %vm1243, %v5915, %v5916
      %5918 = vrot.lane.b32.xlu0 %v5872, 16
      %v5919 = vpop.permute.xlu0 %5918
      %5920 = vrot.lane.b32.xlu0 %v5875, 16
      %v5921 = vpop.permute.xlu0 %5920
      %5922 = vrot.lane.b32.xlu0 %v5878, 16
      %v5923 = vpop.permute.xlu0 %5922
      %5924 = vrot.lane.b32.xlu0 %v5881, 16
      %v5925 = vpop.permute.xlu0 %5924
      %5926 = vrot.lane.b32.xlu0 %v5884, 16
      %v5927 = vpop.permute.xlu0 %5926
      %5928 = vrot.lane.b32.xlu0 %v5887, 16
      %v5929 = vpop.permute.xlu0 %5928
      %5930 = vrot.lane.b32.xlu0 %v5890, 16
      %v5931 = vpop.permute.xlu0 %5930
      %5932 = vrot.lane.b32.xlu0 %v5893, 16
      %v5933 = vpop.permute.xlu0 %5932
      %5934 = vrot.lane.b32.xlu0 %v5896, 16
      %v5935 = vpop.permute.xlu0 %5934
      %5936 = vrot.lane.b32.xlu0 %v5899, 16
      %v5937 = vpop.permute.xlu0 %5936
      %5938 = vrot.lane.b32.xlu0 %v5902, 16
      %v5939 = vpop.permute.xlu0 %5938
      %5940 = vrot.lane.b32.xlu0 %v5905, 16
      %v5941 = vpop.permute.xlu0 %5940
      %5942 = vrot.lane.b32.xlu0 %v5908, 16
      %v5943 = vpop.permute.xlu0 %5942
      %5944 = vrot.lane.b32.xlu0 %v5911, 16
      %v5945 = vpop.permute.xlu0 %5944
      %5946 = vrot.lane.b32.xlu0 %v5914, 16
      %v5947 = vpop.permute.xlu0 %5946
      %5948 = vrot.lane.b32.xlu0 %v5917, 16
      %v5949 = vpop.permute.xlu0 %5948
      %v5951 = vsel %vm809, %v5582, %v5839
      %v5953 = vsel %vm809, %v5583, %v5841
      %v5955 = vsel %vm809, %v5584, %v5843
      %v5957 = vsel %vm809, %v5585, %v5845
      %v5959 = vsel %vm809, %v5586, %v5847
      %v5961 = vsel %vm809, %v5587, %v5849
      %v5963 = vsel %vm809, %v5588, %v5851
      %v5965 = vsel %vm809, %v5589, %v5853
      %v5967 = vsel %vm809, %v5590, %v5855
      %v5969 = vsel %vm809, %v5591, %v5857
      %v5971 = vsel %vm809, %v5592, %v5859
      %v5973 = vsel %vm809, %v5593, %v5861
      %v5975 = vsel %vm809, %v5594, %v5863
      %v5977 = vsel %vm809, %v5595, %v5865
      %v5979 = vsel %vm809, %v5596, %v5867
      %v5981 = vsel %vm809, %v5597, %v5869
      %v5983 = vsel %vm4425, %v5951, %v5919
      %v5985 = vsel %vm4425, %v5953, %v5921
      %v5987 = vsel %vm4425, %v5955, %v5923
      %v5989 = vsel %vm4425, %v5957, %v5925
      %v5991 = vsel %vm4425, %v5959, %v5927
      %v5993 = vsel %vm4425, %v5961, %v5929
      %v5995 = vsel %vm4425, %v5963, %v5931
      %v5997 = vsel %vm4425, %v5965, %v5933
      %v5999 = vsel %vm4425, %v5967, %v5935
      %v6001 = vsel %vm4425, %v5969, %v5937
      %v6003 = vsel %vm4425, %v5971, %v5939
      %v6005 = vsel %vm4425, %v5973, %v5941
      %v6007 = vsel %vm4425, %v5975, %v5943
      %v6009 = vsel %vm4425, %v5977, %v5945
      %v6011 = vsel %vm4425, %v5979, %v5947
      %v6013 = vsel %vm4425, %v5981, %v5949
      %v6014 = vld [vmem:[#allocation4] sm:$0xff]
      %v6015 = vld [vmem:[#allocation4 + $0x8] sm:$0xff]
      %v6016 = vld [vmem:[#allocation4 + $0x10] sm:$0xff]
      %v6017 = vld [vmem:[#allocation4 + $0x18] sm:$0xff]
      %v6018 = vld [vmem:[#allocation4 + $0x20] sm:$0xff]
      %v6019 = vld [vmem:[#allocation4 + $0x28] sm:$0xff]
      %v6020 = vld [vmem:[#allocation4 + $0x30] sm:$0xff]
      %v6021 = vld [vmem:[#allocation4 + $0x38] sm:$0xff]
      %v6022 = vld [vmem:[#allocation4 + $0x40] sm:$0xff]
      %v6023 = vld [vmem:[#allocation4 + $0x48] sm:$0xff]
      %v6024 = vld [vmem:[#allocation4 + $0x50] sm:$0xff]
      %v6025 = vld [vmem:[#allocation4 + $0x58] sm:$0xff]
      %v6026 = vld [vmem:[#allocation4 + $0x60] sm:$0xff]
      %v6027 = vld [vmem:[#allocation4 + $0x68] sm:$0xff]
      %v6028 = vld [vmem:[#allocation4 + $0x70] sm:$0xff]
      %v6029 = vld [vmem:[#allocation4 + $0x78] sm:$0xff]
      %v6030 = vld [vmem:[#allocation4 + $0x80] sm:$0xff]
      %v6031 = vld [vmem:[#allocation4 + $0x88] sm:$0xff]
      %v6032 = vld [vmem:[#allocation4 + $0x90] sm:$0xff]
      %v6033 = vld [vmem:[#allocation4 + $0x98] sm:$0xff]
      %v6034 = vld [vmem:[#allocation4 + $0xa0] sm:$0xff]
      %v6035 = vld [vmem:[#allocation4 + $0xa8] sm:$0xff]
      %v6036 = vld [vmem:[#allocation4 + $0xb0] sm:$0xff]
      %v6037 = vld [vmem:[#allocation4 + $0xb8] sm:$0xff]
      %v6038 = vld [vmem:[#allocation4 + $0xc0] sm:$0xff]
      %v6039 = vld [vmem:[#allocation4 + $0xc8] sm:$0xff]
      %v6040 = vld [vmem:[#allocation4 + $0xd0] sm:$0xff]
      %v6041 = vld [vmem:[#allocation4 + $0xd8] sm:$0xff]
      %v6042 = vld [vmem:[#allocation4 + $0xe0] sm:$0xff]
      %v6043 = vld [vmem:[#allocation4 + $0xe8] sm:$0xff]
      %v6044 = vld [vmem:[#allocation4 + $0xf0] sm:$0xff]
      %v6045 = vld [vmem:[#allocation4 + $0xf8] sm:$0xff]
      %s6046 = scalar_lea.vmem %s3, 24
      %v6047 = vld [vmem:[%s6046] sm:$0xf]
      %v6048 = vld [vmem:[%s6046 + $0x4] sm:$0xf]
      %v6049 = vld [vmem:[%s6046 + $0x8] sm:$0xf]
      %v6053 = vunpack.c.l.b16 %v6047
      %v6054 = vunpack.c.l.b16 %v6048
      %v6055 = vunpack.c.l.b16 %v6049
      %v6056 = vpack.c.b16 %v6054, %v6053
      %v6057 = vpack.c.b16 %v6055, %v6055
      %v6059 = vsel %vm4502, %v5983, 0
      %v6061 = vsel %vm4502, %v5985, 0
      %v6063 = vsel %vm4502, %v5987, 0
      %v6065 = vsel %vm4502, %v5989, 0
      %v6067 = vsel %vm4502, %v5991, 0
      %v6069 = vsel %vm4502, %v5993, 0
      %v6071 = vsel %vm4502, %v5995, 0
      %v6073 = vsel %vm4502, %v5997, 0
      %v6075 = vsel %vm4502, %v5999, 0
      %v6077 = vsel %vm4502, %v6001, 0
      %v6079 = vsel %vm4502, %v6003, 0
      %v6081 = vsel %vm4502, %v6005, 0
      %v6083 = vsel %vm4502, %v6007, 0
      %v6085 = vsel %vm4502, %v6009, 0
      %v6087 = vsel %vm4502, %v6011, 0
      %v6089 = vsel %vm4502, %v6013, 0
      %v6092 = vsel %vm4535, %v6057, 0
      %6094 = vmatpush.bf16.msra.mxu0 0
      %6095 = vmatpush.bf16.msra.mxu0 0
      %6096 = vmatpush.bf16.msra.mxu0 0
      %6097 = vmatpush.bf16.msra.mxu0 0
      %6098 = vmatpush.bf16.msra.mxu0 0
      %6099 = vmatpush.bf16.msra.mxu0 0
      %6100 = vmatpush.bf16.msra.mxu0 %v6092
      %6101 = vmatpush.bf16.msra.mxu0 %v6056
      %6102 = vmatmul.bf16.gmra.mxu0 %v6059
      %v6103 = vpop.f32.mrf.mxu0
      %v6104 = vadd.f32 0.0, %v6103
      %v6105 = vpop.f32.mrf.mxu0
      %v6106 = vadd.f32 0.0, %v6105
      %6107 = vmatmul.bf16.gmra.mxu0 %v6061
      %v6108 = vpop.f32.mrf.mxu0
      %v6109 = vadd.f32 0.0, %v6108
      %v6110 = vpop.f32.mrf.mxu0
      %v6111 = vadd.f32 0.0, %v6110
      %6112 = vmatmul.bf16.gmra.mxu0 %v6063
      %v6113 = vpop.f32.mrf.mxu0
      %v6114 = vadd.f32 0.0, %v6113
      %v6115 = vpop.f32.mrf.mxu0
      %v6116 = vadd.f32 0.0, %v6115
      %6117 = vmatmul.bf16.gmra.mxu0 %v6065
      %v6118 = vpop.f32.mrf.mxu0
      %v6119 = vadd.f32 0.0, %v6118
      %v6120 = vpop.f32.mrf.mxu0
      %v6121 = vadd.f32 0.0, %v6120
      %6122 = vmatmul.bf16.gmra.mxu0 %v6067
      %v6123 = vpop.f32.mrf.mxu0
      %v6124 = vadd.f32 0.0, %v6123
      %v6125 = vpop.f32.mrf.mxu0
      %v6126 = vadd.f32 0.0, %v6125
      %6127 = vmatmul.bf16.gmra.mxu0 %v6069
      %v6128 = vpop.f32.mrf.mxu0
      %v6129 = vadd.f32 0.0, %v6128
      %v6130 = vpop.f32.mrf.mxu0
      %v6131 = vadd.f32 0.0, %v6130
      %6132 = vmatmul.bf16.gmra.mxu0 %v6071
      %v6133 = vpop.f32.mrf.mxu0
      %v6134 = vadd.f32 0.0, %v6133
      %v6135 = vpop.f32.mrf.mxu0
      %v6136 = vadd.f32 0.0, %v6135
      %6137 = vmatmul.bf16.gmra.mxu0 %v6073
      %v6138 = vpop.f32.mrf.mxu0
      %v6139 = vadd.f32 0.0, %v6138
      %v6140 = vpop.f32.mrf.mxu0
      %v6141 = vadd.f32 0.0, %v6140
      %6142 = vmatmul.bf16.gmra.mxu0 %v6075
      %v6143 = vpop.f32.mrf.mxu0
      %v6144 = vadd.f32 0.0, %v6143
      %v6145 = vpop.f32.mrf.mxu0
      %v6146 = vadd.f32 0.0, %v6145
      %6147 = vmatmul.bf16.gmra.mxu0 %v6077
      %v6148 = vpop.f32.mrf.mxu0
      %v6149 = vadd.f32 0.0, %v6148
      %v6150 = vpop.f32.mrf.mxu0
      %v6151 = vadd.f32 0.0, %v6150
      %6152 = vmatmul.bf16.gmra.mxu0 %v6079
      %v6153 = vpop.f32.mrf.mxu0
      %v6154 = vadd.f32 0.0, %v6153
      %v6155 = vpop.f32.mrf.mxu0
      %v6156 = vadd.f32 0.0, %v6155
      %6157 = vmatmul.bf16.gmra.mxu0 %v6081
      %v6158 = vpop.f32.mrf.mxu0
      %v6159 = vadd.f32 0.0, %v6158
      %v6160 = vpop.f32.mrf.mxu0
      %v6161 = vadd.f32 0.0, %v6160
      %6162 = vmatmul.bf16.gmra.mxu0 %v6083
      %v6163 = vpop.f32.mrf.mxu0
      %v6164 = vadd.f32 0.0, %v6163
      %v6165 = vpop.f32.mrf.mxu0
      %v6166 = vadd.f32 0.0, %v6165
      %6167 = vmatmul.bf16.gmra.mxu0 %v6085
      %v6168 = vpop.f32.mrf.mxu0
      %v6169 = vadd.f32 0.0, %v6168
      %v6170 = vpop.f32.mrf.mxu0
      %v6171 = vadd.f32 0.0, %v6170
      %6172 = vmatmul.bf16.gmra.mxu0 %v6087
      %v6173 = vpop.f32.mrf.mxu0
      %v6174 = vadd.f32 0.0, %v6173
      %v6175 = vpop.f32.mrf.mxu0
      %v6176 = vadd.f32 0.0, %v6175
      %6177 = vmatmul.bf16.gmra.mxu0 %v6089
      %v6178 = vpop.f32.mrf.mxu0
      %v6179 = vadd.f32 0.0, %v6178
      %v6180 = vpop.f32.mrf.mxu0
      %v6181 = vadd.f32 0.0, %v6180
      %6182 = vdwg.mxu0
      %v6183 = vadd.f32 %v6014, %v6104
      %v6184 = vadd.f32 %v6015, %v6106
      %v6185 = vadd.f32 %v6016, %v6109
      %v6186 = vadd.f32 %v6017, %v6111
      %v6187 = vadd.f32 %v6018, %v6114
      %v6188 = vadd.f32 %v6019, %v6116
      %v6189 = vadd.f32 %v6020, %v6119
      %v6190 = vadd.f32 %v6021, %v6121
      %v6191 = vadd.f32 %v6022, %v6124
      %v6192 = vadd.f32 %v6023, %v6126
      %v6193 = vadd.f32 %v6024, %v6129
      %v6194 = vadd.f32 %v6025, %v6131
      %v6195 = vadd.f32 %v6026, %v6134
      %v6196 = vadd.f32 %v6027, %v6136
      %v6197 = vadd.f32 %v6028, %v6139
      %v6198 = vadd.f32 %v6029, %v6141
      %v6199 = vadd.f32 %v6030, %v6144
      %v6200 = vadd.f32 %v6031, %v6146
      %v6201 = vadd.f32 %v6032, %v6149
      %v6202 = vadd.f32 %v6033, %v6151
      %v6203 = vadd.f32 %v6034, %v6154
      %v6204 = vadd.f32 %v6035, %v6156
      %v6205 = vadd.f32 %v6036, %v6159
      %v6206 = vadd.f32 %v6037, %v6161
      %v6207 = vadd.f32 %v6038, %v6164
      %v6208 = vadd.f32 %v6039, %v6166
      %v6209 = vadd.f32 %v6040, %v6169
      %v6210 = vadd.f32 %v6041, %v6171
      %v6211 = vadd.f32 %v6042, %v6174
      %v6212 = vadd.f32 %v6043, %v6176
      %v6213 = vadd.f32 %v6044, %v6179
      %v6214 = vadd.f32 %v6045, %v6181
      %6215 = vst.msk [vmem:[#allocation4] sm:$0xff] %vm809, %v6183
      %6216 = vst.msk [vmem:[#allocation4 + $0x8] sm:$0xff] %vm809, %v6184
      %6217 = vst.msk [vmem:[#allocation4 + $0x10] sm:$0xff] %vm809, %v6185
      %6218 = vst.msk [vmem:[#allocation4 + $0x18] sm:$0xff] %vm809, %v6186
      %6219 = vst.msk [vmem:[#allocation4 + $0x20] sm:$0xff] %vm809, %v6187
      %6220 = vst.msk [vmem:[#allocation4 + $0x28] sm:$0xff] %vm809, %v6188
      %6221 = vst.msk [vmem:[#allocation4 + $0x30] sm:$0xff] %vm809, %v6189
      %6222 = vst.msk [vmem:[#allocation4 + $0x38] sm:$0xff] %vm809, %v6190
      %6223 = vst.msk [vmem:[#allocation4 + $0x40] sm:$0xff] %vm809, %v6191
      %6224 = vst.msk [vmem:[#allocation4 + $0x48] sm:$0xff] %vm809, %v6192
      %6225 = vst.msk [vmem:[#allocation4 + $0x50] sm:$0xff] %vm809, %v6193
      %6226 = vst.msk [vmem:[#allocation4 + $0x58] sm:$0xff] %vm809, %v6194
      %6227 = vst.msk [vmem:[#allocation4 + $0x60] sm:$0xff] %vm809, %v6195
      %6228 = vst.msk [vmem:[#allocation4 + $0x68] sm:$0xff] %vm809, %v6196
      %6229 = vst.msk [vmem:[#allocation4 + $0x70] sm:$0xff] %vm809, %v6197
      %6230 = vst.msk [vmem:[#allocation4 + $0x78] sm:$0xff] %vm809, %v6198
      %6231 = vst.msk [vmem:[#allocation4 + $0x80] sm:$0xff] %vm809, %v6199
      %6232 = vst.msk [vmem:[#allocation4 + $0x88] sm:$0xff] %vm809, %v6200
      %6233 = vst.msk [vmem:[#allocation4 + $0x90] sm:$0xff] %vm809, %v6201
      %6234 = vst.msk [vmem:[#allocation4 + $0x98] sm:$0xff] %vm809, %v6202
      %6235 = vst.msk [vmem:[#allocation4 + $0xa0] sm:$0xff] %vm809, %v6203
      %6236 = vst.msk [vmem:[#allocation4 + $0xa8] sm:$0xff] %vm809, %v6204
      %6237 = vst.msk [vmem:[#allocation4 + $0xb0] sm:$0xff] %vm809, %v6205
      %6238 = vst.msk [vmem:[#allocation4 + $0xb8] sm:$0xff] %vm809, %v6206
      %6239 = vst.msk [vmem:[#allocation4 + $0xc0] sm:$0xff] %vm809, %v6207
      %6240 = vst.msk [vmem:[#allocation4 + $0xc8] sm:$0xff] %vm809, %v6208
      %6241 = vst.msk [vmem:[#allocation4 + $0xd0] sm:$0xff] %vm809, %v6209
      %6242 = vst.msk [vmem:[#allocation4 + $0xd8] sm:$0xff] %vm809, %v6210
      %6243 = vst.msk [vmem:[#allocation4 + $0xe0] sm:$0xff] %vm809, %v6211
      %6244 = vst.msk [vmem:[#allocation4 + $0xe8] sm:$0xff] %vm809, %v6212
      %6245 = vst.msk [vmem:[#allocation4 + $0xf0] sm:$0xff] %vm809, %v6213
      %6246 = vst.msk [vmem:[#allocation4 + $0xf8] sm:$0xff] %vm809, %v6214
      %v6247 = vld [vmem:[#allocation4] sm:$0xff]
      %v6248 = vld [vmem:[#allocation4 + $0x8] sm:$0xff]
      %v6249 = vld [vmem:[#allocation4 + $0x10] sm:$0xff]
      %v6250 = vld [vmem:[#allocation4 + $0x18] sm:$0xff]
      %v6251 = vld [vmem:[#allocation4 + $0x20] sm:$0xff]
      %v6252 = vld [vmem:[#allocation4 + $0x28] sm:$0xff]
      %v6253 = vld [vmem:[#allocation4 + $0x30] sm:$0xff]
      %v6254 = vld [vmem:[#allocation4 + $0x38] sm:$0xff]
      %v6255 = vld [vmem:[#allocation4 + $0x40] sm:$0xff]
      %v6256 = vld [vmem:[#allocation4 + $0x48] sm:$0xff]
      %v6257 = vld [vmem:[#allocation4 + $0x50] sm:$0xff]
      %v6258 = vld [vmem:[#allocation4 + $0x58] sm:$0xff]
      %v6259 = vld [vmem:[#allocation4 + $0x60] sm:$0xff]
      %v6260 = vld [vmem:[#allocation4 + $0x68] sm:$0xff]
      %v6261 = vld [vmem:[#allocation4 + $0x70] sm:$0xff]
      %v6262 = vld [vmem:[#allocation4 + $0x78] sm:$0xff]
      %v6263 = vld [vmem:[#allocation4 + $0x80] sm:$0xff]
      %v6264 = vld [vmem:[#allocation4 + $0x88] sm:$0xff]
      %v6265 = vld [vmem:[#allocation4 + $0x90] sm:$0xff]
      %v6266 = vld [vmem:[#allocation4 + $0x98] sm:$0xff]
      %v6267 = vld [vmem:[#allocation4 + $0xa0] sm:$0xff]
      %v6268 = vld [vmem:[#allocation4 + $0xa8] sm:$0xff]
      %v6269 = vld [vmem:[#allocation4 + $0xb0] sm:$0xff]
      %v6270 = vld [vmem:[#allocation4 + $0xb8] sm:$0xff]
      %v6271 = vld [vmem:[#allocation4 + $0xc0] sm:$0xff]
      %v6272 = vld [vmem:[#allocation4 + $0xc8] sm:$0xff]
      %v6273 = vld [vmem:[#allocation4 + $0xd0] sm:$0xff]
      %v6274 = vld [vmem:[#allocation4 + $0xd8] sm:$0xff]
      %v6275 = vld [vmem:[#allocation4 + $0xe0] sm:$0xff]
      %v6276 = vld [vmem:[#allocation4 + $0xe8] sm:$0xff]
      %v6277 = vld [vmem:[#allocation4 + $0xf0] sm:$0xff]
      %v6278 = vld [vmem:[#allocation4 + $0xf8] sm:$0xff]
      %v6279 = vmax.f32 %v6247, 0.0
      %v6280 = vmax.f32 %v6248, 0.0
      %v6281 = vmax.f32 %v6249, 0.0
      %v6282 = vmax.f32 %v6250, 0.0
      %v6283 = vmax.f32 %v6251, 0.0
      %v6284 = vmax.f32 %v6252, 0.0
      %v6285 = vmax.f32 %v6253, 0.0
      %v6286 = vmax.f32 %v6254, 0.0
      %v6287 = vmax.f32 %v6255, 0.0
      %v6288 = vmax.f32 %v6256, 0.0
      %v6289 = vmax.f32 %v6257, 0.0
      %v6290 = vmax.f32 %v6258, 0.0
      %v6291 = vmax.f32 %v6259, 0.0
      %v6292 = vmax.f32 %v6260, 0.0
      %v6293 = vmax.f32 %v6261, 0.0
      %v6294 = vmax.f32 %v6262, 0.0
      %v6295 = vmax.f32 %v6263, 0.0
      %v6296 = vmax.f32 %v6264, 0.0
      %v6297 = vmax.f32 %v6265, 0.0
      %v6298 = vmax.f32 %v6266, 0.0
      %v6299 = vmax.f32 %v6267, 0.0
      %v6300 = vmax.f32 %v6268, 0.0
      %v6301 = vmax.f32 %v6269, 0.0
      %v6302 = vmax.f32 %v6270, 0.0
      %v6303 = vmax.f32 %v6271, 0.0
      %v6304 = vmax.f32 %v6272, 0.0
      %v6305 = vmax.f32 %v6273, 0.0
      %v6306 = vmax.f32 %v6274, 0.0
      %v6307 = vmax.f32 %v6275, 0.0
      %v6308 = vmax.f32 %v6276, 0.0
      %v6309 = vmax.f32 %v6277, 0.0
      %v6310 = vmax.f32 %v6278, 0.0
      %v6311 = vpack.c.bf16 %v6279, %v6279
      %v6312 = vpack.c.bf16 %v6280, %v6280
      %v6313 = vpack.c.bf16 %v6281, %v6281
      %v6314 = vpack.c.bf16 %v6282, %v6282
      %v6315 = vpack.c.bf16 %v6283, %v6283
      %v6316 = vpack.c.bf16 %v6284, %v6284
      %v6317 = vpack.c.bf16 %v6285, %v6285
      %v6318 = vpack.c.bf16 %v6286, %v6286
      %v6319 = vpack.c.bf16 %v6287, %v6287
      %v6320 = vpack.c.bf16 %v6288, %v6288
      %v6321 = vpack.c.bf16 %v6289, %v6289
      %v6322 = vpack.c.bf16 %v6290, %v6290
      %v6323 = vpack.c.bf16 %v6291, %v6291
      %v6324 = vpack.c.bf16 %v6292, %v6292
      %v6325 = vpack.c.bf16 %v6293, %v6293
      %v6326 = vpack.c.bf16 %v6294, %v6294
      %v6327 = vpack.c.bf16 %v6295, %v6295
      %v6328 = vpack.c.bf16 %v6296, %v6296
      %v6329 = vpack.c.bf16 %v6297, %v6297
      %v6330 = vpack.c.bf16 %v6298, %v6298
      %v6331 = vpack.c.bf16 %v6299, %v6299
      %v6332 = vpack.c.bf16 %v6300, %v6300
      %v6333 = vpack.c.bf16 %v6301, %v6301
      %v6334 = vpack.c.bf16 %v6302, %v6302
      %v6335 = vpack.c.bf16 %v6303, %v6303
      %v6336 = vpack.c.bf16 %v6304, %v6304
      %v6337 = vpack.c.bf16 %v6305, %v6305
      %v6338 = vpack.c.bf16 %v6306, %v6306
      %v6339 = vpack.c.bf16 %v6307, %v6307
      %v6340 = vpack.c.bf16 %v6308, %v6308
      %v6341 = vpack.c.bf16 %v6309, %v6309
      %v6342 = vpack.c.bf16 %v6310, %v6310
      %6343 = vst.msk [vmem:[%s278] sm:$0xf] %vm3692, %v6311
      %6344 = vst.msk [vmem:[%s278 + $0x4] sm:$0xf] %vm3692, %v6312
      %6345 = vst.msk [vmem:[%s278 + $0x8] sm:$0xf] %vm3692, %v6313
      %6346 = vst.msk [vmem:[%s278 + $0xc] sm:$0xf] %vm3692, %v6314
      %6347 = vst.msk [vmem:[%s278 + $0x10] sm:$0xf] %vm3692, %v6315
      %6348 = vst.msk [vmem:[%s278 + $0x14] sm:$0xf] %vm3692, %v6316
      %6349 = vst.msk [vmem:[%s278 + $0x18] sm:$0xf] %vm3692, %v6317
      %6350 = vst.msk [vmem:[%s278 + $0x1c] sm:$0xf] %vm3692, %v6318
      %6351 = vst.msk [vmem:[%s278 + $0x20] sm:$0xf] %vm3692, %v6319
      %6352 = vst.msk [vmem:[%s278 + $0x24] sm:$0xf] %vm3692, %v6320
      %6353 = vst.msk [vmem:[%s278 + $0x28] sm:$0xf] %vm3692, %v6321
      %6354 = vst.msk [vmem:[%s278 + $0x2c] sm:$0xf] %vm3692, %v6322
      %6355 = vst.msk [vmem:[%s278 + $0x30] sm:$0xf] %vm3692, %v6323
      %6356 = vst.msk [vmem:[%s278 + $0x34] sm:$0xf] %vm3692, %v6324
      %6357 = vst.msk [vmem:[%s278 + $0x38] sm:$0xf] %vm3692, %v6325
      %6358 = vst.msk [vmem:[%s278 + $0x3c] sm:$0xf] %vm3692, %v6326
      %6359 = vst.msk [vmem:[%s278 + $0x40] sm:$0xf] %vm3692, %v6327
      %6360 = vst.msk [vmem:[%s278 + $0x44] sm:$0xf] %vm3692, %v6328
      %6361 = vst.msk [vmem:[%s278 + $0x48] sm:$0xf] %vm3692, %v6329
      %6362 = vst.msk [vmem:[%s278 + $0x4c] sm:$0xf] %vm3692, %v6330
      %6363 = vst.msk [vmem:[%s278 + $0x50] sm:$0xf] %vm3692, %v6331
      %6364 = vst.msk [vmem:[%s278 + $0x54] sm:$0xf] %vm3692, %v6332
      %6365 = vst.msk [vmem:[%s278 + $0x58] sm:$0xf] %vm3692, %v6333
      %6366 = vst.msk [vmem:[%s278 + $0x5c] sm:$0xf] %vm3692, %v6334
      %6367 = vst.msk [vmem:[%s278 + $0x60] sm:$0xf] %vm3692, %v6335
      %6368 = vst.msk [vmem:[%s278 + $0x64] sm:$0xf] %vm3692, %v6336
      %6369 = vst.msk [vmem:[%s278 + $0x68] sm:$0xf] %vm3692, %v6337
      %6370 = vst.msk [vmem:[%s278 + $0x6c] sm:$0xf] %vm3692, %v6338
      %6371 = vst.msk [vmem:[%s278 + $0x70] sm:$0xf] %vm3692, %v6339
      %6372 = vst.msk [vmem:[%s278 + $0x74] sm:$0xf] %vm3692, %v6340
      %6373 = vst.msk [vmem:[%s278 + $0x78] sm:$0xf] %vm3692, %v6341
      %6374 = vst.msk [vmem:[%s278 + $0x7c] sm:$0xf] %vm3692, %v6342
      %p6375 = scmp.lt.s32.totalorder %s18, 1
      %s6376 = scalar_select %p6375, %s18, 1
      %s6377 = smul.addr %s6376, 32
      %s6378 = smul.addr %s6377, 4
      %s6379 = scalar_lea.vmem %s7, %s6378
      // Predicated region
      $region49: #{tpu_custom_call.1} parent=47 // pred_check
        %p6380 = pneg %p188
      $region50: #{tpu_custom_call.1} parent=47 // pred_check_branch
        %6382 = sbr.rel (%p6380) target = $region52
      $region51: #{tpu_custom_call.1} parent=47 // pred_region
        _
      $region52: #{tpu_custom_call.1} parent=47 // pred_fallthru
        _
    $region48: #{tpu_custom_call.1} parent=5 // pred_fallthru
      _
    %p6383 = scmp.le.s32.totalorder 2, %s13
    // Predicated region
    $region53: #{tpu_custom_call.1} parent=5 // pred_check
      %p6384 = pneg %p6383
    $region54: #{tpu_custom_call.1} parent=5 // pred_check_branch
      %6386 = sbr.rel (%p6384) target = $region56
    $region55: #{tpu_custom_call.1} parent=5 // pred_region
      %s6387 = ssub.s32 %s13, 2
      // Predicated region
      $region57: #{tpu_custom_call.1} parent=55 // pred_check
        %p6388 = pneg %p194
      $region58: #{tpu_custom_call.1} parent=55 // pred_check_branch
        %6390 = sbr.rel (%p6388) target = $region60
      $region59: #{tpu_custom_call.1} parent=55 // pred_region
        %p6391 = scmp.lt.s32.totalorder %s19, 1
        %s6392 = scalar_select %p6391, %s19, 1
        %s6393 = smul.addr %s6392, 32
        %s6394 = smul.addr %s6393, 4
        %s6395 = scalar_lea.vmem %s7, %s6394
      $region60: #{tpu_custom_call.1} parent=55 // pred_fallthru
        _
    $region56: #{tpu_custom_call.1} parent=5 // pred_fallthru
      _
  $region6: #{tpu_custom_call.1} parent=0 // loop_footer
    %s17 = sadd.s32 1, %s13
  $region7: #{tpu_custom_call.1} parent=0 // loop_footer_branch
    %12 = sbr.rel target = $region3
  $region8: #{tpu_custom_call.1} parent=0 // loop_exit
    _

</llo_original>
